<compile_context>
chip_gen: v6e
topology: v6e:2x2x1
jax: 0.10.0
libtpu: 0.0.40
codegen_flags: <defaults>
</compile_context>

<pallas_src>
import jax
import jax.numpy as jnp
from jax import lax
from jax.experimental import pallas as pl
from jax.experimental.pallas import tpu as pltpu


# ----------------------------------------------------------------------------- fused kernel

def _make_kernel(T, N, H, SW, B, S):
    """Build the fused forward kernel for static dims.

    Row orderings (chosen so no transpose is needed between the two recurrences):
      word rows   : n = s*B + b        (sentence-major; sentences are independent)
      word time   : gi_scr row t*N + n
      sent rows   : sgi_scr / hs_scr row t*B + b  (sentence step t, paragraph b)
    """
    H2, H6 = 2 * H, 6 * H
    S2, S6 = 2 * S, 6 * S

    def kernel(x_ref, lens_ref, wihw_ref, bihw_ref, whhw_ref, bhhw_ref,
               wihs_ref, bihs_ref, whhs_ref, bhhs_ref, wl2_ref, bl_ref,
               out_ref, gi_scr, sgi_scr, ws_scr, hs_scr):
        # ---------------- word-level bidirectional GRU ----------------
        # Hoisted input projection for ALL timesteps & BOTH directions:
        # one MXU matmul, one bulk (unmasked) store.
        gi_scr[...] = (jnp.dot(x_ref[...], wihw_ref[...],
                               preferred_element_type=jnp.float32) + bihw_ref[...])

        whh_w = whhw_ref[...]                                      # (2H, 6H) block-diag
        bhh_w = bhhw_ref[...]
        lens2 = jnp.broadcast_to(lens_ref[...], (N, H2))           # (N, 2H) int32, hoisted
        fwd_half_w = lax.broadcasted_iota(jnp.int32, (N, H2), 1) < H
        bwd_half_w = jnp.logical_not(fwd_half_w)
        fwd_col_w = (lax.broadcasted_iota(jnp.int32, (N, H6), 1) % H2) < H

        # TODO(synk): for long sentences switch this static unroll to a bounded-unroll
        # lax.fori_loop with leading-dim-indexed scratch to limit code size / vreg pressure.
        h = jnp.zeros((N, H2), jnp.float32)                        # [h_fwd | h_bwd]
        for t in range(T):
            tb = T - 1 - t
            # fwd consumes step t, bwd consumes step T-1-t: one vsel blend of the
            # precomputed gate inputs (off the h-dependency chain).
            gi_t = jnp.where(fwd_col_w,
                             gi_scr[t * N:(t + 1) * N, :],
                             gi_scr[tb * N:(tb + 1) * N, :])       # (N, 6H)
            # NOTE: on v5e with tiny H this dot is MXU-latency-bound; a VPU broadcast-FMA
            # over (N, 6H) lanes may be cheaper — left on the MXU for simplicity.
            gh = jnp.dot(h, whh_w, preferred_element_type=jnp.float32) + bhh_w
            r = jax.nn.sigmoid(gi_t[:, :H2] + gh[:, :H2])
            z = jax.nn.sigmoid(gi_t[:, H2:2 * H2] + gh[:, H2:2 * H2])
            n = jnp.tanh(gi_t[:, 2 * H2:] + r * gh[:, 2 * H2:])
            h_new = (1.0 - z) * n + z * h
            # packed-sequence validity: fwd lanes valid iff t < len, bwd lanes iff tb < len
            valid = (fwd_half_w & (lens2 > t)) | (bwd_half_w & (lens2 > tb))
            out_s = jnp.where(valid, h_new, 0.0)                   # pad_packed: zeros
            # word states go straight into the lane-dense (N, 2*T*H) block:
            #   [fwd t=0..T-1 (H each) | bwd t=0..T-1 (H each)]
            ws_scr[:, t * H:(t + 1) * H] = out_s[:, :H]
            ws_scr[:, T * H + tb * H:T * H + (tb + 1) * H] = out_s[:, H:]
            h = jnp.where(valid, h_new, h)                         # freeze state on padding

        # ---------------- sentence-level bidirectional GRU ----------------
        # Word AvgPool1d(2) is folded into wihs, so the word-state block feeds the
        # sentence input projection directly (one MXU matmul, one bulk store).
        sgi_scr[...] = (jnp.dot(ws_scr[...], wihs_ref[...],
                                preferred_element_type=jnp.float32) + bihs_ref[...])

        whh_s = whhs_ref[...]
        bhh_s = bhhs_ref[...]
        fwd_col_s = (lax.broadcasted_iota(jnp.int32, (B, S6), 1) % S2) < S

        hs = jnp.zeros((B, S2), jnp.float32)                       # [h_fwd | h_bwd]
        for t in range(SW):
            tb = SW - 1 - t
            g_t = jnp.where(fwd_col_s,
                            sgi_scr[t * B:(t + 1) * B, :],
                            sgi_scr[tb * B:(tb + 1) * B, :])       # (B, 6S)
            gh = jnp.dot(hs, whh_s, preferred_element_type=jnp.float32) + bhh_s
            r = jax.nn.sigmoid(g_t[:, :S2] + gh[:, :S2])
            z = jax.nn.sigmoid(g_t[:, S2:2 * S2] + gh[:, S2:2 * S2])
            n = jnp.tanh(g_t[:, 2 * S2:] + r * gh[:, 2 * S2:])
            hs = (1.0 - z) * n + z * hs
            hs_scr[t * B:(t + 1) * B, :S] = hs[:, :S]              # fwd state @ sentence t
            hs_scr[tb * B:(tb + 1) * B, S:] = hs[:, S:]            # bwd state @ sentence tb

        # ---------------- pooled Linear + sigmoid epilogue ----------------
        # Sentence AvgPool1d(2) folded into wl2: one multiply + lane reduce over all
        # stacked states; no per-step 1-lane dots.
        logits = (jnp.sum(hs_scr[...] * wl2_ref[...], axis=-1, keepdims=True)
                  + bl_ref[...])                                   # (SW*B, 1), row = s*B + b
        probs = jax.nn.sigmoid(logits)
        for t in range(SW):
            out_ref[:, t:t + 1] = probs[t * B:(t + 1) * B, :]

    return kernel


# ----------------------------------------------------------------------------- wrapper

def summary_model_forward(fused, inputs, paragraph_lengths, sentence_lengths):
    """Equivalent of SummaryModel.forward. Returns sigmoid probs of shape (B, SW)."""
    del paragraph_lengths  # intentionally unused: the reference sentence GRU is not packed
    B, SW, T = inputs.shape
    H = fused["whh_w"].shape[0] // 2
    S = fused["whh_s"].shape[0] // 2
    E = fused["emb"].shape[1]
    N = SW * B

    # Tiny one-off XLA prep: embedding gather (keeps the vocab-wide table out of VMEM),
    # sentence-major row order (n = s*B + b), time-major embedding rows.
    tok = jnp.transpose(inputs, (1, 0, 2)).reshape(N, T).astype(jnp.int32)
    lens = jnp.transpose(sentence_lengths, (1, 0)).reshape(N, 1).astype(jnp.int32)
    x_emb = fused["emb"][tok]                                      # (N, T, E)
    x_tmaj = jnp.transpose(x_emb, (1, 0, 2)).reshape(T * N, E)     # (T*N, E)

    # TODO(synk): cast weights / x_tmaj to bf16 on v6e/v7x (keep f32 accumulation) and
    # grid over N row-tiles with dimension_semantics=("parallel",) for v7x megacore once
    # N is large enough to tile.
    kernel_inputs = (x_tmaj, lens,
                     fused["wih_w"], fused["bih_w"], fused["whh_w"], fused["bhh_w"],
                     fused["wih_s"], fused["bih_s"], fused["whh_s"], fused["bhh_s"],
                     fused["wl2"], fused["bl"])

    return pl.pallas_call(
        _make_kernel(T, N, H, SW, B, S),
        out_shape=jax.ShapeDtypeStruct((B, SW), jnp.float32),
        grid=(1,),
        in_specs=[pl.BlockSpec(a.shape, lambda i, nd=a.ndim: (0,) * nd)
                  for a in kernel_inputs],
        out_specs=pl.BlockSpec((B, SW), lambda i: (0, 0)),
        scratch_shapes=[pltpu.VMEM((T * N, 6 * H), jnp.float32),   # word gate inputs
                        pltpu.VMEM((N, 6 * S), jnp.float32),       # sentence gate inputs
                        pltpu.VMEM((N, 2 * T * H), jnp.float32),   # word states (lane-dense)
                        pltpu.VMEM((N, 2 * S), jnp.float32)],      # sentence states
        compiler_params=pltpu.CompilerParams(dimension_semantics=("arbitrary",)),
    )(*kernel_inputs)


# ----------------------------------------------------------------------------- weight fusion

def _interleave_gates(wf, wb, h):
    """Interleave per-direction gate blocks [r|z|n] -> [r_f r_b z_f z_b n_f n_b]."""
    parts = []
    for g in range(3):
        parts.append(wf[..., g * h:(g + 1) * h])
        parts.append(wb[..., g * h:(g + 1) * h])
    return jnp.concatenate(parts, axis=-1)


def _word_pool_fold(t_steps, h):
    """(2*T*H, T*H) matrix mapping the kernel word-state layout
    [fwd t-major | bwd t-major] through AvgPool1d(2) + flatten (PyTorch t-major order)."""
    c = jnp.arange(2 * t_steps * h)
    is_bwd = c >= t_steps * h
    cc = jnp.where(is_bwd, c - t_steps * h, c)
    t = cc // h
    i = cc % h
    j = jnp.where(is_bwd, (h + i) // 2, i // 2)
    return 0.5 * jax.nn.one_hot(t * h + j, t_steps * h, dtype=jnp.float32)


def fuse_params(p, t_steps):
    """One-off (hoisted out of the forward path): fold both AvgPool1d(2) ops into the
    downstream weights and fuse the two GRU directions with interleaved gate columns."""
    H = p["w_hh_f"].shape[0]
    S = p["s_hh_f"].shape[0]
    # word-level bi-GRU
    wih_w = _interleave_gates(p["w_ih_f"], p["w_ih_b"], H)                 # (E, 6H)
    bih_w = _interleave_gates(p["b_ih_f"], p["b_ih_b"], H)                 # (1, 6H)
    zH = jnp.zeros((H, 3 * H), jnp.float32)
    whh_w = _interleave_gates(jnp.concatenate([p["w_hh_f"], zH], axis=0),
                              jnp.concatenate([zH, p["w_hh_b"]], axis=0), H)  # (2H, 6H)
    bhh_w = _interleave_gates(p["b_hh_f"], p["b_hh_b"], H)
    # sentence-level bi-GRU, word AvgPool1d(2) folded into its input projection
    P = _word_pool_fold(t_steps, H)                                        # (2TH, TH)
    wih_s = _interleave_gates(P @ p["s_ih_f"], P @ p["s_ih_b"], S)         # (2TH, 6S)
    bih_s = _interleave_gates(p["sb_ih_f"], p["sb_ih_b"], S)
    zS = jnp.zeros((S, 3 * S), jnp.float32)
    whh_s = _interleave_gates(jnp.concatenate([p["s_hh_f"], zS], axis=0),
                              jnp.concatenate([zS, p["s_hh_b"]], axis=0), S)  # (2S, 6S)
    bhh_s = _interleave_gates(p["sb_hh_f"], p["sb_hh_b"], S)
    # final Linear with the sentence AvgPool1d(2) folded in, laid out [fwd S | bwd S]
    wl2 = (0.5 * p["wl"][jnp.arange(2 * S) // 2, :]).T                     # (1, 2S)
    return dict(emb=p["emb"], wih_w=wih_w, bih_w=bih_w, whh_w=whh_w, bhh_w=bhh_w,
                wih_s=wih_s, bih_s=bih_s, whh_s=whh_s, bhh_s=bhh_s,
                wl2=wl2, bl=p["bl"])


# ----------------------------------------------------------------------------- params / reference

def init_params(key, vocab, emb_size, word_rnn, sent_rnn, max_sent):
    D = word_rnn * max_sent
    ks = jax.random.split(key, 20)

    def u(k, shape, scale):
        return jax.random.uniform(k, shape, jnp.float32, -scale, scale)

    kw = 1.0 / float(jnp.sqrt(word_rnn))
    kv = 1.0 / float(jnp.sqrt(sent_rnn))
    return dict(
        emb=jax.random.normal(ks[0], (vocab, emb_size), jnp.float32),
        # word-level bi-GRU (forward / backward), pre-transposed W^T, gate order (r,z,n)
        w_ih_f=u(ks[1], (emb_size, 3 * word_rnn), kw), w_hh_f=u(ks[2], (word_rnn, 3 * word_rnn), kw),
        b_ih_f=u(ks[3], (1, 3 * word_rnn), kw), b_hh_f=u(ks[4], (1, 3 * word_rnn), kw),
        w_ih_b=u(ks[5], (emb_size, 3 * word_rnn), kw), w_hh_b=u(ks[6], (word_rnn, 3 * word_rnn), kw),
        b_ih_b=u(ks[7], (1, 3 * word_rnn), kw), b_hh_b=u(ks[8], (1, 3 * word_rnn), kw),
        # sentence-level bi-GRU
        s_ih_f=u(ks[9], (D, 3 * sent_rnn), kv), s_hh_f=u(ks[10], (sent_rnn, 3 * sent_rnn), kv),
        sb_ih_f=u(ks[11], (1, 3 * sent_rnn), kv), sb_hh_f=u(ks[12], (1, 3 * sent_rnn), kv),
        s_ih_b=u(ks[13], (D, 3 * sent_rnn), kv), s_hh_b=u(ks[14], (sent_rnn, 3 * sent_rnn), kv),
        sb_ih_b=u(ks[15], (1, 3 * sent_rnn), kv), sb_hh_b=u(ks[16], (1, 3 * sent_rnn), kv),
        # final Linear(sent_rnn, 1)
        wl=u(ks[17], (sent_rnn, 1), kv), bl=u(ks[18], (1, 1), kv),
    )


def _gru_cell_ref(x, h, w_ih_t, w_hh_t, b_ih, b_hh, hidden):
    gi = x @ w_ih_t + b_ih
    gh = h @ w_hh_t + b_hh
    r = jax.nn.sigmoid(gi[:, :hidden] + gh[:, :hidden])
    z = jax.nn.sigmoid(gi[:, hidden:2 * hidden] + gh[:, hidden:2 * hidden])
    n = jnp.tanh(gi[:, 2 * hidden:] + r * gh[:, 2 * hidden:])
    return (1.0 - z) * n + z * h


def reference_forward(p, tokens, sentence_lengths, word_rnn, sent_rnn):
    """Pure-JAX reference with identical semantics (for validation)."""
    B, SW, T = tokens.shape
    N = B * SW
    tok = tokens.reshape(N, T)
    lens = sentence_lengths.reshape(N)
    mask = (jnp.arange(T)[None, :] < lens[:, None]).astype(jnp.float32)
    emb = p["emb"][tok]                                        # (N, T, E)

    def run_word(wih, whh, bih, bhh, reverse):
        h = jnp.zeros((N, word_rnn), jnp.float32)
        outs = [None] * T
        for t in (range(T - 1, -1, -1) if reverse else range(T)):
            hn = _gru_cell_ref(emb[:, t, :], h, wih, whh, bih, bhh, word_rnn)
            m = mask[:, t:t + 1]
            h = m * hn + (1.0 - m) * h
            outs[t] = m * hn
        return jnp.stack(outs, axis=1)                         # (N, T, Hw)

    fwd = run_word(p["w_ih_f"], p["w_hh_f"], p["b_ih_f"], p["b_hh_f"], False)
    bwd = run_word(p["w_ih_b"], p["w_hh_b"], p["b_ih_b"], p["b_hh_b"], True)
    cat = jnp.concatenate([fwd, bwd], axis=-1)                 # (N, T, 2Hw)
    pooled = (cat[..., 0::2] + cat[..., 1::2]) * 0.5           # AvgPool1d(2)
    sent_in = pooled.reshape(B, SW, T * word_rnn)

    def run_sent(wih, whh, bih, bhh, reverse):
        h = jnp.zeros((B, sent_rnn), jnp.float32)
        outs = [None] * SW
        for t in (range(SW - 1, -1, -1) if reverse else range(SW)):
            h = _gru_cell_ref(sent_in[:, t, :], h, wih, whh, bih, bhh, sent_rnn)
            outs[t] = h
        return jnp.stack(outs, axis=1)

    sf = run_sent(p["s_ih_f"], p["s_hh_f"], p["sb_ih_f"], p["sb_hh_f"], False)
    sb = run_sent(p["s_ih_b"], p["s_hh_b"], p["sb_ih_b"], p["sb_hh_b"], True)
    sc = jnp.concatenate([sf, sb], axis=-1)                    # (B, SW, 2S)
    sp = (sc[..., 0::2] + sc[..., 1::2]) * 0.5                 # (B, SW, S)
    logits = sp @ p["wl"] + p["bl"][0]                         # (B, SW, 1)
    return jax.nn.sigmoid(logits[..., 0])


# ----------------------------------------------------------------------------- main

if __name__ == "__main__":
    vocab_size = 50
    word_rnn_size = 8
    sentence_rnn_size = 16
    embedding_size = 16
    max_sentence_size = 8
    batch = 2
    sentence_window = 4

    key = jax.random.PRNGKey(0)
    k_tok, k_len, k_par, k_param = jax.random.split(key, 4)

    tokens = jax.random.randint(
        k_tok, (batch, sentence_window, max_sentence_size), 0, vocab_size, dtype=jnp.int32)
    sentence_lengths = jax.random.randint(
        k_len, (batch, sentence_window), 1, max_sentence_size + 1, dtype=jnp.int32)
    paragraph_lengths = jnp.full((batch,), sentence_window, dtype=jnp.int32)

    params = init_params(k_param, vocab_size, embedding_size,
                         word_rnn_size, sentence_rnn_size, max_sentence_size)

    # Weight fusion hoisted out of the per-call latency path; cache next to the params.
    fused = jax.block_until_ready(fuse_params(params, max_sentence_size))

    fwd = jax.jit(summary_model_forward)
    out = fwd(fused, tokens, paragraph_lengths, sentence_lengths)
    out = jax.block_until_ready(out)

    ref = reference_forward(params, tokens, sentence_lengths,
                            word_rnn_size, sentence_rnn_size)

    assert out.shape == (batch, sentence_window), out.shape
    assert jnp.all(jnp.isfinite(out))
    assert jnp.allclose(out, ref, atol=2e-3, rtol=2e-3), (out, ref)
    print("KERNEL_OK")
</pallas_src>

<mosaic_0001>
module attributes {stable_mosaic.version = 11 : i64} {
  func.func @kernel(%arg0: i32, %arg1: memref<64x16xf32, #tpu.memory_space<vmem>>, %arg2: memref<8x1xi32, #tpu.memory_space<vmem>>, %arg3: memref<16x48xf32, #tpu.memory_space<vmem>>, %arg4: memref<1x48xf32, #tpu.memory_space<vmem>>, %arg5: memref<16x48xf32, #tpu.memory_space<vmem>>, %arg6: memref<1x48xf32, #tpu.memory_space<vmem>>, %arg7: memref<128x96xf32, #tpu.memory_space<vmem>>, %arg8: memref<1x96xf32, #tpu.memory_space<vmem>>, %arg9: memref<32x96xf32, #tpu.memory_space<vmem>>, %arg10: memref<1x96xf32, #tpu.memory_space<vmem>>, %arg11: memref<1x32xf32, #tpu.memory_space<vmem>>, %arg12: memref<1x1xf32, #tpu.memory_space<vmem>>, %arg13: memref<2x4xf32, #tpu.memory_space<vmem>>, %arg14: memref<64x48xf32, #tpu.memory_space<vmem>>, %arg15: memref<8x96xf32, #tpu.memory_space<vmem>>, %arg16: memref<8x128xf32, #tpu.memory_space<vmem>>, %arg17: memref<8x32xf32, #tpu.memory_space<vmem>>) attributes {dimension_semantics = [#tpu.dimension_semantics<arbitrary>], iteration_bounds = array<i64: 1>, scalar_prefetch = 0 : i64, scratch_operands = 4 : i64, tpu.core_type = #tpu.core_type<tc>, window_params = [{pipeline_mode = #tpu.pipeline_mode<synchronous>, transform_indices = @transform_0, window_bounds = array<i64: 64, 16>}, {pipeline_mode = #tpu.pipeline_mode<synchronous>, transform_indices = @transform_1, window_bounds = array<i64: 8, 1>}, {pipeline_mode = #tpu.pipeline_mode<synchronous>, transform_indices = @transform_2, window_bounds = array<i64: 16, 48>}, {pipeline_mode = #tpu.pipeline_mode<synchronous>, transform_indices = @transform_3, window_bounds = array<i64: 1, 48>}, {pipeline_mode = #tpu.pipeline_mode<synchronous>, transform_indices = @transform_4, window_bounds = array<i64: 16, 48>}, {pipeline_mode = #tpu.pipeline_mode<synchronous>, transform_indices = @transform_5, window_bounds = array<i64: 1, 48>}, {pipeline_mode = #tpu.pipeline_mode<synchronous>, transform_indices = @transform_6, window_bounds = array<i64: 128, 96>}, {pipeline_mode = #tpu.pipeline_mode<synchronous>, transform_indices = @transform_7, window_bounds = array<i64: 1, 96>}, {pipeline_mode = #tpu.pipeline_mode<synchronous>, transform_indices = @transform_8, window_bounds = array<i64: 32, 96>}, {pipeline_mode = #tpu.pipeline_mode<synchronous>, transform_indices = @transform_9, window_bounds = array<i64: 1, 96>}, {pipeline_mode = #tpu.pipeline_mode<synchronous>, transform_indices = @transform_10, window_bounds = array<i64: 1, 32>}, {pipeline_mode = #tpu.pipeline_mode<synchronous>, transform_indices = @transform_11, window_bounds = array<i64: 1, 1>}, {pipeline_mode = #tpu.pipeline_mode<synchronous>, transform_indices = @transform_12, window_bounds = array<i64: 2, 4>}]} {
    %c0 = arith.constant 0 : index
    %c0_0 = arith.constant 0 : index
    %0 = vector.load %arg1[%c0, %c0_0] : memref<64x16xf32, #tpu.memory_space<vmem>>, vector<64x16xf32>
    %c0_1 = arith.constant 0 : index
    %c0_2 = arith.constant 0 : index
    %1 = vector.load %arg3[%c0_1, %c0_2] : memref<16x48xf32, #tpu.memory_space<vmem>>, vector<16x48xf32>
    %cst = arith.constant dense<0.000000e+00> : vector<64x48xf32>
    %2 = tpu.matmul %0, %1, %cst {dimension_numbers = #tpu.dot_dimension_numbers<[1], [0], [0], [1], [0, 0, 1, 1], [], []>} : vector<64x16xf32>, vector<16x48xf32>, vector<64x48xf32> -> vector<64x48xf32>
    %c0_3 = arith.constant 0 : index
    %c0_4 = arith.constant 0 : index
    %3 = vector.load %arg4[%c0_3, %c0_4] : memref<1x48xf32, #tpu.memory_space<vmem>>, vector<1x48xf32>
    %4 = vector.broadcast %3 : vector<1x48xf32> to vector<64x48xf32>
    %5 = arith.addf %2, %4 : vector<64x48xf32>
    %c0_5 = arith.constant 0 : index
    %c0_6 = arith.constant 0 : index
    %6 = vector.load %arg14[%c0_5, %c0_6] : memref<64x48xf32, #tpu.memory_space<vmem>>, vector<64x48xf32>
    tpu.vector_store %arg14[%c0_5, %c0_6], %5 {strides = array<i32>} : memref<64x48xf32, #tpu.memory_space<vmem>>, vector<64x48xf32>,
    %c0_7 = arith.constant 0 : index
    %c0_8 = arith.constant 0 : index
    %7 = vector.load %arg5[%c0_7, %c0_8] : memref<16x48xf32, #tpu.memory_space<vmem>>, vector<16x48xf32>
    %c0_9 = arith.constant 0 : index
    %c0_10 = arith.constant 0 : index
    %8 = vector.load %arg6[%c0_9, %c0_10] : memref<1x48xf32, #tpu.memory_space<vmem>>, vector<1x48xf32>
    %c0_11 = arith.constant 0 : index
    %c0_12 = arith.constant 0 : index
    %9 = vector.load %arg2[%c0_11, %c0_12] : memref<8x1xi32, #tpu.memory_space<vmem>>, vector<8x1xi32>
    %10 = vector.shape_cast %9 : vector<8x1xi32> to vector<8x1xi32>
    %11 = vector.broadcast %10 : vector<8x1xi32> to vector<8x16xi32>
    %12 = tpu.iota {dimensions = array<i32: 1>} : vector<8x16xi32>
    %c8_i32 = arith.constant 8 : i32
    %13 = vector.broadcast %c8_i32 : i32 to vector<8x16xi32>
    %14 = arith.cmpi slt, %12, %13 : vector<8x16xi32>
    %cst_13 = arith.constant dense<true> : vector<8x16xi1>
    %15 = arith.xori %14, %cst_13 : vector<8x16xi1>
    %16 = tpu.iota {dimensions = array<i32: 1>} : vector<8x48xi32>
    %c16_i32 = arith.constant 16 : i32
    %c0_i32 = arith.constant 0 : i32
    %17 = arith.cmpi eq, %c16_i32, %c0_i32 : i32
    %c1_i32 = arith.constant 1 : i32
    %18 = arith.select %17, %c1_i32, %c16_i32 : i32
    %19 = vector.broadcast %18 : i32 to vector<8x48xi32>
    %20 = arith.remsi %16, %19 : vector<8x48xi32>
    %c0_i32_14 = arith.constant 0 : i32
    %21 = vector.broadcast %c0_i32_14 : i32 to vector<8x48xi32>
    %22 = arith.cmpi ne, %20, %21 : vector<8x48xi32>
    %c0_i32_15 = arith.constant 0 : i32
    %23 = vector.broadcast %c0_i32_15 : i32 to vector<8x48xi32>
    %24 = arith.cmpi slt, %20, %23 : vector<8x48xi32>
    %c0_i32_16 = arith.constant 0 : i32
    %25 = arith.cmpi slt, %18, %c0_i32_16 : i32
    %26 = vector.broadcast %25 : i1 to vector<8x48xi1>
    %27 = vector.broadcast %26 : vector<8x48xi1> to vector<8x48xi1>
    %28 = arith.xori %24, %27 : vector<8x48xi1>
    %29 = arith.andi %28, %22 : vector<8x48xi1>
    %30 = vector.broadcast %18 : i32 to vector<8x48xi32>
    %31 = arith.addi %20, %30 : vector<8x48xi32>
    %32 = arith.select %29, %31, %20 : vector<8x48xi1>, vector<8x48xi32>
    %c8_i32_17 = arith.constant 8 : i32
    %33 = vector.broadcast %c8_i32_17 : i32 to vector<8x48xi32>
    %34 = arith.cmpi slt, %32, %33 : vector<8x48xi32>
    %cst_18 = arith.constant 0.000000e+00 : f32
    %35 = vector.broadcast %cst_18 : f32 to vector<8x16xf32>
    %c0_19 = arith.constant 0 : index
    %c0_20 = arith.constant 0 : index
    %36 = vector.load %arg14[%c0_19, %c0_20] : memref<64x48xf32, #tpu.memory_space<vmem>>, vector<8x48xf32>
    %c56 = arith.constant 56 : index
    %c0_21 = arith.constant 0 : index
    %37 = vector.load %arg14[%c56, %c0_21] : memref<64x48xf32, #tpu.memory_space<vmem>>, vector<8x48xf32>
    %38 = arith.select %34, %36, %37 : vector<8x48xi1>, vector<8x48xf32>
    %cst_22 = arith.constant dense<0.000000e+00> : vector<8x48xf32>
    %39 = tpu.matmul %35, %7, %cst_22 {dimension_numbers = #tpu.dot_dimension_numbers<[1], [0], [0], [1], [0, 0, 1, 1], [], []>} : vector<8x16xf32>, vector<16x48xf32>, vector<8x48xf32> -> vector<8x48xf32>
    %40 = vector.broadcast %8 : vector<1x48xf32> to vector<8x48xf32>
    %41 = arith.addf %39, %40 : vector<8x48xf32>
    %42 = vector.extract_strided_slice %38 {offsets = [0, 0], sizes = [8, 16], strides = [1, 1]} : vector<8x48xf32> to vector<8x16xf32>
    %43 = vector.extract_strided_slice %41 {offsets = [0, 0], sizes = [8, 16], strides = [1, 1]} : vector<8x48xf32> to vector<8x16xf32>
    %44 = arith.addf %42, %43 : vector<8x16xf32>
    %45 = arith.negf %44 : vector<8x16xf32>
    %46 = math.exp %45 : vector<8x16xf32>
    %cst_23 = arith.constant 1.000000e+00 : f32
    %47 = vector.broadcast %cst_23 : f32 to vector<8x16xf32>
    %48 = arith.addf %47, %46 : vector<8x16xf32>
    %49 = arith.divf %47, %48 : vector<8x16xf32>
    %50 = vector.extract_strided_slice %38 {offsets = [0, 16], sizes = [8, 16], strides = [1, 1]} : vector<8x48xf32> to vector<8x16xf32>
    %51 = vector.extract_strided_slice %41 {offsets = [0, 16], sizes = [8, 16], strides = [1, 1]} : vector<8x48xf32> to vector<8x16xf32>
    %52 = arith.addf %50, %51 : vector<8x16xf32>
    %53 = arith.negf %52 : vector<8x16xf32>
    %54 = math.exp %53 : vector<8x16xf32>
    %cst_24 = arith.constant 1.000000e+00 : f32
    %55 = vector.broadcast %cst_24 : f32 to vector<8x16xf32>
    %56 = arith.addf %55, %54 : vector<8x16xf32>
    %57 = arith.divf %55, %56 : vector<8x16xf32>
    %58 = vector.extract_strided_slice %38 {offsets = [0, 32], sizes = [8, 16], strides = [1, 1]} : vector<8x48xf32> to vector<8x16xf32>
    %59 = vector.extract_strided_slice %41 {offsets = [0, 32], sizes = [8, 16], strides = [1, 1]} : vector<8x48xf32> to vector<8x16xf32>
    %60 = arith.mulf %49, %59 : vector<8x16xf32>
    %61 = arith.addf %58, %60 : vector<8x16xf32>
    %62 = math.tanh %61 : vector<8x16xf32>
    %cst_25 = arith.constant 1.000000e+00 : f32
    %63 = vector.broadcast %cst_25 : f32 to vector<8x16xf32>
    %64 = arith.subf %63, %57 : vector<8x16xf32>
    %65 = arith.mulf %64, %62 : vector<8x16xf32>
    %66 = arith.mulf %57, %35 : vector<8x16xf32>
    %67 = arith.addf %65, %66 : vector<8x16xf32>
    %c0_i32_26 = arith.constant 0 : i32
    %68 = vector.broadcast %c0_i32_26 : i32 to vector<8x16xi32>
    %69 = arith.cmpi sgt, %11, %68 : vector<8x16xi32>
    %70 = arith.andi %14, %69 : vector<8x16xi1>
    %c7_i32 = arith.constant 7 : i32
    %71 = vector.broadcast %c7_i32 : i32 to vector<8x16xi32>
    %72 = arith.cmpi sgt, %11, %71 : vector<8x16xi32>
    %73 = arith.andi %15, %72 : vector<8x16xi1>
    %74 = arith.ori %70, %73 : vector<8x16xi1>
    %cst_27 = arith.constant 0.000000e+00 : f32
    %75 = vector.broadcast %cst_27 : f32 to vector<8x16xf32>
    %76 = arith.select %74, %67, %75 : vector<8x16xi1>, vector<8x16xf32>
    %77 = vector.extract_strided_slice %76 {offsets = [0, 0], sizes = [8, 8], strides = [1, 1]} : vector<8x16xf32> to vector<8x8xf32>
    %c0_28 = arith.constant 0 : index
    %c0_29 = arith.constant 0 : index
    %78 = vector.load %arg16[%c0_28, %c0_29] : memref<8x128xf32, #tpu.memory_space<vmem>>, vector<8x8xf32>
    tpu.vector_store %arg16[%c0_28, %c0_29], %77 {strides = array<i32>} : memref<8x128xf32, #tpu.memory_space<vmem>>, vector<8x8xf32>,
    %79 = vector.extract_strided_slice %76 {offsets = [0, 8], sizes = [8, 8], strides = [1, 1]} : vector<8x16xf32> to vector<8x8xf32>
    %c0_30 = arith.constant 0 : index
    %c120 = arith.constant 120 : index
    %80 = vector.load %arg16[%c0_30, %c120] : memref<8x128xf32, #tpu.memory_space<vmem>>, vector<8x8xf32>
    tpu.vector_store %arg16[%c0_30, %c120], %79 {strides = array<i32>} : memref<8x128xf32, #tpu.memory_space<vmem>>, vector<8x8xf32>,
    %81 = arith.select %74, %67, %35 : vector<8x16xi1>, vector<8x16xf32>
    %c8 = arith.constant 8 : index
    %c0_31 = arith.constant 0 : index
    %82 = vector.load %arg14[%c8, %c0_31] : memref<64x48xf32, #tpu.memory_space<vmem>>, vector<8x48xf32>
    %c48 = arith.constant 48 : index
    %c0_32 = arith.constant 0 : index
    %83 = vector.load %arg14[%c48, %c0_32] : memref<64x48xf32, #tpu.memory_space<vmem>>, vector<8x48xf32>
    %84 = arith.select %34, %82, %83 : vector<8x48xi1>, vector<8x48xf32>
    %cst_33 = arith.constant dense<0.000000e+00> : vector<8x48xf32>
    %85 = tpu.matmul %81, %7, %cst_33 {dimension_numbers = #tpu.dot_dimension_numbers<[1], [0], [0], [1], [0, 0, 1, 1], [], []>} : vector<8x16xf32>, vector<16x48xf32>, vector<8x48xf32> -> vector<8x48xf32>
    %86 = vector.broadcast %8 : vector<1x48xf32> to vector<8x48xf32>
    %87 = arith.addf %85, %86 : vector<8x48xf32>
    %88 = vector.extract_strided_slice %84 {offsets = [0, 0], sizes = [8, 16], strides = [1, 1]} : vector<8x48xf32> to vector<8x16xf32>
    %89 = vector.extract_strided_slice %87 {offsets = [0, 0], sizes = [8, 16], strides = [1, 1]} : vector<8x48xf32> to vector<8x16xf32>
    %90 = arith.addf %88, %89 : vector<8x16xf32>
    %91 = arith.negf %90 : vector<8x16xf32>
    %92 = math.exp %91 : vector<8x16xf32>
    %cst_34 = arith.constant 1.000000e+00 : f32
    %93 = vector.broadcast %cst_34 : f32 to vector<8x16xf32>
    %94 = arith.addf %93, %92 : vector<8x16xf32>
    %95 = arith.divf %93, %94 : vector<8x16xf32>
    %96 = vector.extract_strided_slice %84 {offsets = [0, 16], sizes = [8, 16], strides = [1, 1]} : vector<8x48xf32> to vector<8x16xf32>
    %97 = vector.extract_strided_slice %87 {offsets = [0, 16], sizes = [8, 16], strides = [1, 1]} : vector<8x48xf32> to vector<8x16xf32>
    %98 = arith.addf %96, %97 : vector<8x16xf32>
    %99 = arith.negf %98 : vector<8x16xf32>
    %100 = math.exp %99 : vector<8x16xf32>
    %cst_35 = arith.constant 1.000000e+00 : f32
    %101 = vector.broadcast %cst_35 : f32 to vector<8x16xf32>
    %102 = arith.addf %101, %100 : vector<8x16xf32>
    %103 = arith.divf %101, %102 : vector<8x16xf32>
    %104 = vector.extract_strided_slice %84 {offsets = [0, 32], sizes = [8, 16], strides = [1, 1]} : vector<8x48xf32> to vector<8x16xf32>
    %105 = vector.extract_strided_slice %87 {offsets = [0, 32], sizes = [8, 16], strides = [1, 1]} : vector<8x48xf32> to vector<8x16xf32>
    %106 = arith.mulf %95, %105 : vector<8x16xf32>
    %107 = arith.addf %104, %106 : vector<8x16xf32>
    %108 = math.tanh %107 : vector<8x16xf32>
    %cst_36 = arith.constant 1.000000e+00 : f32
    %109 = vector.broadcast %cst_36 : f32 to vector<8x16xf32>
    %110 = arith.subf %109, %103 : vector<8x16xf32>
    %111 = arith.mulf %110, %108 : vector<8x16xf32>
    %112 = arith.mulf %103, %81 : vector<8x16xf32>
    %113 = arith.addf %111, %112 : vector<8x16xf32>
    %c1_i32_37 = arith.constant 1 : i32
    %114 = vector.broadcast %c1_i32_37 : i32 to vector<8x16xi32>
    %115 = arith.cmpi sgt, %11, %114 : vector<8x16xi32>
    %116 = arith.andi %14, %115 : vector<8x16xi1>
    %c6_i32 = arith.constant 6 : i32
    %117 = vector.broadcast %c6_i32 : i32 to vector<8x16xi32>
    %118 = arith.cmpi sgt, %11, %117 : vector<8x16xi32>
    %119 = arith.andi %15, %118 : vector<8x16xi1>
    %120 = arith.ori %116, %119 : vector<8x16xi1>
    %cst_38 = arith.constant 0.000000e+00 : f32
    %121 = vector.broadcast %cst_38 : f32 to vector<8x16xf32>
    %122 = arith.select %120, %113, %121 : vector<8x16xi1>, vector<8x16xf32>
    %123 = vector.extract_strided_slice %122 {offsets = [0, 0], sizes = [8, 8], strides = [1, 1]} : vector<8x16xf32> to vector<8x8xf32>
    %c0_39 = arith.constant 0 : index
    %c8_40 = arith.constant 8 : index
    %124 = vector.load %arg16[%c0_39, %c8_40] : memref<8x128xf32, #tpu.memory_space<vmem>>, vector<8x8xf32>
    tpu.vector_store %arg16[%c0_39, %c8_40], %123 {strides = array<i32>} : memref<8x128xf32, #tpu.memory_space<vmem>>, vector<8x8xf32>,
    %125 = vector.extract_strided_slice %122 {offsets = [0, 8], sizes = [8, 8], strides = [1, 1]} : vector<8x16xf32> to vector<8x8xf32>
    %c0_41 = arith.constant 0 : index
    %c112 = arith.constant 112 : index
    %126 = vector.load %arg16[%c0_41, %c112] : memref<8x128xf32, #tpu.memory_space<vmem>>, vector<8x8xf32>
    tpu.vector_store %arg16[%c0_41, %c112], %125 {strides = array<i32>} : memref<8x128xf32, #tpu.memory_space<vmem>>, vector<8x8xf32>,
    %127 = arith.select %120, %113, %81 : vector<8x16xi1>, vector<8x16xf32>
    %c16 = arith.constant 16 : index
    %c0_42 = arith.constant 0 : index
    %128 = vector.load %arg14[%c16, %c0_42] : memref<64x48xf32, #tpu.memory_space<vmem>>, vector<8x48xf32>
    %c40 = arith.constant 40 : index
    %c0_43 = arith.constant 0 : index
    %129 = vector.load %arg14[%c40, %c0_43] : memref<64x48xf32, #tpu.memory_space<vmem>>, vector<8x48xf32>
    %130 = arith.select %34, %128, %129 : vector<8x48xi1>, vector<8x48xf32>
    %cst_44 = arith.constant dense<0.000000e+00> : vector<8x48xf32>
    %131 = tpu.matmul %127, %7, %cst_44 {dimension_numbers = #tpu.dot_dimension_numbers<[1], [0], [0], [1], [0, 0, 1, 1], [], []>} : vector<8x16xf32>, vector<16x48xf32>, vector<8x48xf32> -> vector<8x48xf32>
    %132 = vector.broadcast %8 : vector<1x48xf32> to vector<8x48xf32>
    %133 = arith.addf %131, %132 : vector<8x48xf32>
    %134 = vector.extract_strided_slice %130 {offsets = [0, 0], sizes = [8, 16], strides = [1, 1]} : vector<8x48xf32> to vector<8x16xf32>
    %135 = vector.extract_strided_slice %133 {offsets = [0, 0], sizes = [8, 16], strides = [1, 1]} : vector<8x48xf32> to vector<8x16xf32>
    %136 = arith.addf %134, %135 : vector<8x16xf32>
    %137 = arith.negf %136 : vector<8x16xf32>
    %138 = math.exp %137 : vector<8x16xf32>
    %cst_45 = arith.constant 1.000000e+00 : f32
    %139 = vector.broadcast %cst_45 : f32 to vector<8x16xf32>
    %140 = arith.addf %139, %138 : vector<8x16xf32>
    %141 = arith.divf %139, %140 : vector<8x16xf32>
    %142 = vector.extract_strided_slice %130 {offsets = [0, 16], sizes = [8, 16], strides = [1, 1]} : vector<8x48xf32> to vector<8x16xf32>
    %143 = vector.extract_strided_slice %133 {offsets = [0, 16], sizes = [8, 16], strides = [1, 1]} : vector<8x48xf32> to vector<8x16xf32>
    %144 = arith.addf %142, %143 : vector<8x16xf32>
    %145 = arith.negf %144 : vector<8x16xf32>
    %146 = math.exp %145 : vector<8x16xf32>
    %cst_46 = arith.constant 1.000000e+00 : f32
    %147 = vector.broadcast %cst_46 : f32 to vector<8x16xf32>
    %148 = arith.addf %147, %146 : vector<8x16xf32>
    %149 = arith.divf %147, %148 : vector<8x16xf32>
    %150 = vector.extract_strided_slice %130 {offsets = [0, 32], sizes = [8, 16], strides = [1, 1]} : vector<8x48xf32> to vector<8x16xf32>
    %151 = vector.extract_strided_slice %133 {offsets = [0, 32], sizes = [8, 16], strides = [1, 1]} : vector<8x48xf32> to vector<8x16xf32>
    %152 = arith.mulf %141, %151 : vector<8x16xf32>
    %153 = arith.addf %150, %152 : vector<8x16xf32>
    %154 = math.tanh %153 : vector<8x16xf32>
    %cst_47 = arith.constant 1.000000e+00 : f32
    %155 = vector.broadcast %cst_47 : f32 to vector<8x16xf32>
    %156 = arith.subf %155, %149 : vector<8x16xf32>
    %157 = arith.mulf %156, %154 : vector<8x16xf32>
    %158 = arith.mulf %149, %127 : vector<8x16xf32>
    %159 = arith.addf %157, %158 : vector<8x16xf32>
    %c2_i32 = arith.constant 2 : i32
    %160 = vector.broadcast %c2_i32 : i32 to vector<8x16xi32>
    %161 = arith.cmpi sgt, %11, %160 : vector<8x16xi32>
    %162 = arith.andi %14, %161 : vector<8x16xi1>
    %c5_i32 = arith.constant 5 : i32
    %163 = vector.broadcast %c5_i32 : i32 to vector<8x16xi32>
    %164 = arith.cmpi sgt, %11, %163 : vector<8x16xi32>
    %165 = arith.andi %15, %164 : vector<8x16xi1>
    %166 = arith.ori %162, %165 : vector<8x16xi1>
    %cst_48 = arith.constant 0.000000e+00 : f32
    %167 = vector.broadcast %cst_48 : f32 to vector<8x16xf32>
    %168 = arith.select %166, %159, %167 : vector<8x16xi1>, vector<8x16xf32>
    %169 = vector.extract_strided_slice %168 {offsets = [0, 0], sizes = [8, 8], strides = [1, 1]} : vector<8x16xf32> to vector<8x8xf32>
    %c0_49 = arith.constant 0 : index
    %c16_50 = arith.constant 16 : index
    %170 = vector.load %arg16[%c0_49, %c16_50] : memref<8x128xf32, #tpu.memory_space<vmem>>, vector<8x8xf32>
    tpu.vector_store %arg16[%c0_49, %c16_50], %169 {strides = array<i32>} : memref<8x128xf32, #tpu.memory_space<vmem>>, vector<8x8xf32>,
    %171 = vector.extract_strided_slice %168 {offsets = [0, 8], sizes = [8, 8], strides = [1, 1]} : vector<8x16xf32> to vector<8x8xf32>
    %c0_51 = arith.constant 0 : index
    %c104 = arith.constant 104 : index
    %172 = vector.load %arg16[%c0_51, %c104] : memref<8x128xf32, #tpu.memory_space<vmem>>, vector<8x8xf32>
    tpu.vector_store %arg16[%c0_51, %c104], %171 {strides = array<i32>} : memref<8x128xf32, #tpu.memory_space<vmem>>, vector<8x8xf32>,
    %173 = arith.select %166, %159, %127 : vector<8x16xi1>, vector<8x16xf32>
    %c24 = arith.constant 24 : index
    %c0_52 = arith.constant 0 : index
    %174 = vector.load %arg14[%c24, %c0_52] : memref<64x48xf32, #tpu.memory_space<vmem>>, vector<8x48xf32>
    %c32 = arith.constant 32 : index
    %c0_53 = arith.constant 0 : index
    %175 = vector.load %arg14[%c32, %c0_53] : memref<64x48xf32, #tpu.memory_space<vmem>>, vector<8x48xf32>
    %176 = arith.select %34, %174, %175 : vector<8x48xi1>, vector<8x48xf32>
    %cst_54 = arith.constant dense<0.000000e+00> : vector<8x48xf32>
    %177 = tpu.matmul %173, %7, %cst_54 {dimension_numbers = #tpu.dot_dimension_numbers<[1], [0], [0], [1], [0, 0, 1, 1], [], []>} : vector<8x16xf32>, vector<16x48xf32>, vector<8x48xf32> -> vector<8x48xf32>
    %178 = vector.broadcast %8 : vector<1x48xf32> to vector<8x48xf32>
    %179 = arith.addf %177, %178 : vector<8x48xf32>
    %180 = vector.extract_strided_slice %176 {offsets = [0, 0], sizes = [8, 16], strides = [1, 1]} : vector<8x48xf32> to vector<8x16xf32>
    %181 = vector.extract_strided_slice %179 {offsets = [0, 0], sizes = [8, 16], strides = [1, 1]} : vector<8x48xf32> to vector<8x16xf32>
    %182 = arith.addf %180, %181 : vector<8x16xf32>
    %183 = arith.negf %182 : vector<8x16xf32>
    %184 = math.exp %183 : vector<8x16xf32>
    %cst_55 = arith.constant 1.000000e+00 : f32
    %185 = vector.broadcast %cst_55 : f32 to vector<8x16xf32>
    %186 = arith.addf %185, %184 : vector<8x16xf32>
    %187 = arith.divf %185, %186 : vector<8x16xf32>
    %188 = vector.extract_strided_slice %176 {offsets = [0, 16], sizes = [8, 16], strides = [1, 1]} : vector<8x48xf32> to vector<8x16xf32>
    %189 = vector.extract_strided_slice %179 {offsets = [0, 16], sizes = [8, 16], strides = [1, 1]} : vector<8x48xf32> to vector<8x16xf32>
    %190 = arith.addf %188, %189 : vector<8x16xf32>
    %191 = arith.negf %190 : vector<8x16xf32>
    %192 = math.exp %191 : vector<8x16xf32>
    %cst_56 = arith.constant 1.000000e+00 : f32
    %193 = vector.broadcast %cst_56 : f32 to vector<8x16xf32>
    %194 = arith.addf %193, %192 : vector<8x16xf32>
    %195 = arith.divf %193, %194 : vector<8x16xf32>
    %196 = vector.extract_strided_slice %176 {offsets = [0, 32], sizes = [8, 16], strides = [1, 1]} : vector<8x48xf32> to vector<8x16xf32>
    %197 = vector.extract_strided_slice %179 {offsets = [0, 32], sizes = [8, 16], strides = [1, 1]} : vector<8x48xf32> to vector<8x16xf32>
    %198 = arith.mulf %187, %197 : vector<8x16xf32>
    %199 = arith.addf %196, %198 : vector<8x16xf32>
    %200 = math.tanh %199 : vector<8x16xf32>
    %cst_57 = arith.constant 1.000000e+00 : f32
    %201 = vector.broadcast %cst_57 : f32 to vector<8x16xf32>
    %202 = arith.subf %201, %195 : vector<8x16xf32>
    %203 = arith.mulf %202, %200 : vector<8x16xf32>
    %204 = arith.mulf %195, %173 : vector<8x16xf32>
    %205 = arith.addf %203, %204 : vector<8x16xf32>
    %c3_i32 = arith.constant 3 : i32
    %206 = vector.broadcast %c3_i32 : i32 to vector<8x16xi32>
    %207 = arith.cmpi sgt, %11, %206 : vector<8x16xi32>
    %208 = arith.andi %14, %207 : vector<8x16xi1>
    %c4_i32 = arith.constant 4 : i32
    %209 = vector.broadcast %c4_i32 : i32 to vector<8x16xi32>
    %210 = arith.cmpi sgt, %11, %209 : vector<8x16xi32>
    %211 = arith.andi %15, %210 : vector<8x16xi1>
    %212 = arith.ori %208, %211 : vector<8x16xi1>
    %cst_58 = arith.constant 0.000000e+00 : f32
    %213 = vector.broadcast %cst_58 : f32 to vector<8x16xf32>
    %214 = arith.select %212, %205, %213 : vector<8x16xi1>, vector<8x16xf32>
    %215 = vector.extract_strided_slice %214 {offsets = [0, 0], sizes = [8, 8], strides = [1, 1]} : vector<8x16xf32> to vector<8x8xf32>
    %c0_59 = arith.constant 0 : index
    %c24_60 = arith.constant 24 : index
    %216 = vector.load %arg16[%c0_59, %c24_60] : memref<8x128xf32, #tpu.memory_space<vmem>>, vector<8x8xf32>
    tpu.vector_store %arg16[%c0_59, %c24_60], %215 {strides = array<i32>} : memref<8x128xf32, #tpu.memory_space<vmem>>, vector<8x8xf32>,
    %217 = vector.extract_strided_slice %214 {offsets = [0, 8], sizes = [8, 8], strides = [1, 1]} : vector<8x16xf32> to vector<8x8xf32>
    %c0_61 = arith.constant 0 : index
    %c96 = arith.constant 96 : index
    %218 = vector.load %arg16[%c0_61, %c96] : memref<8x128xf32, #tpu.memory_space<vmem>>, vector<8x8xf32>
    tpu.vector_store %arg16[%c0_61, %c96], %217 {strides = array<i32>} : memref<8x128xf32, #tpu.memory_space<vmem>>, vector<8x8xf32>,
    %219 = arith.select %212, %205, %173 : vector<8x16xi1>, vector<8x16xf32>
    %c32_62 = arith.constant 32 : index
    %c0_63 = arith.constant 0 : index
    %220 = vector.load %arg14[%c32_62, %c0_63] : memref<64x48xf32, #tpu.memory_space<vmem>>, vector<8x48xf32>
    %c24_64 = arith.constant 24 : index
    %c0_65 = arith.constant 0 : index
    %221 = vector.load %arg14[%c24_64, %c0_65] : memref<64x48xf32, #tpu.memory_space<vmem>>, vector<8x48xf32>
    %222 = arith.select %34, %220, %221 : vector<8x48xi1>, vector<8x48xf32>
    %cst_66 = arith.constant dense<0.000000e+00> : vector<8x48xf32>
    %223 = tpu.matmul %219, %7, %cst_66 {dimension_numbers = #tpu.dot_dimension_numbers<[1], [0], [0], [1], [0, 0, 1, 1], [], []>} : vector<8x16xf32>, vector<16x48xf32>, vector<8x48xf32> -> vector<8x48xf32>
    %224 = vector.broadcast %8 : vector<1x48xf32> to vector<8x48xf32>
    %225 = arith.addf %223, %224 : vector<8x48xf32>
    %226 = vector.extract_strided_slice %222 {offsets = [0, 0], sizes = [8, 16], strides = [1, 1]} : vector<8x48xf32> to vector<8x16xf32>
    %227 = vector.extract_strided_slice %225 {offsets = [0, 0], sizes = [8, 16], strides = [1, 1]} : vector<8x48xf32> to vector<8x16xf32>
    %228 = arith.addf %226, %227 : vector<8x16xf32>
    %229 = arith.negf %228 : vector<8x16xf32>
    %230 = math.exp %229 : vector<8x16xf32>
    %cst_67 = arith.constant 1.000000e+00 : f32
    %231 = vector.broadcast %cst_67 : f32 to vector<8x16xf32>
    %232 = arith.addf %231, %230 : vector<8x16xf32>
    %233 = arith.divf %231, %232 : vector<8x16xf32>
    %234 = vector.extract_strided_slice %222 {offsets = [0, 16], sizes = [8, 16], strides = [1, 1]} : vector<8x48xf32> to vector<8x16xf32>
    %235 = vector.extract_strided_slice %225 {offsets = [0, 16], sizes = [8, 16], strides = [1, 1]} : vector<8x48xf32> to vector<8x16xf32>
    %236 = arith.addf %234, %235 : vector<8x16xf32>
    %237 = arith.negf %236 : vector<8x16xf32>
    %238 = math.exp %237 : vector<8x16xf32>
    %cst_68 = arith.constant 1.000000e+00 : f32
    %239 = vector.broadcast %cst_68 : f32 to vector<8x16xf32>
    %240 = arith.addf %239, %238 : vector<8x16xf32>
    %241 = arith.divf %239, %240 : vector<8x16xf32>
    %242 = vector.extract_strided_slice %222 {offsets = [0, 32], sizes = [8, 16], strides = [1, 1]} : vector<8x48xf32> to vector<8x16xf32>
    %243 = vector.extract_strided_slice %225 {offsets = [0, 32], sizes = [8, 16], strides = [1, 1]} : vector<8x48xf32> to vector<8x16xf32>
    %244 = arith.mulf %233, %243 : vector<8x16xf32>
    %245 = arith.addf %242, %244 : vector<8x16xf32>
    %246 = math.tanh %245 : vector<8x16xf32>
    %cst_69 = arith.constant 1.000000e+00 : f32
    %247 = vector.broadcast %cst_69 : f32 to vector<8x16xf32>
    %248 = arith.subf %247, %241 : vector<8x16xf32>
    %249 = arith.mulf %248, %246 : vector<8x16xf32>
    %250 = arith.mulf %241, %219 : vector<8x16xf32>
    %251 = arith.addf %249, %250 : vector<8x16xf32>
    %c4_i32_70 = arith.constant 4 : i32
    %252 = vector.broadcast %c4_i32_70 : i32 to vector<8x16xi32>
    %253 = arith.cmpi sgt, %11, %252 : vector<8x16xi32>
    %254 = arith.andi %14, %253 : vector<8x16xi1>
    %c3_i32_71 = arith.constant 3 : i32
    %255 = vector.broadcast %c3_i32_71 : i32 to vector<8x16xi32>
    %256 = arith.cmpi sgt, %11, %255 : vector<8x16xi32>
    %257 = arith.andi %15, %256 : vector<8x16xi1>
    %258 = arith.ori %254, %257 : vector<8x16xi1>
    %cst_72 = arith.constant 0.000000e+00 : f32
    %259 = vector.broadcast %cst_72 : f32 to vector<8x16xf32>
    %260 = arith.select %258, %251, %259 : vector<8x16xi1>, vector<8x16xf32>
    %261 = vector.extract_strided_slice %260 {offsets = [0, 0], sizes = [8, 8], strides = [1, 1]} : vector<8x16xf32> to vector<8x8xf32>
    %c0_73 = arith.constant 0 : index
    %c32_74 = arith.constant 32 : index
    %262 = vector.load %arg16[%c0_73, %c32_74] : memref<8x128xf32, #tpu.memory_space<vmem>>, vector<8x8xf32>
    tpu.vector_store %arg16[%c0_73, %c32_74], %261 {strides = array<i32>} : memref<8x128xf32, #tpu.memory_space<vmem>>, vector<8x8xf32>,
    %263 = vector.extract_strided_slice %260 {offsets = [0, 8], sizes = [8, 8], strides = [1, 1]} : vector<8x16xf32> to vector<8x8xf32>
    %c0_75 = arith.constant 0 : index
    %c88 = arith.constant 88 : index
    %264 = vector.load %arg16[%c0_75, %c88] : memref<8x128xf32, #tpu.memory_space<vmem>>, vector<8x8xf32>
    tpu.vector_store %arg16[%c0_75, %c88], %263 {strides = array<i32>} : memref<8x128xf32, #tpu.memory_space<vmem>>, vector<8x8xf32>,
    %265 = arith.select %258, %251, %219 : vector<8x16xi1>, vector<8x16xf32>
    %c40_76 = arith.constant 40 : index
    %c0_77 = arith.constant 0 : index
    %266 = vector.load %arg14[%c40_76, %c0_77] : memref<64x48xf32, #tpu.memory_space<vmem>>, vector<8x48xf32>
    %c16_78 = arith.constant 16 : index
    %c0_79 = arith.constant 0 : index
    %267 = vector.load %arg14[%c16_78, %c0_79] : memref<64x48xf32, #tpu.memory_space<vmem>>, vector<8x48xf32>
    %268 = arith.select %34, %266, %267 : vector<8x48xi1>, vector<8x48xf32>
    %cst_80 = arith.constant dense<0.000000e+00> : vector<8x48xf32>
    %269 = tpu.matmul %265, %7, %cst_80 {dimension_numbers = #tpu.dot_dimension_numbers<[1], [0], [0], [1], [0, 0, 1, 1], [], []>} : vector<8x16xf32>, vector<16x48xf32>, vector<8x48xf32> -> vector<8x48xf32>
    %270 = vector.broadcast %8 : vector<1x48xf32> to vector<8x48xf32>
    %271 = arith.addf %269, %270 : vector<8x48xf32>
    %272 = vector.extract_strided_slice %268 {offsets = [0, 0], sizes = [8, 16], strides = [1, 1]} : vector<8x48xf32> to vector<8x16xf32>
    %273 = vector.extract_strided_slice %271 {offsets = [0, 0], sizes = [8, 16], strides = [1, 1]} : vector<8x48xf32> to vector<8x16xf32>
    %274 = arith.addf %272, %273 : vector<8x16xf32>
    %275 = arith.negf %274 : vector<8x16xf32>
    %276 = math.exp %275 : vector<8x16xf32>
    %cst_81 = arith.constant 1.000000e+00 : f32
    %277 = vector.broadcast %cst_81 : f32 to vector<8x16xf32>
    %278 = arith.addf %277, %276 : vector<8x16xf32>
    %279 = arith.divf %277, %278 : vector<8x16xf32>
    %280 = vector.extract_strided_slice %268 {offsets = [0, 16], sizes = [8, 16], strides = [1, 1]} : vector<8x48xf32> to vector<8x16xf32>
    %281 = vector.extract_strided_slice %271 {offsets = [0, 16], sizes = [8, 16], strides = [1, 1]} : vector<8x48xf32> to vector<8x16xf32>
    %282 = arith.addf %280, %281 : vector<8x16xf32>
    %283 = arith.negf %282 : vector<8x16xf32>
    %284 = math.exp %283 : vector<8x16xf32>
    %cst_82 = arith.constant 1.000000e+00 : f32
    %285 = vector.broadcast %cst_82 : f32 to vector<8x16xf32>
    %286 = arith.addf %285, %284 : vector<8x16xf32>
    %287 = arith.divf %285, %286 : vector<8x16xf32>
    %288 = vector.extract_strided_slice %268 {offsets = [0, 32], sizes = [8, 16], strides = [1, 1]} : vector<8x48xf32> to vector<8x16xf32>
    %289 = vector.extract_strided_slice %271 {offsets = [0, 32], sizes = [8, 16], strides = [1, 1]} : vector<8x48xf32> to vector<8x16xf32>
    %290 = arith.mulf %279, %289 : vector<8x16xf32>
    %291 = arith.addf %288, %290 : vector<8x16xf32>
    %292 = math.tanh %291 : vector<8x16xf32>
    %cst_83 = arith.constant 1.000000e+00 : f32
    %293 = vector.broadcast %cst_83 : f32 to vector<8x16xf32>
    %294 = arith.subf %293, %287 : vector<8x16xf32>
    %295 = arith.mulf %294, %292 : vector<8x16xf32>
    %296 = arith.mulf %287, %265 : vector<8x16xf32>
    %297 = arith.addf %295, %296 : vector<8x16xf32>
    %c5_i32_84 = arith.constant 5 : i32
    %298 = vector.broadcast %c5_i32_84 : i32 to vector<8x16xi32>
    %299 = arith.cmpi sgt, %11, %298 : vector<8x16xi32>
    %300 = arith.andi %14, %299 : vector<8x16xi1>
    %c2_i32_85 = arith.constant 2 : i32
    %301 = vector.broadcast %c2_i32_85 : i32 to vector<8x16xi32>
    %302 = arith.cmpi sgt, %11, %301 : vector<8x16xi32>
    %303 = arith.andi %15, %302 : vector<8x16xi1>
    %304 = arith.ori %300, %303 : vector<8x16xi1>
    %cst_86 = arith.constant 0.000000e+00 : f32
    %305 = vector.broadcast %cst_86 : f32 to vector<8x16xf32>
    %306 = arith.select %304, %297, %305 : vector<8x16xi1>, vector<8x16xf32>
    %307 = vector.extract_strided_slice %306 {offsets = [0, 0], sizes = [8, 8], strides = [1, 1]} : vector<8x16xf32> to vector<8x8xf32>
    %c0_87 = arith.constant 0 : index
    %c40_88 = arith.constant 40 : index
    %308 = vector.load %arg16[%c0_87, %c40_88] : memref<8x128xf32, #tpu.memory_space<vmem>>, vector<8x8xf32>
    tpu.vector_store %arg16[%c0_87, %c40_88], %307 {strides = array<i32>} : memref<8x128xf32, #tpu.memory_space<vmem>>, vector<8x8xf32>,
    %309 = vector.extract_strided_slice %306 {offsets = [0, 8], sizes = [8, 8], strides = [1, 1]} : vector<8x16xf32> to vector<8x8xf32>
    %c0_89 = arith.constant 0 : index
    %c80 = arith.constant 80 : index
    %310 = vector.load %arg16[%c0_89, %c80] : memref<8x128xf32, #tpu.memory_space<vmem>>, vector<8x8xf32>
    tpu.vector_store %arg16[%c0_89, %c80], %309 {strides = array<i32>} : memref<8x128xf32, #tpu.memory_space<vmem>>, vector<8x8xf32>,
    %311 = arith.select %304, %297, %265 : vector<8x16xi1>, vector<8x16xf32>
    %c48_90 = arith.constant 48 : index
    %c0_91 = arith.constant 0 : index
    %312 = vector.load %arg14[%c48_90, %c0_91] : memref<64x48xf32, #tpu.memory_space<vmem>>, vector<8x48xf32>
    %c8_92 = arith.constant 8 : index
    %c0_93 = arith.constant 0 : index
    %313 = vector.load %arg14[%c8_92, %c0_93] : memref<64x48xf32, #tpu.memory_space<vmem>>, vector<8x48xf32>
    %314 = arith.select %34, %312, %313 : vector<8x48xi1>, vector<8x48xf32>
    %cst_94 = arith.constant dense<0.000000e+00> : vector<8x48xf32>
    %315 = tpu.matmul %311, %7, %cst_94 {dimension_numbers = #tpu.dot_dimension_numbers<[1], [0], [0], [1], [0, 0, 1, 1], [], []>} : vector<8x16xf32>, vector<16x48xf32>, vector<8x48xf32> -> vector<8x48xf32>
    %316 = vector.broadcast %8 : vector<1x48xf32> to vector<8x48xf32>
    %317 = arith.addf %315, %316 : vector<8x48xf32>
    %318 = vector.extract_strided_slice %314 {offsets = [0, 0], sizes = [8, 16], strides = [1, 1]} : vector<8x48xf32> to vector<8x16xf32>
    %319 = vector.extract_strided_slice %317 {offsets = [0, 0], sizes = [8, 16], strides = [1, 1]} : vector<8x48xf32> to vector<8x16xf32>
    %320 = arith.addf %318, %319 : vector<8x16xf32>
    %321 = arith.negf %320 : vector<8x16xf32>
    %322 = math.exp %321 : vector<8x16xf32>
    %cst_95 = arith.constant 1.000000e+00 : f32
    %323 = vector.broadcast %cst_95 : f32 to vector<8x16xf32>
    %324 = arith.addf %323, %322 : vector<8x16xf32>
    %325 = arith.divf %323, %324 : vector<8x16xf32>
    %326 = vector.extract_strided_slice %314 {offsets = [0, 16], sizes = [8, 16], strides = [1, 1]} : vector<8x48xf32> to vector<8x16xf32>
    %327 = vector.extract_strided_slice %317 {offsets = [0, 16], sizes = [8, 16], strides = [1, 1]} : vector<8x48xf32> to vector<8x16xf32>
    %328 = arith.addf %326, %327 : vector<8x16xf32>
    %329 = arith.negf %328 : vector<8x16xf32>
    %330 = math.exp %329 : vector<8x16xf32>
    %cst_96 = arith.constant 1.000000e+00 : f32
    %331 = vector.broadcast %cst_96 : f32 to vector<8x16xf32>
    %332 = arith.addf %331, %330 : vector<8x16xf32>
    %333 = arith.divf %331, %332 : vector<8x16xf32>
    %334 = vector.extract_strided_slice %314 {offsets = [0, 32], sizes = [8, 16], strides = [1, 1]} : vector<8x48xf32> to vector<8x16xf32>
    %335 = vector.extract_strided_slice %317 {offsets = [0, 32], sizes = [8, 16], strides = [1, 1]} : vector<8x48xf32> to vector<8x16xf32>
    %336 = arith.mulf %325, %335 : vector<8x16xf32>
    %337 = arith.addf %334, %336 : vector<8x16xf32>
    %338 = math.tanh %337 : vector<8x16xf32>
    %cst_97 = arith.constant 1.000000e+00 : f32
    %339 = vector.broadcast %cst_97 : f32 to vector<8x16xf32>
    %340 = arith.subf %339, %333 : vector<8x16xf32>
    %341 = arith.mulf %340, %338 : vector<8x16xf32>
    %342 = arith.mulf %333, %311 : vector<8x16xf32>
    %343 = arith.addf %341, %342 : vector<8x16xf32>
    %c6_i32_98 = arith.constant 6 : i32
    %344 = vector.broadcast %c6_i32_98 : i32 to vector<8x16xi32>
    %345 = arith.cmpi sgt, %11, %344 : vector<8x16xi32>
    %346 = arith.andi %14, %345 : vector<8x16xi1>
    %c1_i32_99 = arith.constant 1 : i32
    %347 = vector.broadcast %c1_i32_99 : i32 to vector<8x16xi32>
    %348 = arith.cmpi sgt, %11, %347 : vector<8x16xi32>
    %349 = arith.andi %15, %348 : vector<8x16xi1>
    %350 = arith.ori %346, %349 : vector<8x16xi1>
    %cst_100 = arith.constant 0.000000e+00 : f32
    %351 = vector.broadcast %cst_100 : f32 to vector<8x16xf32>
    %352 = arith.select %350, %343, %351 : vector<8x16xi1>, vector<8x16xf32>
    %353 = vector.extract_strided_slice %352 {offsets = [0, 0], sizes = [8, 8], strides = [1, 1]} : vector<8x16xf32> to vector<8x8xf32>
    %c0_101 = arith.constant 0 : index
    %c48_102 = arith.constant 48 : index
    %354 = vector.load %arg16[%c0_101, %c48_102] : memref<8x128xf32, #tpu.memory_space<vmem>>, vector<8x8xf32>
    tpu.vector_store %arg16[%c0_101, %c48_102], %353 {strides = array<i32>} : memref<8x128xf32, #tpu.memory_space<vmem>>, vector<8x8xf32>,
    %355 = vector.extract_strided_slice %352 {offsets = [0, 8], sizes = [8, 8], strides = [1, 1]} : vector<8x16xf32> to vector<8x8xf32>
    %c0_103 = arith.constant 0 : index
    %c72 = arith.constant 72 : index
    %356 = vector.load %arg16[%c0_103, %c72] : memref<8x128xf32, #tpu.memory_space<vmem>>, vector<8x8xf32>
    tpu.vector_store %arg16[%c0_103, %c72], %355 {strides = array<i32>} : memref<8x128xf32, #tpu.memory_space<vmem>>, vector<8x8xf32>,
    %357 = arith.select %350, %343, %311 : vector<8x16xi1>, vector<8x16xf32>
    %c56_104 = arith.constant 56 : index
    %c0_105 = arith.constant 0 : index
    %358 = vector.load %arg14[%c56_104, %c0_105] : memref<64x48xf32, #tpu.memory_space<vmem>>, vector<8x48xf32>
    %c0_106 = arith.constant 0 : index
    %c0_107 = arith.constant 0 : index
    %359 = vector.load %arg14[%c0_106, %c0_107] : memref<64x48xf32, #tpu.memory_space<vmem>>, vector<8x48xf32>
    %360 = arith.select %34, %358, %359 : vector<8x48xi1>, vector<8x48xf32>
    %cst_108 = arith.constant dense<0.000000e+00> : vector<8x48xf32>
    %361 = tpu.matmul %357, %7, %cst_108 {dimension_numbers = #tpu.dot_dimension_numbers<[1], [0], [0], [1], [0, 0, 1, 1], [], []>} : vector<8x16xf32>, vector<16x48xf32>, vector<8x48xf32> -> vector<8x48xf32>
    %362 = vector.broadcast %8 : vector<1x48xf32> to vector<8x48xf32>
    %363 = arith.addf %361, %362 : vector<8x48xf32>
    %364 = vector.extract_strided_slice %360 {offsets = [0, 0], sizes = [8, 16], strides = [1, 1]} : vector<8x48xf32> to vector<8x16xf32>
    %365 = vector.extract_strided_slice %363 {offsets = [0, 0], sizes = [8, 16], strides = [1, 1]} : vector<8x48xf32> to vector<8x16xf32>
    %366 = arith.addf %364, %365 : vector<8x16xf32>
    %367 = arith.negf %366 : vector<8x16xf32>
    %368 = math.exp %367 : vector<8x16xf32>
    %cst_109 = arith.constant 1.000000e+00 : f32
    %369 = vector.broadcast %cst_109 : f32 to vector<8x16xf32>
    %370 = arith.addf %369, %368 : vector<8x16xf32>
    %371 = arith.divf %369, %370 : vector<8x16xf32>
    %372 = vector.extract_strided_slice %360 {offsets = [0, 16], sizes = [8, 16], strides = [1, 1]} : vector<8x48xf32> to vector<8x16xf32>
    %373 = vector.extract_strided_slice %363 {offsets = [0, 16], sizes = [8, 16], strides = [1, 1]} : vector<8x48xf32> to vector<8x16xf32>
    %374 = arith.addf %372, %373 : vector<8x16xf32>
    %375 = arith.negf %374 : vector<8x16xf32>
    %376 = math.exp %375 : vector<8x16xf32>
    %cst_110 = arith.constant 1.000000e+00 : f32
    %377 = vector.broadcast %cst_110 : f32 to vector<8x16xf32>
    %378 = arith.addf %377, %376 : vector<8x16xf32>
    %379 = arith.divf %377, %378 : vector<8x16xf32>
    %380 = vector.extract_strided_slice %360 {offsets = [0, 32], sizes = [8, 16], strides = [1, 1]} : vector<8x48xf32> to vector<8x16xf32>
    %381 = vector.extract_strided_slice %363 {offsets = [0, 32], sizes = [8, 16], strides = [1, 1]} : vector<8x48xf32> to vector<8x16xf32>
    %382 = arith.mulf %371, %381 : vector<8x16xf32>
    %383 = arith.addf %380, %382 : vector<8x16xf32>
    %384 = math.tanh %383 : vector<8x16xf32>
    %cst_111 = arith.constant 1.000000e+00 : f32
    %385 = vector.broadcast %cst_111 : f32 to vector<8x16xf32>
    %386 = arith.subf %385, %379 : vector<8x16xf32>
    %387 = arith.mulf %386, %384 : vector<8x16xf32>
    %388 = arith.mulf %379, %357 : vector<8x16xf32>
    %389 = arith.addf %387, %388 : vector<8x16xf32>
    %c7_i32_112 = arith.constant 7 : i32
    %390 = vector.broadcast %c7_i32_112 : i32 to vector<8x16xi32>
    %391 = arith.cmpi sgt, %11, %390 : vector<8x16xi32>
    %392 = arith.andi %14, %391 : vector<8x16xi1>
    %c0_i32_113 = arith.constant 0 : i32
    %393 = vector.broadcast %c0_i32_113 : i32 to vector<8x16xi32>
    %394 = arith.cmpi sgt, %11, %393 : vector<8x16xi32>
    %395 = arith.andi %15, %394 : vector<8x16xi1>
    %396 = arith.ori %392, %395 : vector<8x16xi1>
    %cst_114 = arith.constant 0.000000e+00 : f32
    %397 = vector.broadcast %cst_114 : f32 to vector<8x16xf32>
    %398 = arith.select %396, %389, %397 : vector<8x16xi1>, vector<8x16xf32>
    %399 = vector.extract_strided_slice %398 {offsets = [0, 0], sizes = [8, 8], strides = [1, 1]} : vector<8x16xf32> to vector<8x8xf32>
    %c0_115 = arith.constant 0 : index
    %c56_116 = arith.constant 56 : index
    %400 = vector.load %arg16[%c0_115, %c56_116] : memref<8x128xf32, #tpu.memory_space<vmem>>, vector<8x8xf32>
    tpu.vector_store %arg16[%c0_115, %c56_116], %399 {strides = array<i32>} : memref<8x128xf32, #tpu.memory_space<vmem>>, vector<8x8xf32>,
    %401 = vector.extract_strided_slice %398 {offsets = [0, 8], sizes = [8, 8], strides = [1, 1]} : vector<8x16xf32> to vector<8x8xf32>
    %c0_117 = arith.constant 0 : index
    %c64 = arith.constant 64 : index
    %402 = vector.load %arg16[%c0_117, %c64] : memref<8x128xf32, #tpu.memory_space<vmem>>, vector<8x8xf32>
    tpu.vector_store %arg16[%c0_117, %c64], %401 {strides = array<i32>} : memref<8x128xf32, #tpu.memory_space<vmem>>, vector<8x8xf32>,
    %c0_118 = arith.constant 0 : index
    %c0_119 = arith.constant 0 : index
    %403 = vector.load %arg16[%c0_118, %c0_119] : memref<8x128xf32, #tpu.memory_space<vmem>>, vector<8x128xf32>
    %c0_120 = arith.constant 0 : index
    %c0_121 = arith.constant 0 : index
    %404 = vector.load %arg7[%c0_120, %c0_121] : memref<128x96xf32, #tpu.memory_space<vmem>>, vector<128x96xf32>
    %cst_122 = arith.constant dense<0.000000e+00> : vector<8x96xf32>
    %405 = tpu.matmul %403, %404, %cst_122 {dimension_numbers = #tpu.dot_dimension_numbers<[1], [0], [0], [1], [0, 0, 1, 1], [], []>} : vector<8x128xf32>, vector<128x96xf32>, vector<8x96xf32> -> vector<8x96xf32>
    %c0_123 = arith.constant 0 : index
    %c0_124 = arith.constant 0 : index
    %406 = vector.load %arg8[%c0_123, %c0_124] : memref<1x96xf32, #tpu.memory_space<vmem>>, vector<1x96xf32>
    %407 = vector.broadcast %406 : vector<1x96xf32> to vector<8x96xf32>
    %408 = arith.addf %405, %407 : vector<8x96xf32>
    %c0_125 = arith.constant 0 : index
    %c0_126 = arith.constant 0 : index
    %409 = vector.load %arg15[%c0_125, %c0_126] : memref<8x96xf32, #tpu.memory_space<vmem>>, vector<8x96xf32>
    tpu.vector_store %arg15[%c0_125, %c0_126], %408 {strides = array<i32>} : memref<8x96xf32, #tpu.memory_space<vmem>>, vector<8x96xf32>,
    %c0_127 = arith.constant 0 : index
    %c0_128 = arith.constant 0 : index
    %410 = vector.load %arg9[%c0_127, %c0_128] : memref<32x96xf32, #tpu.memory_space<vmem>>, vector<32x96xf32>
    %c0_129 = arith.constant 0 : index
    %c0_130 = arith.constant 0 : index
    %411 = vector.load %arg10[%c0_129, %c0_130] : memref<1x96xf32, #tpu.memory_space<vmem>>, vector<1x96xf32>
    %412 = tpu.iota {dimensions = array<i32: 1>} : vector<2x96xi32>
    %c32_i32 = arith.constant 32 : i32
    %c0_i32_131 = arith.constant 0 : i32
    %413 = arith.cmpi eq, %c32_i32, %c0_i32_131 : i32
    %c1_i32_132 = arith.constant 1 : i32
    %414 = arith.select %413, %c1_i32_132, %c32_i32 : i32
    %415 = vector.broadcast %414 : i32 to vector<2x96xi32>
    %416 = arith.remsi %412, %415 : vector<2x96xi32>
    %c0_i32_133 = arith.constant 0 : i32
    %417 = vector.broadcast %c0_i32_133 : i32 to vector<2x96xi32>
    %418 = arith.cmpi ne, %416, %417 : vector<2x96xi32>
    %c0_i32_134 = arith.constant 0 : i32
    %419 = vector.broadcast %c0_i32_134 : i32 to vector<2x96xi32>
    %420 = arith.cmpi slt, %416, %419 : vector<2x96xi32>
    %c0_i32_135 = arith.constant 0 : i32
    %421 = arith.cmpi slt, %414, %c0_i32_135 : i32
    %422 = vector.broadcast %421 : i1 to vector<2x96xi1>
    %423 = vector.broadcast %422 : vector<2x96xi1> to vector<2x96xi1>
    %424 = arith.xori %420, %423 : vector<2x96xi1>
    %425 = arith.andi %424, %418 : vector<2x96xi1>
    %426 = vector.broadcast %414 : i32 to vector<2x96xi32>
    %427 = arith.addi %416, %426 : vector<2x96xi32>
    %428 = arith.select %425, %427, %416 : vector<2x96xi1>, vector<2x96xi32>
    %c16_i32_136 = arith.constant 16 : i32
    %429 = vector.broadcast %c16_i32_136 : i32 to vector<2x96xi32>
    %430 = arith.cmpi slt, %428, %429 : vector<2x96xi32>
    %cst_137 = arith.constant 0.000000e+00 : f32
    %431 = vector.broadcast %cst_137 : f32 to vector<2x32xf32>
    %c0_138 = arith.constant 0 : index
    %c0_139 = arith.constant 0 : index
    %432 = vector.load %arg15[%c0_138, %c0_139] : memref<8x96xf32, #tpu.memory_space<vmem>>, vector<2x96xf32>
    %c6 = arith.constant 6 : index
    %c0_140 = arith.constant 0 : index
    %433 = vector.load %arg15[%c6, %c0_140] : memref<8x96xf32, #tpu.memory_space<vmem>>, vector<2x96xf32>
    %434 = arith.select %430, %432, %433 : vector<2x96xi1>, vector<2x96xf32>
    %cst_141 = arith.constant dense<0.000000e+00> : vector<2x96xf32>
    %435 = tpu.matmul %431, %410, %cst_141 {dimension_numbers = #tpu.dot_dimension_numbers<[1], [0], [0], [1], [0, 0, 1, 1], [], []>} : vector<2x32xf32>, vector<32x96xf32>, vector<2x96xf32> -> vector<2x96xf32>
    %436 = vector.broadcast %411 : vector<1x96xf32> to vector<2x96xf32>
    %437 = arith.addf %435, %436 : vector<2x96xf32>
    %438 = vector.extract_strided_slice %434 {offsets = [0, 0], sizes = [2, 32], strides = [1, 1]} : vector<2x96xf32> to vector<2x32xf32>
    %439 = vector.extract_strided_slice %437 {offsets = [0, 0], sizes = [2, 32], strides = [1, 1]} : vector<2x96xf32> to vector<2x32xf32>
    %440 = arith.addf %438, %439 : vector<2x32xf32>
    %441 = arith.negf %440 : vector<2x32xf32>
    %442 = math.exp %441 : vector<2x32xf32>
    %cst_142 = arith.constant 1.000000e+00 : f32
    %443 = vector.broadcast %cst_142 : f32 to vector<2x32xf32>
    %444 = arith.addf %443, %442 : vector<2x32xf32>
    %445 = arith.divf %443, %444 : vector<2x32xf32>
    %446 = vector.extract_strided_slice %434 {offsets = [0, 32], sizes = [2, 32], strides = [1, 1]} : vector<2x96xf32> to vector<2x32xf32>
    %447 = vector.extract_strided_slice %437 {offsets = [0, 32], sizes = [2, 32], strides = [1, 1]} : vector<2x96xf32> to vector<2x32xf32>
    %448 = arith.addf %446, %447 : vector<2x32xf32>
    %449 = arith.negf %448 : vector<2x32xf32>
    %450 = math.exp %449 : vector<2x32xf32>
    %cst_143 = arith.constant 1.000000e+00 : f32
    %451 = vector.broadcast %cst_143 : f32 to vector<2x32xf32>
    %452 = arith.addf %451, %450 : vector<2x32xf32>
    %453 = arith.divf %451, %452 : vector<2x32xf32>
    %454 = vector.extract_strided_slice %434 {offsets = [0, 64], sizes = [2, 32], strides = [1, 1]} : vector<2x96xf32> to vector<2x32xf32>
    %455 = vector.extract_strided_slice %437 {offsets = [0, 64], sizes = [2, 32], strides = [1, 1]} : vector<2x96xf32> to vector<2x32xf32>
    %456 = arith.mulf %445, %455 : vector<2x32xf32>
    %457 = arith.addf %454, %456 : vector<2x32xf32>
    %458 = math.tanh %457 : vector<2x32xf32>
    %cst_144 = arith.constant 1.000000e+00 : f32
    %459 = vector.broadcast %cst_144 : f32 to vector<2x32xf32>
    %460 = arith.subf %459, %453 : vector<2x32xf32>
    %461 = arith.mulf %460, %458 : vector<2x32xf32>
    %462 = arith.mulf %453, %431 : vector<2x32xf32>
    %463 = arith.addf %461, %462 : vector<2x32xf32>
    %464 = vector.extract_strided_slice %463 {offsets = [0, 0], sizes = [2, 16], strides = [1, 1]} : vector<2x32xf32> to vector<2x16xf32>
    %c0_145 = arith.constant 0 : index
    %c0_146 = arith.constant 0 : index
    %465 = vector.load %arg17[%c0_145, %c0_146] : memref<8x32xf32, #tpu.memory_space<vmem>>, vector<2x16xf32>
    tpu.vector_store %arg17[%c0_145, %c0_146], %464 {strides = array<i32>} : memref<8x32xf32, #tpu.memory_space<vmem>>, vector<2x16xf32>,
    %466 = vector.extract_strided_slice %463 {offsets = [0, 16], sizes = [2, 16], strides = [1, 1]} : vector<2x32xf32> to vector<2x16xf32>
    %c6_147 = arith.constant 6 : index
    %c16_148 = arith.constant 16 : index
    %467 = vector.load %arg17[%c6_147, %c16_148] : memref<8x32xf32, #tpu.memory_space<vmem>>, vector<2x16xf32>
    tpu.vector_store %arg17[%c6_147, %c16_148], %466 {strides = array<i32>} : memref<8x32xf32, #tpu.memory_space<vmem>>, vector<2x16xf32>,
    %c2 = arith.constant 2 : index
    %c0_149 = arith.constant 0 : index
    %468 = vector.load %arg15[%c2, %c0_149] : memref<8x96xf32, #tpu.memory_space<vmem>>, vector<2x96xf32>
    %c4 = arith.constant 4 : index
    %c0_150 = arith.constant 0 : index
    %469 = vector.load %arg15[%c4, %c0_150] : memref<8x96xf32, #tpu.memory_space<vmem>>, vector<2x96xf32>
    %470 = arith.select %430, %468, %469 : vector<2x96xi1>, vector<2x96xf32>
    %cst_151 = arith.constant dense<0.000000e+00> : vector<2x96xf32>
    %471 = tpu.matmul %463, %410, %cst_151 {dimension_numbers = #tpu.dot_dimension_numbers<[1], [0], [0], [1], [0, 0, 1, 1], [], []>} : vector<2x32xf32>, vector<32x96xf32>, vector<2x96xf32> -> vector<2x96xf32>
    %472 = vector.broadcast %411 : vector<1x96xf32> to vector<2x96xf32>
    %473 = arith.addf %471, %472 : vector<2x96xf32>
    %474 = vector.extract_strided_slice %470 {offsets = [0, 0], sizes = [2, 32], strides = [1, 1]} : vector<2x96xf32> to vector<2x32xf32>
    %475 = vector.extract_strided_slice %473 {offsets = [0, 0], sizes = [2, 32], strides = [1, 1]} : vector<2x96xf32> to vector<2x32xf32>
    %476 = arith.addf %474, %475 : vector<2x32xf32>
    %477 = arith.negf %476 : vector<2x32xf32>
    %478 = math.exp %477 : vector<2x32xf32>
    %cst_152 = arith.constant 1.000000e+00 : f32
    %479 = vector.broadcast %cst_152 : f32 to vector<2x32xf32>
    %480 = arith.addf %479, %478 : vector<2x32xf32>
    %481 = arith.divf %479, %480 : vector<2x32xf32>
    %482 = vector.extract_strided_slice %470 {offsets = [0, 32], sizes = [2, 32], strides = [1, 1]} : vector<2x96xf32> to vector<2x32xf32>
    %483 = vector.extract_strided_slice %473 {offsets = [0, 32], sizes = [2, 32], strides = [1, 1]} : vector<2x96xf32> to vector<2x32xf32>
    %484 = arith.addf %482, %483 : vector<2x32xf32>
    %485 = arith.negf %484 : vector<2x32xf32>
    %486 = math.exp %485 : vector<2x32xf32>
    %cst_153 = arith.constant 1.000000e+00 : f32
    %487 = vector.broadcast %cst_153 : f32 to vector<2x32xf32>
    %488 = arith.addf %487, %486 : vector<2x32xf32>
    %489 = arith.divf %487, %488 : vector<2x32xf32>
    %490 = vector.extract_strided_slice %470 {offsets = [0, 64], sizes = [2, 32], strides = [1, 1]} : vector<2x96xf32> to vector<2x32xf32>
    %491 = vector.extract_strided_slice %473 {offsets = [0, 64], sizes = [2, 32], strides = [1, 1]} : vector<2x96xf32> to vector<2x32xf32>
    %492 = arith.mulf %481, %491 : vector<2x32xf32>
    %493 = arith.addf %490, %492 : vector<2x32xf32>
    %494 = math.tanh %493 : vector<2x32xf32>
    %cst_154 = arith.constant 1.000000e+00 : f32
    %495 = vector.broadcast %cst_154 : f32 to vector<2x32xf32>
    %496 = arith.subf %495, %489 : vector<2x32xf32>
    %497 = arith.mulf %496, %494 : vector<2x32xf32>
    %498 = arith.mulf %489, %463 : vector<2x32xf32>
    %499 = arith.addf %497, %498 : vector<2x32xf32>
    %500 = vector.extract_strided_slice %499 {offsets = [0, 0], sizes = [2, 16], strides = [1, 1]} : vector<2x32xf32> to vector<2x16xf32>
    %c2_155 = arith.constant 2 : index
    %c0_156 = arith.constant 0 : index
    %501 = vector.load %arg17[%c2_155, %c0_156] : memref<8x32xf32, #tpu.memory_space<vmem>>, vector<2x16xf32>
    tpu.vector_store %arg17[%c2_155, %c0_156], %500 {strides = array<i32>} : memref<8x32xf32, #tpu.memory_space<vmem>>, vector<2x16xf32>,
    %502 = vector.extract_strided_slice %499 {offsets = [0, 16], sizes = [2, 16], strides = [1, 1]} : vector<2x32xf32> to vector<2x16xf32>
    %c4_157 = arith.constant 4 : index
    %c16_158 = arith.constant 16 : index
    %503 = vector.load %arg17[%c4_157, %c16_158] : memref<8x32xf32, #tpu.memory_space<vmem>>, vector<2x16xf32>
    tpu.vector_store %arg17[%c4_157, %c16_158], %502 {strides = array<i32>} : memref<8x32xf32, #tpu.memory_space<vmem>>, vector<2x16xf32>,
    %c4_159 = arith.constant 4 : index
    %c0_160 = arith.constant 0 : index
    %504 = vector.load %arg15[%c4_159, %c0_160] : memref<8x96xf32, #tpu.memory_space<vmem>>, vector<2x96xf32>
    %c2_161 = arith.constant 2 : index
    %c0_162 = arith.constant 0 : index
    %505 = vector.load %arg15[%c2_161, %c0_162] : memref<8x96xf32, #tpu.memory_space<vmem>>, vector<2x96xf32>
    %506 = arith.select %430, %504, %505 : vector<2x96xi1>, vector<2x96xf32>
    %cst_163 = arith.constant dense<0.000000e+00> : vector<2x96xf32>
    %507 = tpu.matmul %499, %410, %cst_163 {dimension_numbers = #tpu.dot_dimension_numbers<[1], [0], [0], [1], [0, 0, 1, 1], [], []>} : vector<2x32xf32>, vector<32x96xf32>, vector<2x96xf32> -> vector<2x96xf32>
    %508 = vector.broadcast %411 : vector<1x96xf32> to vector<2x96xf32>
    %509 = arith.addf %507, %508 : vector<2x96xf32>
    %510 = vector.extract_strided_slice %506 {offsets = [0, 0], sizes = [2, 32], strides = [1, 1]} : vector<2x96xf32> to vector<2x32xf32>
    %511 = vector.extract_strided_slice %509 {offsets = [0, 0], sizes = [2, 32], strides = [1, 1]} : vector<2x96xf32> to vector<2x32xf32>
    %512 = arith.addf %510, %511 : vector<2x32xf32>
    %513 = arith.negf %512 : vector<2x32xf32>
    %514 = math.exp %513 : vector<2x32xf32>
    %cst_164 = arith.constant 1.000000e+00 : f32
    %515 = vector.broadcast %cst_164 : f32 to vector<2x32xf32>
    %516 = arith.addf %515, %514 : vector<2x32xf32>
    %517 = arith.divf %515, %516 : vector<2x32xf32>
    %518 = vector.extract_strided_slice %506 {offsets = [0, 32], sizes = [2, 32], strides = [1, 1]} : vector<2x96xf32> to vector<2x32xf32>
    %519 = vector.extract_strided_slice %509 {offsets = [0, 32], sizes = [2, 32], strides = [1, 1]} : vector<2x96xf32> to vector<2x32xf32>
    %520 = arith.addf %518, %519 : vector<2x32xf32>
    %521 = arith.negf %520 : vector<2x32xf32>
    %522 = math.exp %521 : vector<2x32xf32>
    %cst_165 = arith.constant 1.000000e+00 : f32
    %523 = vector.broadcast %cst_165 : f32 to vector<2x32xf32>
    %524 = arith.addf %523, %522 : vector<2x32xf32>
    %525 = arith.divf %523, %524 : vector<2x32xf32>
    %526 = vector.extract_strided_slice %506 {offsets = [0, 64], sizes = [2, 32], strides = [1, 1]} : vector<2x96xf32> to vector<2x32xf32>
    %527 = vector.extract_strided_slice %509 {offsets = [0, 64], sizes = [2, 32], strides = [1, 1]} : vector<2x96xf32> to vector<2x32xf32>
    %528 = arith.mulf %517, %527 : vector<2x32xf32>
    %529 = arith.addf %526, %528 : vector<2x32xf32>
    %530 = math.tanh %529 : vector<2x32xf32>
    %cst_166 = arith.constant 1.000000e+00 : f32
    %531 = vector.broadcast %cst_166 : f32 to vector<2x32xf32>
    %532 = arith.subf %531, %525 : vector<2x32xf32>
    %533 = arith.mulf %532, %530 : vector<2x32xf32>
    %534 = arith.mulf %525, %499 : vector<2x32xf32>
    %535 = arith.addf %533, %534 : vector<2x32xf32>
    %536 = vector.extract_strided_slice %535 {offsets = [0, 0], sizes = [2, 16], strides = [1, 1]} : vector<2x32xf32> to vector<2x16xf32>
    %c4_167 = arith.constant 4 : index
    %c0_168 = arith.constant 0 : index
    %537 = vector.load %arg17[%c4_167, %c0_168] : memref<8x32xf32, #tpu.memory_space<vmem>>, vector<2x16xf32>
    tpu.vector_store %arg17[%c4_167, %c0_168], %536 {strides = array<i32>} : memref<8x32xf32, #tpu.memory_space<vmem>>, vector<2x16xf32>,
    %538 = vector.extract_strided_slice %535 {offsets = [0, 16], sizes = [2, 16], strides = [1, 1]} : vector<2x32xf32> to vector<2x16xf32>
    %c2_169 = arith.constant 2 : index
    %c16_170 = arith.constant 16 : index
    %539 = vector.load %arg17[%c2_169, %c16_170] : memref<8x32xf32, #tpu.memory_space<vmem>>, vector<2x16xf32>
    tpu.vector_store %arg17[%c2_169, %c16_170], %538 {strides = array<i32>} : memref<8x32xf32, #tpu.memory_space<vmem>>, vector<2x16xf32>,
    %c6_171 = arith.constant 6 : index
    %c0_172 = arith.constant 0 : index
    %540 = vector.load %arg15[%c6_171, %c0_172] : memref<8x96xf32, #tpu.memory_space<vmem>>, vector<2x96xf32>
    %c0_173 = arith.constant 0 : index
    %c0_174 = arith.constant 0 : index
    %541 = vector.load %arg15[%c0_173, %c0_174] : memref<8x96xf32, #tpu.memory_space<vmem>>, vector<2x96xf32>
    %542 = arith.select %430, %540, %541 : vector<2x96xi1>, vector<2x96xf32>
    %cst_175 = arith.constant dense<0.000000e+00> : vector<2x96xf32>
    %543 = tpu.matmul %535, %410, %cst_175 {dimension_numbers = #tpu.dot_dimension_numbers<[1], [0], [0], [1], [0, 0, 1, 1], [], []>} : vector<2x32xf32>, vector<32x96xf32>, vector<2x96xf32> -> vector<2x96xf32>
    %544 = vector.broadcast %411 : vector<1x96xf32> to vector<2x96xf32>
    %545 = arith.addf %543, %544 : vector<2x96xf32>
    %546 = vector.extract_strided_slice %542 {offsets = [0, 0], sizes = [2, 32], strides = [1, 1]} : vector<2x96xf32> to vector<2x32xf32>
    %547 = vector.extract_strided_slice %545 {offsets = [0, 0], sizes = [2, 32], strides = [1, 1]} : vector<2x96xf32> to vector<2x32xf32>
    %548 = arith.addf %546, %547 : vector<2x32xf32>
    %549 = arith.negf %548 : vector<2x32xf32>
    %550 = math.exp %549 : vector<2x32xf32>
    %cst_176 = arith.constant 1.000000e+00 : f32
    %551 = vector.broadcast %cst_176 : f32 to vector<2x32xf32>
    %552 = arith.addf %551, %550 : vector<2x32xf32>
    %553 = arith.divf %551, %552 : vector<2x32xf32>
    %554 = vector.extract_strided_slice %542 {offsets = [0, 32], sizes = [2, 32], strides = [1, 1]} : vector<2x96xf32> to vector<2x32xf32>
    %555 = vector.extract_strided_slice %545 {offsets = [0, 32], sizes = [2, 32], strides = [1, 1]} : vector<2x96xf32> to vector<2x32xf32>
    %556 = arith.addf %554, %555 : vector<2x32xf32>
    %557 = arith.negf %556 : vector<2x32xf32>
    %558 = math.exp %557 : vector<2x32xf32>
    %cst_177 = arith.constant 1.000000e+00 : f32
    %559 = vector.broadcast %cst_177 : f32 to vector<2x32xf32>
    %560 = arith.addf %559, %558 : vector<2x32xf32>
    %561 = arith.divf %559, %560 : vector<2x32xf32>
    %562 = vector.extract_strided_slice %542 {offsets = [0, 64], sizes = [2, 32], strides = [1, 1]} : vector<2x96xf32> to vector<2x32xf32>
    %563 = vector.extract_strided_slice %545 {offsets = [0, 64], sizes = [2, 32], strides = [1, 1]} : vector<2x96xf32> to vector<2x32xf32>
    %564 = arith.mulf %553, %563 : vector<2x32xf32>
    %565 = arith.addf %562, %564 : vector<2x32xf32>
    %566 = math.tanh %565 : vector<2x32xf32>
    %cst_178 = arith.constant 1.000000e+00 : f32
    %567 = vector.broadcast %cst_178 : f32 to vector<2x32xf32>
    %568 = arith.subf %567, %561 : vector<2x32xf32>
    %569 = arith.mulf %568, %566 : vector<2x32xf32>
    %570 = arith.mulf %561, %535 : vector<2x32xf32>
    %571 = arith.addf %569, %570 : vector<2x32xf32>
    %572 = vector.extract_strided_slice %571 {offsets = [0, 0], sizes = [2, 16], strides = [1, 1]} : vector<2x32xf32> to vector<2x16xf32>
    %c6_179 = arith.constant 6 : index
    %c0_180 = arith.constant 0 : index
    %573 = vector.load %arg17[%c6_179, %c0_180] : memref<8x32xf32, #tpu.memory_space<vmem>>, vector<2x16xf32>
    tpu.vector_store %arg17[%c6_179, %c0_180], %572 {strides = array<i32>} : memref<8x32xf32, #tpu.memory_space<vmem>>, vector<2x16xf32>,
    %574 = vector.extract_strided_slice %571 {offsets = [0, 16], sizes = [2, 16], strides = [1, 1]} : vector<2x32xf32> to vector<2x16xf32>
    %c0_181 = arith.constant 0 : index
    %c16_182 = arith.constant 16 : index
    %575 = vector.load %arg17[%c0_181, %c16_182] : memref<8x32xf32, #tpu.memory_space<vmem>>, vector<2x16xf32>
    tpu.vector_store %arg17[%c0_181, %c16_182], %574 {strides = array<i32>} : memref<8x32xf32, #tpu.memory_space<vmem>>, vector<2x16xf32>,
    %c0_183 = arith.constant 0 : index
    %c0_184 = arith.constant 0 : index
    %576 = vector.load %arg17[%c0_183, %c0_184] : memref<8x32xf32, #tpu.memory_space<vmem>>, vector<8x32xf32>
    %c0_185 = arith.constant 0 : index
    %c0_186 = arith.constant 0 : index
    %577 = vector.load %arg11[%c0_185, %c0_186] : memref<1x32xf32, #tpu.memory_space<vmem>>, vector<1x32xf32>
    %578 = vector.broadcast %577 : vector<1x32xf32> to vector<8x32xf32>
    %579 = arith.mulf %576, %578 : vector<8x32xf32>
    %cst_187 = arith.constant dense<0.000000e+00> : vector<8xf32>
    %580 = vector.multi_reduction <add>, %579, %cst_187 [1] : vector<8x32xf32> to vector<8xf32>
    %581 = vector.shape_cast %580 : vector<8xf32> to vector<8x1xf32>
    %c0_188 = arith.constant 0 : index
    %c0_189 = arith.constant 0 : index
    %582 = vector.load %arg12[%c0_188, %c0_189] : memref<1x1xf32, #tpu.memory_space<vmem>>, vector<1x1xf32>
    %583 = vector.broadcast %582 : vector<1x1xf32> to vector<8x1xf32>
    %584 = arith.addf %581, %583 : vector<8x1xf32>
    %585 = arith.negf %584 : vector<8x1xf32>
    %586 = math.exp %585 : vector<8x1xf32>
    %cst_190 = arith.constant 1.000000e+00 : f32
    %587 = vector.broadcast %cst_190 : f32 to vector<8x1xf32>
    %588 = arith.addf %587, %586 : vector<8x1xf32>
    %589 = arith.divf %587, %588 : vector<8x1xf32>
    %590 = vector.extract_strided_slice %589 {offsets = [0, 0], sizes = [2, 1], strides = [1, 1]} : vector<8x1xf32> to vector<2x1xf32>
    %c0_191 = arith.constant 0 : index
    %c0_192 = arith.constant 0 : index
    %591 = vector.load %arg13[%c0_191, %c0_192] : memref<2x4xf32, #tpu.memory_space<vmem>>, vector<2x1xf32>
    tpu.vector_store %arg13[%c0_191, %c0_192], %590 {strides = array<i32>} : memref<2x4xf32, #tpu.memory_space<vmem>>, vector<2x1xf32>,
    %592 = vector.extract_strided_slice %589 {offsets = [2, 0], sizes = [2, 1], strides = [1, 1]} : vector<8x1xf32> to vector<2x1xf32>
    %c0_193 = arith.constant 0 : index
    %c1 = arith.constant 1 : index
    %593 = vector.load %arg13[%c0_193, %c1] : memref<2x4xf32, #tpu.memory_space<vmem>>, vector<2x1xf32>
    tpu.vector_store %arg13[%c0_193, %c1], %592 {strides = array<i32>} : memref<2x4xf32, #tpu.memory_space<vmem>>, vector<2x1xf32>,
    %594 = vector.extract_strided_slice %589 {offsets = [4, 0], sizes = [2, 1], strides = [1, 1]} : vector<8x1xf32> to vector<2x1xf32>
    %c0_194 = arith.constant 0 : index
    %c2_195 = arith.constant 2 : index
    %595 = vector.load %arg13[%c0_194, %c2_195] : memref<2x4xf32, #tpu.memory_space<vmem>>, vector<2x1xf32>
    tpu.vector_store %arg13[%c0_194, %c2_195], %594 {strides = array<i32>} : memref<2x4xf32, #tpu.memory_space<vmem>>, vector<2x1xf32>,
    %596 = vector.extract_strided_slice %589 {offsets = [6, 0], sizes = [2, 1], strides = [1, 1]} : vector<8x1xf32> to vector<2x1xf32>
    %c0_196 = arith.constant 0 : index
    %c3 = arith.constant 3 : index
    %597 = vector.load %arg13[%c0_196, %c3] : memref<2x4xf32, #tpu.memory_space<vmem>>, vector<2x1xf32>
    tpu.vector_store %arg13[%c0_196, %c3], %596 {strides = array<i32>} : memref<2x4xf32, #tpu.memory_space<vmem>>, vector<2x1xf32>,
    return
  }
  func.func @transform_0(%arg0: i32) -> (i32, i32) {
    %c0_i32 = arith.constant 0 : i32
    %c0_i32_0 = arith.constant 0 : i32
    %c0_i32_1 = arith.constant 0 : i32
    return %c0_i32, %c0_i32_0 : i32, i32
  }
  func.func @transform_1(%arg0: i32) -> (i32, i32) {
    %c0_i32 = arith.constant 0 : i32
    %c0_i32_0 = arith.constant 0 : i32
    %c0_i32_1 = arith.constant 0 : i32
    return %c0_i32, %c0_i32_0 : i32, i32
  }
  func.func @transform_2(%arg0: i32) -> (i32, i32) {
    %c0_i32 = arith.constant 0 : i32
    %c0_i32_0 = arith.constant 0 : i32
    %c0_i32_1 = arith.constant 0 : i32
    return %c0_i32, %c0_i32_0 : i32, i32
  }
  func.func @transform_3(%arg0: i32) -> (i32, i32) {
    %c0_i32 = arith.constant 0 : i32
    %c0_i32_0 = arith.constant 0 : i32
    %c0_i32_1 = arith.constant 0 : i32
    return %c0_i32, %c0_i32_0 : i32, i32
  }
  func.func @transform_4(%arg0: i32) -> (i32, i32) {
    %c0_i32 = arith.constant 0 : i32
    %c0_i32_0 = arith.constant 0 : i32
    %c0_i32_1 = arith.constant 0 : i32
    return %c0_i32, %c0_i32_0 : i32, i32
  }
  func.func @transform_5(%arg0: i32) -> (i32, i32) {
    %c0_i32 = arith.constant 0 : i32
    %c0_i32_0 = arith.constant 0 : i32
    %c0_i32_1 = arith.constant 0 : i32
    return %c0_i32, %c0_i32_0 : i32, i32
  }
  func.func @transform_6(%arg0: i32) -> (i32, i32) {
    %c0_i32 = arith.constant 0 : i32
    %c0_i32_0 = arith.constant 0 : i32
    %c0_i32_1 = arith.constant 0 : i32
    return %c0_i32, %c0_i32_0 : i32, i32
  }
  func.func @transform_7(%arg0: i32) -> (i32, i32) {
    %c0_i32 = arith.constant 0 : i32
    %c0_i32_0 = arith.constant 0 : i32
    %c0_i32_1 = arith.constant 0 : i32
    return %c0_i32, %c0_i32_0 : i32, i32
  }
  func.func @transform_8(%arg0: i32) -> (i32, i32) {
    %c0_i32 = arith.constant 0 : i32
    %c0_i32_0 = arith.constant 0 : i32
    %c0_i32_1 = arith.constant 0 : i32
    return %c0_i32, %c0_i32_0 : i32, i32
  }
  func.func @transform_9(%arg0: i32) -> (i32, i32) {
    %c0_i32 = arith.constant 0 : i32
    %c0_i32_0 = arith.constant 0 : i32
    %c0_i32_1 = arith.constant 0 : i32
    return %c0_i32, %c0_i32_0 : i32, i32
  }
  func.func @transform_10(%arg0: i32) -> (i32, i32) {
    %c0_i32 = arith.constant 0 : i32
    %c0_i32_0 = arith.constant 0 : i32
    %c0_i32_1 = arith.constant 0 : i32
    return %c0_i32, %c0_i32_0 : i32, i32
  }
  func.func @transform_11(%arg0: i32) -> (i32, i32) {
    %c0_i32 = arith.constant 0 : i32
    %c0_i32_0 = arith.constant 0 : i32
    %c0_i32_1 = arith.constant 0 : i32
    return %c0_i32, %c0_i32_0 : i32, i32
  }
  func.func @transform_12(%arg0: i32) -> (i32, i32) {
    %c0_i32 = arith.constant 0 : i32
    %c0_i32_0 = arith.constant 0 : i32
    %c0_i32_1 = arith.constant 0 : i32
    return %c0_i32, %c0_i32_0 : i32, i32
  }
}

</mosaic_0001>

<llo_original>
// kernel: summary_model_forward.1
$region0: #{summary_model_forward.1}
  #allocation0 [shape = 'u32[]', space=smem, size = 0x4, offset = 0x4, fixed_abs, tag = 'smem constant byte address 0x4 - core index']
  #allocation1 [shape = 'u32[144,128]{1,0:T(1,128)}', space=vmem, size = 0x12000, scoped, tag = 'internal scratch']
  #allocation2 [shape = 'f32[64,48]{1,0:T(8,128)}', space=vmem, size = 0x8000, scoped, tag = 'scratch operand']
  #allocation3 [shape = 'f32[8,96]{1,0:T(8,128)}', space=vmem, size = 0x1000, scoped, tag = 'scratch operand']
  #allocation4 [shape = 'f32[8,128]{1,0:T(8,128)}', space=vmem, size = 0x1000, scoped, tag = 'scratch operand']
  #allocation5 [shape = 'f32[8,32]{1,0:T(8,128)}', space=vmem, size = 0x1000, scoped, tag = 'scratch operand']
  #allocation6 [shape = 'f32[1,1]{1,0:T(1,128)S(1)}', space=vmem, size = 0x200, scoped, tag = 'scoped memory for summary_model_forward.1']
  %s0 = inlined_call_operand.vmem [shape: f32[64,16], index: 0, kind: input, shape index: {}]
  %s1 = inlined_call_operand.vmem [shape: s32[8,1], index: 1, kind: input, shape index: {}]
  %s2 = inlined_call_operand.vmem [shape: f32[16,48], index: 2, kind: input, shape index: {}]
  %s3 = inlined_call_operand.vmem [shape: f32[1,48], index: 3, kind: input, shape index: {}]
  %s4 = inlined_call_operand.vmem [shape: f32[16,48], index: 4, kind: input, shape index: {}]
  %s5 = inlined_call_operand.vmem [shape: f32[1,48], index: 5, kind: input, shape index: {}]
  %s6 = inlined_call_operand.vmem [shape: f32[128,96], index: 6, kind: input, shape index: {}]
  %s7 = inlined_call_operand.vmem [shape: f32[1,96], index: 7, kind: input, shape index: {}]
  %s8 = inlined_call_operand.vmem [shape: f32[32,96], index: 8, kind: input, shape index: {}]
  %s9 = inlined_call_operand.vmem [shape: f32[1,96], index: 9, kind: input, shape index: {}]
  %s10 = inlined_call_operand.vmem [shape: f32[1,32], index: 10, kind: input, shape index: {}]
  %s11 = inlined_call_operand.<no memory space> [shape: f32[1,1], index: 11, kind: input, shape index: {}]
  %s12 = inlined_call_operand.hbm [shape: f32[2,4], index: 12, kind: output, shape index: {}]
  %s13 = sld [smem:[#allocation0]]
  $region58: #{summary_model_forward.1} parent=0
    _
  %s15 = ssub.s32 1, %s13
  %s16 = scalar_select 0, %s15, %s13
  %v17 = vstv %s11
  %18 = vst [vmem:[#allocation6] sm:$0x1] %v17
  $region1: #{summary_model_forward.1} parent=0
    #allocation7 [shape = 'u8[1024]{0}', space=vmem, size = 0x400, scoped, tag = 'output window, operand 0, single buffered']
    #allocation8 [shape = 's32[1]{0}', space=sflag, size = 0x4, scoped, tag = 'scoped memory for summary_model_forward.1']
    %19 = vsyncpa [#allocation8], 0
    // Predicated region
    $region2: #{summary_model_forward.1} parent=1 // pred_check
      _
    $region3: #{summary_model_forward.1} parent=1 // pred_check_branch
      %21 = sbr.rel (0) target = $region5
    $region4: #{summary_model_forward.1} parent=1 // pred_region
      _
    $region5: #{summary_model_forward.1} parent=1 // pred_fallthru
      _
    // Predicated region
    $region6: #{summary_model_forward.1} parent=1 // pred_check
      _
    $region7: #{summary_model_forward.1} parent=1 // pred_check_branch
      %23 = sbr.rel (0) target = $region9
    $region8: #{summary_model_forward.1} parent=1 // pred_region
      _
    $region9: #{summary_model_forward.1} parent=1 // pred_fallthru
      _
    // Predicated region
    $region10: #{summary_model_forward.1} parent=1 // pred_check
      _
    $region11: #{summary_model_forward.1} parent=1 // pred_check_branch
      %25 = sbr.rel (0) target = $region13
    $region12: #{summary_model_forward.1} parent=1 // pred_region
      _
    $region13: #{summary_model_forward.1} parent=1 // pred_fallthru
      _
    // Predicated region
    $region14: #{summary_model_forward.1} parent=1 // pred_check
      _
    $region15: #{summary_model_forward.1} parent=1 // pred_check_branch
      %27 = sbr.rel (0) target = $region17
    $region16: #{summary_model_forward.1} parent=1 // pred_region
      _
    $region17: #{summary_model_forward.1} parent=1 // pred_fallthru
      _
    // Predicated region
    $region18: #{summary_model_forward.1} parent=1 // pred_check
      _
    $region19: #{summary_model_forward.1} parent=1 // pred_check_branch
      %29 = sbr.rel (0) target = $region21
    $region20: #{summary_model_forward.1} parent=1 // pred_region
      _
    $region21: #{summary_model_forward.1} parent=1 // pred_fallthru
      _
    // Predicated region
    $region22: #{summary_model_forward.1} parent=1 // pred_check
      _
    $region23: #{summary_model_forward.1} parent=1 // pred_check_branch
      %31 = sbr.rel (0) target = $region25
    $region24: #{summary_model_forward.1} parent=1 // pred_region
      _
    $region25: #{summary_model_forward.1} parent=1 // pred_fallthru
      _
    // Predicated region
    $region26: #{summary_model_forward.1} parent=1 // pred_check
      _
    $region27: #{summary_model_forward.1} parent=1 // pred_check_branch
      %33 = sbr.rel (0) target = $region29
    $region28: #{summary_model_forward.1} parent=1 // pred_region
      _
    $region29: #{summary_model_forward.1} parent=1 // pred_fallthru
      _
    // Predicated region
    $region30: #{summary_model_forward.1} parent=1 // pred_check
      _
    $region31: #{summary_model_forward.1} parent=1 // pred_check_branch
      %35 = sbr.rel (0) target = $region33
    $region32: #{summary_model_forward.1} parent=1 // pred_region
      _
    $region33: #{summary_model_forward.1} parent=1 // pred_fallthru
      _
    // Predicated region
    $region34: #{summary_model_forward.1} parent=1 // pred_check
      _
    $region35: #{summary_model_forward.1} parent=1 // pred_check_branch
      %37 = sbr.rel (0) target = $region37
    $region36: #{summary_model_forward.1} parent=1 // pred_region
      _
    $region37: #{summary_model_forward.1} parent=1 // pred_fallthru
      _
    // Predicated region
    $region38: #{summary_model_forward.1} parent=1 // pred_check
      _
    $region39: #{summary_model_forward.1} parent=1 // pred_check_branch
      %39 = sbr.rel (0) target = $region41
    $region40: #{summary_model_forward.1} parent=1 // pred_region
      _
    $region41: #{summary_model_forward.1} parent=1 // pred_fallthru
      _
    // Predicated region
    $region42: #{summary_model_forward.1} parent=1 // pred_check
      _
    $region43: #{summary_model_forward.1} parent=1 // pred_check_branch
      %41 = sbr.rel (0) target = $region45
    $region44: #{summary_model_forward.1} parent=1 // pred_region
      _
    $region45: #{summary_model_forward.1} parent=1 // pred_fallthru
      _
    // Predicated region
    $region46: #{summary_model_forward.1} parent=1 // pred_check
      _
    $region47: #{summary_model_forward.1} parent=1 // pred_check_branch
      %43 = sbr.rel (0) target = $region49
    $region48: #{summary_model_forward.1} parent=1 // pred_region
      _
    $region49: #{summary_model_forward.1} parent=1 // pred_fallthru
      _
    %v44 = vld [vmem:[%s0] sm:$0xff]
    %v45 = vld [vmem:[%s0 + $0x8] sm:$0xff]
    %v46 = vld [vmem:[%s0 + $0x10] sm:$0xff]
    %v47 = vld [vmem:[%s0 + $0x18] sm:$0xff]
    %v48 = vld [vmem:[%s0 + $0x20] sm:$0xff]
    %v49 = vld [vmem:[%s0 + $0x28] sm:$0xff]
    %v50 = vld [vmem:[%s0 + $0x30] sm:$0xff]
    %v51 = vld [vmem:[%s0 + $0x38] sm:$0xff]
    %v52 = vld [vmem:[%s2] sm:$0xff]
    %v53 = vld [vmem:[%s2 + $0x8] sm:$0xff]
    %v54 = vld [vmem:[%s3] sm:$0x1]
    %v56 = vlaneseq
    %v57 = vshrl.u32 %v56, 7
    %v58 = vsub.s32 0, %v57
    %v59 = vrot.slane %v54, %v58
    %vm61 = vcmask 130048
    %v63 = vsel %vm61, %v44, 0
    %v66 = vsel %vm61, %v45, 0
    %v69 = vsel %vm61, %v46, 0
    %v72 = vsel %vm61, %v47, 0
    %v75 = vsel %vm61, %v48, 0
    %v78 = vsel %vm61, %v49, 0
    %v81 = vsel %vm61, %v50, 0
    %v84 = vsel %vm61, %v51, 0
    %86 = vmatprep.subr.mxu0 0.0
    %87 = vmatpush1.msra.mxu0 0.0
    %88 = vmatprep.subr.mxu0 0.0
    %89 = vmatpush1.msra.mxu0 0.0
    %90 = vmatprep.subr.mxu0 0.0
    %91 = vmatpush1.msra.mxu0 0.0
    %92 = vmatprep.subr.mxu0 0.0
    %93 = vmatpush1.msra.mxu0 0.0
    %94 = vmatprep.subr.mxu0 0.0
    %95 = vmatpush1.msra.mxu0 0.0
    %96 = vmatprep.subr.mxu0 0.0
    %97 = vmatpush1.msra.mxu0 0.0
    %98 = vmatprep.subr.mxu0 0.0
    %99 = vmatpush1.msra.mxu0 0.0
    %100 = vmatprep.subr.mxu0 0.0
    %101 = vmatpush1.msra.mxu0 0.0
    %102 = vmatprep.subr.mxu0 0.0
    %103 = vmatpush1.msra.mxu0 0.0
    %104 = vmatprep.subr.mxu0 0.0
    %105 = vmatpush1.msra.mxu0 0.0
    %106 = vmatprep.subr.mxu0 0.0
    %107 = vmatpush1.msra.mxu0 0.0
    %108 = vmatprep.subr.mxu0 0.0
    %109 = vmatpush1.msra.mxu0 0.0
    %110 = vmatprep.subr.mxu0 0.0
    %111 = vmatpush1.msra.mxu0 0.0
    %112 = vmatprep.subr.mxu0 0.0
    %113 = vmatpush1.msra.mxu0 0.0
    %114 = vmatprep.subr.mxu0 0.0
    %115 = vmatpush1.msra.mxu0 %v53
    %116 = vmatprep.subr.mxu0 0.0
    %117 = vmatpush1.msra.mxu0 %v52
    %118 = vmatprep.subr.mxu0 0.0
    %119 = vmatpush2.msra.mxu0 0.0
    %120 = vmatprep.subr.mxu0 0.0
    %121 = vmatpush2.msra.mxu0 0.0
    %122 = vmatprep.subr.mxu0 0.0
    %123 = vmatpush2.msra.mxu0 0.0
    %124 = vmatprep.subr.mxu0 0.0
    %125 = vmatpush2.msra.mxu0 0.0
    %126 = vmatprep.subr.mxu0 0.0
    %127 = vmatpush2.msra.mxu0 0.0
    %128 = vmatprep.subr.mxu0 0.0
    %129 = vmatpush2.msra.mxu0 0.0
    %130 = vmatprep.subr.mxu0 0.0
    %131 = vmatpush2.msra.mxu0 0.0
    %132 = vmatprep.subr.mxu0 0.0
    %133 = vmatpush2.msra.mxu0 0.0
    %134 = vmatprep.subr.mxu0 0.0
    %135 = vmatpush2.msra.mxu0 0.0
    %136 = vmatprep.subr.mxu0 0.0
    %137 = vmatpush2.msra.mxu0 0.0
    %138 = vmatprep.subr.mxu0 0.0
    %139 = vmatpush2.msra.mxu0 0.0
    %140 = vmatprep.subr.mxu0 0.0
    %141 = vmatpush2.msra.mxu0 0.0
    %142 = vmatprep.subr.mxu0 0.0
    %143 = vmatpush2.msra.mxu0 0.0
    %144 = vmatprep.subr.mxu0 0.0
    %145 = vmatpush2.msra.mxu0 0.0
    %146 = vmatprep.subr.mxu0 0.0
    %147 = vmatpush2.msra.mxu0 0.0
    %148 = vmatprep.subr.mxu0 0.0
    %149 = vmatpush2.msra.mxu0 0.0
    %150 = vmatprep.mubr.f32.mxu0 0.0
    %151 = vmatmul.mubr.f32.gmra.mxu0 %v63
    %v152 = vpop.f32.mrf.mxu0
    %v153 = vadd.f32 %v59, %v152
    %v154 = vpop.f32.mrf.mxu0
    %155 = vmatprep.mubr.f32.mxu0 0.0
    %156 = vmatmul.mubr.f32.gmra.mxu0 %v66
    %v157 = vpop.f32.mrf.mxu0
    %v158 = vadd.f32 %v59, %v157
    %v159 = vpop.f32.mrf.mxu0
    %160 = vmatprep.mubr.f32.mxu0 0.0
    %161 = vmatmul.mubr.f32.gmra.mxu0 %v69
    %v162 = vpop.f32.mrf.mxu0
    %v163 = vadd.f32 %v59, %v162
    %v164 = vpop.f32.mrf.mxu0
    %165 = vmatprep.mubr.f32.mxu0 0.0
    %166 = vmatmul.mubr.f32.gmra.mxu0 %v72
    %v167 = vpop.f32.mrf.mxu0
    %v168 = vadd.f32 %v59, %v167
    %v169 = vpop.f32.mrf.mxu0
    %170 = vmatprep.mubr.f32.mxu0 0.0
    %171 = vmatmul.mubr.f32.gmra.mxu0 %v75
    %v172 = vpop.f32.mrf.mxu0
    %v173 = vadd.f32 %v59, %v172
    %v174 = vpop.f32.mrf.mxu0
    %175 = vmatprep.mubr.f32.mxu0 0.0
    %176 = vmatmul.mubr.f32.gmra.mxu0 %v78
    %v177 = vpop.f32.mrf.mxu0
    %v178 = vadd.f32 %v59, %v177
    %v179 = vpop.f32.mrf.mxu0
    %180 = vmatprep.mubr.f32.mxu0 0.0
    %181 = vmatmul.mubr.f32.gmra.mxu0 %v81
    %v182 = vpop.f32.mrf.mxu0
    %v183 = vadd.f32 %v59, %v182
    %v184 = vpop.f32.mrf.mxu0
    %185 = vmatprep.mubr.f32.mxu0 0.0
    %186 = vmatmul.mubr.f32.gmra.mxu0 %v84
    %v187 = vpop.f32.mrf.mxu0
    %v188 = vadd.f32 %v59, %v187
    %v189 = vpop.f32.mrf.mxu0
    %190 = vdwg.mxu0
    %vm191 = vcmask 392192
    %192 = vst.msk [vmem:[#allocation2] sm:$0xff] %vm191, %v153
    %193 = vst.msk [vmem:[#allocation2 + $0x8] sm:$0xff] %vm191, %v158
    %194 = vst.msk [vmem:[#allocation2 + $0x10] sm:$0xff] %vm191, %v163
    %195 = vst.msk [vmem:[#allocation2 + $0x18] sm:$0xff] %vm191, %v168
    %196 = vst.msk [vmem:[#allocation2 + $0x20] sm:$0xff] %vm191, %v173
    %197 = vst.msk [vmem:[#allocation2 + $0x28] sm:$0xff] %vm191, %v178
    %198 = vst.msk [vmem:[#allocation2 + $0x30] sm:$0xff] %vm191, %v183
    %199 = vst.msk [vmem:[#allocation2 + $0x38] sm:$0xff] %vm191, %v188
    %v200 = vld [vmem:[%s4] sm:$0xff]
    %v201 = vld [vmem:[%s4 + $0x8] sm:$0xff]
    %v202 = vld [vmem:[%s5] sm:$0x1]
    %v203 = vld [vmem:[%s1] sm:$0xff]
    %204 = vset.pattern.permute.xlu0 0
    %205 = vperm.xlu0 %204, %v203
    %v206 = vpop.permute.xlu0 %205
    %v207 = vlaneseq
    %v208 = vand.u32 %v207, 127
    %vm209 = vcmp.lt.s32.totalorder %v208, 8
    %vm210 = vmxor %vm209, 1
    %vm211 = vcmp.lt.s32.totalorder %v208, 0
    %v212 = vsub.s32 0, %v208
    %v213 = vsel %vm211, %v212, %v208
    %v214 = vshrl.u32 %v213, 4
    %v215 = vand.u32 %v213, 15
    %v216 = vsub.s32 0, %v215
    %v217 = vsel %vm211, %v216, %v215
    %vm218 = vcmp.ne.s32.totalorder %v217, 0
    %vm219 = vcmp.lt.s32.totalorder %v217, 0
    %vm220 = vmand %vm219, %vm218
    %v221 = vadd.s32 %v217, 16
    %v222 = vsel %vm220, %v221, %v217
    %vm223 = vcmp.lt.s32.totalorder %v222, 8
    %v224 = vld [vmem:[#allocation2] sm:$0xff]
    %v225 = vld [vmem:[#allocation2 + $0x38] sm:$0xff]
    %v226 = vsel %vm223, %v224, %v225
    %v228 = vlaneseq
    %v229 = vshrl.u32 %v228, 7
    %v230 = vsub.s32 0, %v229
    %v231 = vrot.slane %v202, %v230
    %v234 = vsel %vm61, 0.0, 0
    %236 = vmatprep.subr.mxu0 0.0
    %237 = vmatpush1.msra.mxu0 0.0
    %238 = vmatprep.subr.mxu0 0.0
    %239 = vmatpush1.msra.mxu0 0.0
    %240 = vmatprep.subr.mxu0 0.0
    %241 = vmatpush1.msra.mxu0 0.0
    %242 = vmatprep.subr.mxu0 0.0
    %243 = vmatpush1.msra.mxu0 0.0
    %244 = vmatprep.subr.mxu0 0.0
    %245 = vmatpush1.msra.mxu0 0.0
    %246 = vmatprep.subr.mxu0 0.0
    %247 = vmatpush1.msra.mxu0 0.0
    %248 = vmatprep.subr.mxu0 0.0
    %249 = vmatpush1.msra.mxu0 0.0
    %250 = vmatprep.subr.mxu0 0.0
    %251 = vmatpush1.msra.mxu0 0.0
    %252 = vmatprep.subr.mxu0 0.0
    %253 = vmatpush1.msra.mxu0 0.0
    %254 = vmatprep.subr.mxu0 0.0
    %255 = vmatpush1.msra.mxu0 0.0
    %256 = vmatprep.subr.mxu0 0.0
    %257 = vmatpush1.msra.mxu0 0.0
    %258 = vmatprep.subr.mxu0 0.0
    %259 = vmatpush1.msra.mxu0 0.0
    %260 = vmatprep.subr.mxu0 0.0
    %261 = vmatpush1.msra.mxu0 0.0
    %262 = vmatprep.subr.mxu0 0.0
    %263 = vmatpush1.msra.mxu0 0.0
    %264 = vmatprep.subr.mxu0 0.0
    %265 = vmatpush1.msra.mxu0 %v201
    %266 = vmatprep.subr.mxu0 0.0
    %267 = vmatpush1.msra.mxu0 %v200
    %268 = vmatprep.subr.mxu0 0.0
    %269 = vmatpush2.msra.mxu0 0.0
    %270 = vmatprep.subr.mxu0 0.0
    %271 = vmatpush2.msra.mxu0 0.0
    %272 = vmatprep.subr.mxu0 0.0
    %273 = vmatpush2.msra.mxu0 0.0
    %274 = vmatprep.subr.mxu0 0.0
    %275 = vmatpush2.msra.mxu0 0.0
    %276 = vmatprep.subr.mxu0 0.0
    %277 = vmatpush2.msra.mxu0 0.0
    %278 = vmatprep.subr.mxu0 0.0
    %279 = vmatpush2.msra.mxu0 0.0
    %280 = vmatprep.subr.mxu0 0.0
    %281 = vmatpush2.msra.mxu0 0.0
    %282 = vmatprep.subr.mxu0 0.0
    %283 = vmatpush2.msra.mxu0 0.0
    %284 = vmatprep.subr.mxu0 0.0
    %285 = vmatpush2.msra.mxu0 0.0
    %286 = vmatprep.subr.mxu0 0.0
    %287 = vmatpush2.msra.mxu0 0.0
    %288 = vmatprep.subr.mxu0 0.0
    %289 = vmatpush2.msra.mxu0 0.0
    %290 = vmatprep.subr.mxu0 0.0
    %291 = vmatpush2.msra.mxu0 0.0
    %292 = vmatprep.subr.mxu0 0.0
    %293 = vmatpush2.msra.mxu0 0.0
    %294 = vmatprep.subr.mxu0 0.0
    %295 = vmatpush2.msra.mxu0 0.0
    %296 = vmatprep.subr.mxu0 0.0
    %297 = vmatpush2.msra.mxu0 0.0
    %298 = vmatprep.subr.mxu0 0.0
    %299 = vmatpush2.msra.mxu0 0.0
    %300 = vmatprep.mubr.f32.mxu0 0.0
    %301 = vmatmul.mubr.f32.gmra.mxu0 %v234
    %v302 = vpop.f32.mrf.mxu0
    %v303 = vadd.f32 %v231, %v302
    %v304 = vpop.f32.mrf.mxu0
    %305 = vdwg.mxu0
    %v306 = vadd.f32 %v226, %v303
    %v307 = vxor.u32 %v306, 2147483648
    %v308 = vmul.f32 %v307, 1.442695
    %v309 = vpow.pop %v308
    %v310 = vadd.f32 %v309, 1.0
    %v311 = vrcp.pop %v310
    %v312 = vmul.f32 1.0, %v311
    %314 = vrot.lane.b32.xlu0 %v303, 96
    %v315 = vpop.permute.xlu0 %314
    %v317 = vmul.f32 %v312, %v315
    %319 = vrot.lane.b32.xlu0 %v317, 32
    %v320 = vpop.permute.xlu0 %319
    %v322 = vadd.f32 %v226, %v320
    %v323 = vtanh.pop %v322
    %v324 = vsub.f32 1.0, %v312
    %326 = vrot.lane.b32.xlu0 %v323, 112
    %v327 = vpop.permute.xlu0 %326
    %v329 = vmul.f32 %v324, %v327
    %v330 = vmul.f32 %v312, 0.0
    %v331 = vadd.f32 %v329, %v330
    %vm332 = vcmp.gt.s32.totalorder %v206, 0
    %vm333 = vmand %vm209, %vm332
    %vm334 = vcmp.gt.s32.totalorder %v206, 7
    %vm335 = vmand %vm210, %vm334
    %vm336 = vmor %vm333, %vm335
    %338 = vrot.lane.b32.xlu0 %v331, 112
    %v339 = vpop.permute.xlu0 %338
    %v341 = vsel %vm336, %v339, 0.0
    %vm342 = vcmask 64512
    %343 = vst.msk [vmem:[#allocation4] sm:$0xff] %vm342, %v341
    %345 = vrot.lane.b32.xlu0 %v341, 112
    %v346 = vpop.permute.xlu0 %345
    %vm348 = vcmask 1048512
    %349 = vst.msk [vmem:[#allocation4] sm:$0xff] %vm348, %v346
    %v350 = vld [vmem:[#allocation2 + $0x8] sm:$0xff]
    %v351 = vld [vmem:[#allocation2 + $0x30] sm:$0xff]
    %v352 = vsel %vm223, %v350, %v351
    %v353 = vsel %vm61, %v341, 0
    %355 = vmatprep.subr.mxu0 0.0
    %356 = vmatpush1.msra.mxu0 0.0
    %357 = vmatprep.subr.mxu0 0.0
    %358 = vmatpush1.msra.mxu0 0.0
    %359 = vmatprep.subr.mxu0 0.0
    %360 = vmatpush1.msra.mxu0 0.0
    %361 = vmatprep.subr.mxu0 0.0
    %362 = vmatpush1.msra.mxu0 0.0
    %363 = vmatprep.subr.mxu0 0.0
    %364 = vmatpush1.msra.mxu0 0.0
    %365 = vmatprep.subr.mxu0 0.0
    %366 = vmatpush1.msra.mxu0 0.0
    %367 = vmatprep.subr.mxu0 0.0
    %368 = vmatpush1.msra.mxu0 0.0
    %369 = vmatprep.subr.mxu0 0.0
    %370 = vmatpush1.msra.mxu0 0.0
    %371 = vmatprep.subr.mxu0 0.0
    %372 = vmatpush1.msra.mxu0 0.0
    %373 = vmatprep.subr.mxu0 0.0
    %374 = vmatpush1.msra.mxu0 0.0
    %375 = vmatprep.subr.mxu0 0.0
    %376 = vmatpush1.msra.mxu0 0.0
    %377 = vmatprep.subr.mxu0 0.0
    %378 = vmatpush1.msra.mxu0 0.0
    %379 = vmatprep.subr.mxu0 0.0
    %380 = vmatpush1.msra.mxu0 0.0
    %381 = vmatprep.subr.mxu0 0.0
    %382 = vmatpush1.msra.mxu0 0.0
    %383 = vmatprep.subr.mxu0 0.0
    %384 = vmatpush1.msra.mxu0 %v201
    %385 = vmatprep.subr.mxu0 0.0
    %386 = vmatpush1.msra.mxu0 %v200
    %387 = vmatprep.subr.mxu0 0.0
    %388 = vmatpush2.msra.mxu0 0.0
    %389 = vmatprep.subr.mxu0 0.0
    %390 = vmatpush2.msra.mxu0 0.0
    %391 = vmatprep.subr.mxu0 0.0
    %392 = vmatpush2.msra.mxu0 0.0
    %393 = vmatprep.subr.mxu0 0.0
    %394 = vmatpush2.msra.mxu0 0.0
    %395 = vmatprep.subr.mxu0 0.0
    %396 = vmatpush2.msra.mxu0 0.0
    %397 = vmatprep.subr.mxu0 0.0
    %398 = vmatpush2.msra.mxu0 0.0
    %399 = vmatprep.subr.mxu0 0.0
    %400 = vmatpush2.msra.mxu0 0.0
    %401 = vmatprep.subr.mxu0 0.0
    %402 = vmatpush2.msra.mxu0 0.0
    %403 = vmatprep.subr.mxu0 0.0
    %404 = vmatpush2.msra.mxu0 0.0
    %405 = vmatprep.subr.mxu0 0.0
    %406 = vmatpush2.msra.mxu0 0.0
    %407 = vmatprep.subr.mxu0 0.0
    %408 = vmatpush2.msra.mxu0 0.0
    %409 = vmatprep.subr.mxu0 0.0
    %410 = vmatpush2.msra.mxu0 0.0
    %411 = vmatprep.subr.mxu0 0.0
    %412 = vmatpush2.msra.mxu0 0.0
    %413 = vmatprep.subr.mxu0 0.0
    %414 = vmatpush2.msra.mxu0 0.0
    %415 = vmatprep.subr.mxu0 0.0
    %416 = vmatpush2.msra.mxu0 0.0
    %417 = vmatprep.subr.mxu0 0.0
    %418 = vmatpush2.msra.mxu0 0.0
    %419 = vmatprep.mubr.f32.mxu0 0.0
    %420 = vmatmul.mubr.f32.gmra.mxu0 %v353
    %v421 = vpop.f32.mrf.mxu0
    %v422 = vadd.f32 %v231, %v421
    %v423 = vpop.f32.mrf.mxu0
    %424 = vdwg.mxu0
    %v425 = vadd.f32 %v352, %v422
    %v426 = vxor.u32 %v425, 2147483648
    %v427 = vmul.f32 %v426, 1.442695
    %v428 = vpow.pop %v427
    %v429 = vadd.f32 %v428, 1.0
    %v430 = vrcp.pop %v429
    %v431 = vmul.f32 1.0, %v430
    %433 = vrot.lane.b32.xlu0 %v422, 96
    %v434 = vpop.permute.xlu0 %433
    %v436 = vmul.f32 %v431, %v434
    %438 = vrot.lane.b32.xlu0 %v436, 32
    %v439 = vpop.permute.xlu0 %438
    %v441 = vadd.f32 %v352, %v439
    %v442 = vtanh.pop %v441
    %v443 = vsub.f32 1.0, %v431
    %445 = vrot.lane.b32.xlu0 %v442, 112
    %v446 = vpop.permute.xlu0 %445
    %v448 = vmul.f32 %v443, %v446
    %449 = vrot.lane.b32.xlu0 %v341, 16
    %v450 = vpop.permute.xlu0 %449
    %v452 = vmul.f32 %v431, %v450
    %v453 = vadd.f32 %v448, %v452
    %vm454 = vcmp.gt.s32.totalorder %v206, 1
    %vm455 = vmand %vm209, %vm454
    %vm456 = vcmp.gt.s32.totalorder %v206, 6
    %vm457 = vmand %vm210, %vm456
    %vm458 = vmor %vm455, %vm457
    %460 = vrot.lane.b32.xlu0 %v453, 112
    %v461 = vpop.permute.xlu0 %460
    %v463 = vsel %vm458, %v461, 0.0
    %465 = vrot.lane.b32.xlu0 %v463, 8
    %v466 = vpop.permute.xlu0 %465
    %vm468 = vcmask 130112
    %469 = vst.msk [vmem:[#allocation4] sm:$0xff] %vm468, %v466
    %470 = vrot.lane.b32.xlu0 %v463, 104
    %v471 = vpop.permute.xlu0 %470
    %vm473 = vcmask 982912
    %474 = vst.msk [vmem:[#allocation4] sm:$0xff] %vm473, %v471
    %v475 = vsel %vm458, %v461, %v341
    %v476 = vld [vmem:[#allocation2 + $0x10] sm:$0xff]
    %v477 = vld [vmem:[#allocation2 + $0x28] sm:$0xff]
    %v478 = vsel %vm223, %v476, %v477
    %v480 = vsel %vm61, %v475, 0
    %482 = vmatprep.subr.mxu0 0.0
    %483 = vmatpush1.msra.mxu0 0.0
    %484 = vmatprep.subr.mxu0 0.0
    %485 = vmatpush1.msra.mxu0 0.0
    %486 = vmatprep.subr.mxu0 0.0
    %487 = vmatpush1.msra.mxu0 0.0
    %488 = vmatprep.subr.mxu0 0.0
    %489 = vmatpush1.msra.mxu0 0.0
    %490 = vmatprep.subr.mxu0 0.0
    %491 = vmatpush1.msra.mxu0 0.0
    %492 = vmatprep.subr.mxu0 0.0
    %493 = vmatpush1.msra.mxu0 0.0
    %494 = vmatprep.subr.mxu0 0.0
    %495 = vmatpush1.msra.mxu0 0.0
    %496 = vmatprep.subr.mxu0 0.0
    %497 = vmatpush1.msra.mxu0 0.0
    %498 = vmatprep.subr.mxu0 0.0
    %499 = vmatpush1.msra.mxu0 0.0
    %500 = vmatprep.subr.mxu0 0.0
    %501 = vmatpush1.msra.mxu0 0.0
    %502 = vmatprep.subr.mxu0 0.0
    %503 = vmatpush1.msra.mxu0 0.0
    %504 = vmatprep.subr.mxu0 0.0
    %505 = vmatpush1.msra.mxu0 0.0
    %506 = vmatprep.subr.mxu0 0.0
    %507 = vmatpush1.msra.mxu0 0.0
    %508 = vmatprep.subr.mxu0 0.0
    %509 = vmatpush1.msra.mxu0 0.0
    %510 = vmatprep.subr.mxu0 0.0
    %511 = vmatpush1.msra.mxu0 %v201
    %512 = vmatprep.subr.mxu0 0.0
    %513 = vmatpush1.msra.mxu0 %v200
    %514 = vmatprep.subr.mxu0 0.0
    %515 = vmatpush2.msra.mxu0 0.0
    %516 = vmatprep.subr.mxu0 0.0
    %517 = vmatpush2.msra.mxu0 0.0
    %518 = vmatprep.subr.mxu0 0.0
    %519 = vmatpush2.msra.mxu0 0.0
    %520 = vmatprep.subr.mxu0 0.0
    %521 = vmatpush2.msra.mxu0 0.0
    %522 = vmatprep.subr.mxu0 0.0
    %523 = vmatpush2.msra.mxu0 0.0
    %524 = vmatprep.subr.mxu0 0.0
    %525 = vmatpush2.msra.mxu0 0.0
    %526 = vmatprep.subr.mxu0 0.0
    %527 = vmatpush2.msra.mxu0 0.0
    %528 = vmatprep.subr.mxu0 0.0
    %529 = vmatpush2.msra.mxu0 0.0
    %530 = vmatprep.subr.mxu0 0.0
    %531 = vmatpush2.msra.mxu0 0.0
    %532 = vmatprep.subr.mxu0 0.0
    %533 = vmatpush2.msra.mxu0 0.0
    %534 = vmatprep.subr.mxu0 0.0
    %535 = vmatpush2.msra.mxu0 0.0
    %536 = vmatprep.subr.mxu0 0.0
    %537 = vmatpush2.msra.mxu0 0.0
    %538 = vmatprep.subr.mxu0 0.0
    %539 = vmatpush2.msra.mxu0 0.0
    %540 = vmatprep.subr.mxu0 0.0
    %541 = vmatpush2.msra.mxu0 0.0
    %542 = vmatprep.subr.mxu0 0.0
    %543 = vmatpush2.msra.mxu0 0.0
    %544 = vmatprep.subr.mxu0 0.0
    %545 = vmatpush2.msra.mxu0 0.0
    %546 = vmatprep.mubr.f32.mxu0 0.0
    %547 = vmatmul.mubr.f32.gmra.mxu0 %v480
    %v548 = vpop.f32.mrf.mxu0
    %v549 = vadd.f32 %v231, %v548
    %v550 = vpop.f32.mrf.mxu0
    %551 = vdwg.mxu0
    %v552 = vadd.f32 %v478, %v549
    %v553 = vxor.u32 %v552, 2147483648
    %v554 = vmul.f32 %v553, 1.442695
    %v555 = vpow.pop %v554
    %v556 = vadd.f32 %v555, 1.0
    %v557 = vrcp.pop %v556
    %v558 = vmul.f32 1.0, %v557
    %560 = vrot.lane.b32.xlu0 %v549, 96
    %v561 = vpop.permute.xlu0 %560
    %v563 = vmul.f32 %v558, %v561
    %565 = vrot.lane.b32.xlu0 %v563, 32
    %v566 = vpop.permute.xlu0 %565
    %v568 = vadd.f32 %v478, %v566
    %v569 = vtanh.pop %v568
    %v570 = vsub.f32 1.0, %v558
    %572 = vrot.lane.b32.xlu0 %v569, 112
    %v573 = vpop.permute.xlu0 %572
    %v575 = vmul.f32 %v570, %v573
    %576 = vrot.lane.b32.xlu0 %v475, 16
    %v577 = vpop.permute.xlu0 %576
    %v579 = vmul.f32 %v558, %v577
    %v580 = vadd.f32 %v575, %v579
    %vm581 = vcmp.gt.s32.totalorder %v206, 2
    %vm582 = vmand %vm209, %vm581
    %vm583 = vcmp.gt.s32.totalorder %v206, 5
    %vm584 = vmand %vm210, %vm583
    %vm585 = vmor %vm582, %vm584
    %587 = vrot.lane.b32.xlu0 %v580, 112
    %v588 = vpop.permute.xlu0 %587
    %v590 = vsel %vm585, %v588, 0.0
    %592 = vrot.lane.b32.xlu0 %v590, 16
    %v593 = vpop.permute.xlu0 %592
    %vm595 = vcmask 195712
    %596 = vst.msk [vmem:[#allocation4] sm:$0xff] %vm595, %v593
    %597 = vrot.lane.b32.xlu0 %v590, 96
    %v598 = vpop.permute.xlu0 %597
    %vm600 = vcmask 917312
    %601 = vst.msk [vmem:[#allocation4] sm:$0xff] %vm600, %v598
    %v602 = vsel %vm585, %v588, %v475
    %v603 = vld [vmem:[#allocation2 + $0x18] sm:$0xff]
    %v604 = vld [vmem:[#allocation2 + $0x20] sm:$0xff]
    %v605 = vsel %vm223, %v603, %v604
    %v607 = vsel %vm61, %v602, 0
    %609 = vmatprep.subr.mxu0 0.0
    %610 = vmatpush1.msra.mxu0 0.0
    %611 = vmatprep.subr.mxu0 0.0
    %612 = vmatpush1.msra.mxu0 0.0
    %613 = vmatprep.subr.mxu0 0.0
    %614 = vmatpush1.msra.mxu0 0.0
    %615 = vmatprep.subr.mxu0 0.0
    %616 = vmatpush1.msra.mxu0 0.0
    %617 = vmatprep.subr.mxu0 0.0
    %618 = vmatpush1.msra.mxu0 0.0
    %619 = vmatprep.subr.mxu0 0.0
    %620 = vmatpush1.msra.mxu0 0.0
    %621 = vmatprep.subr.mxu0 0.0
    %622 = vmatpush1.msra.mxu0 0.0
    %623 = vmatprep.subr.mxu0 0.0
    %624 = vmatpush1.msra.mxu0 0.0
    %625 = vmatprep.subr.mxu0 0.0
    %626 = vmatpush1.msra.mxu0 0.0
    %627 = vmatprep.subr.mxu0 0.0
    %628 = vmatpush1.msra.mxu0 0.0
    %629 = vmatprep.subr.mxu0 0.0
    %630 = vmatpush1.msra.mxu0 0.0
    %631 = vmatprep.subr.mxu0 0.0
    %632 = vmatpush1.msra.mxu0 0.0
    %633 = vmatprep.subr.mxu0 0.0
    %634 = vmatpush1.msra.mxu0 0.0
    %635 = vmatprep.subr.mxu0 0.0
    %636 = vmatpush1.msra.mxu0 0.0
    %637 = vmatprep.subr.mxu0 0.0
    %638 = vmatpush1.msra.mxu0 %v201
    %639 = vmatprep.subr.mxu0 0.0
    %640 = vmatpush1.msra.mxu0 %v200
    %641 = vmatprep.subr.mxu0 0.0
    %642 = vmatpush2.msra.mxu0 0.0
    %643 = vmatprep.subr.mxu0 0.0
    %644 = vmatpush2.msra.mxu0 0.0
    %645 = vmatprep.subr.mxu0 0.0
    %646 = vmatpush2.msra.mxu0 0.0
    %647 = vmatprep.subr.mxu0 0.0
    %648 = vmatpush2.msra.mxu0 0.0
    %649 = vmatprep.subr.mxu0 0.0
    %650 = vmatpush2.msra.mxu0 0.0
    %651 = vmatprep.subr.mxu0 0.0
    %652 = vmatpush2.msra.mxu0 0.0
    %653 = vmatprep.subr.mxu0 0.0
    %654 = vmatpush2.msra.mxu0 0.0
    %655 = vmatprep.subr.mxu0 0.0
    %656 = vmatpush2.msra.mxu0 0.0
    %657 = vmatprep.subr.mxu0 0.0
    %658 = vmatpush2.msra.mxu0 0.0
    %659 = vmatprep.subr.mxu0 0.0
    %660 = vmatpush2.msra.mxu0 0.0
    %661 = vmatprep.subr.mxu0 0.0
    %662 = vmatpush2.msra.mxu0 0.0
    %663 = vmatprep.subr.mxu0 0.0
    %664 = vmatpush2.msra.mxu0 0.0
    %665 = vmatprep.subr.mxu0 0.0
    %666 = vmatpush2.msra.mxu0 0.0
    %667 = vmatprep.subr.mxu0 0.0
    %668 = vmatpush2.msra.mxu0 0.0
    %669 = vmatprep.subr.mxu0 0.0
    %670 = vmatpush2.msra.mxu0 0.0
    %671 = vmatprep.subr.mxu0 0.0
    %672 = vmatpush2.msra.mxu0 0.0
    %673 = vmatprep.mubr.f32.mxu0 0.0
    %674 = vmatmul.mubr.f32.gmra.mxu0 %v607
    %v675 = vpop.f32.mrf.mxu0
    %v676 = vadd.f32 %v231, %v675
    %v677 = vpop.f32.mrf.mxu0
    %678 = vdwg.mxu0
    %v679 = vadd.f32 %v605, %v676
    %v680 = vxor.u32 %v679, 2147483648
    %v681 = vmul.f32 %v680, 1.442695
    %v682 = vpow.pop %v681
    %v683 = vadd.f32 %v682, 1.0
    %v684 = vrcp.pop %v683
    %v685 = vmul.f32 1.0, %v684
    %687 = vrot.lane.b32.xlu0 %v676, 96
    %v688 = vpop.permute.xlu0 %687
    %v690 = vmul.f32 %v685, %v688
    %692 = vrot.lane.b32.xlu0 %v690, 32
    %v693 = vpop.permute.xlu0 %692
    %v695 = vadd.f32 %v605, %v693
    %v696 = vtanh.pop %v695
    %v697 = vsub.f32 1.0, %v685
    %699 = vrot.lane.b32.xlu0 %v696, 112
    %v700 = vpop.permute.xlu0 %699
    %v702 = vmul.f32 %v697, %v700
    %703 = vrot.lane.b32.xlu0 %v602, 16
    %v704 = vpop.permute.xlu0 %703
    %v706 = vmul.f32 %v685, %v704
    %v707 = vadd.f32 %v702, %v706
    %vm708 = vcmp.gt.s32.totalorder %v206, 3
    %vm709 = vmand %vm209, %vm708
    %vm710 = vcmp.gt.s32.totalorder %v206, 4
    %vm711 = vmand %vm210, %vm710
    %vm712 = vmor %vm709, %vm711
    %714 = vrot.lane.b32.xlu0 %v707, 112
    %v715 = vpop.permute.xlu0 %714
    %v717 = vsel %vm712, %v715, 0.0
    %719 = vrot.lane.b32.xlu0 %v717, 24
    %v720 = vpop.permute.xlu0 %719
    %vm722 = vcmask 261312
    %723 = vst.msk [vmem:[#allocation4] sm:$0xff] %vm722, %v720
    %724 = vrot.lane.b32.xlu0 %v717, 88
    %v725 = vpop.permute.xlu0 %724
    %vm727 = vcmask 851712
    %728 = vst.msk [vmem:[#allocation4] sm:$0xff] %vm727, %v725
    %v729 = vsel %vm712, %v715, %v602
    %v730 = vld [vmem:[#allocation2 + $0x20] sm:$0xff]
    %v731 = vld [vmem:[#allocation2 + $0x18] sm:$0xff]
    %v732 = vsel %vm223, %v730, %v731
    %v734 = vsel %vm61, %v729, 0
    %736 = vmatprep.subr.mxu0 0.0
    %737 = vmatpush1.msra.mxu0 0.0
    %738 = vmatprep.subr.mxu0 0.0
    %739 = vmatpush1.msra.mxu0 0.0
    %740 = vmatprep.subr.mxu0 0.0
    %741 = vmatpush1.msra.mxu0 0.0
    %742 = vmatprep.subr.mxu0 0.0
    %743 = vmatpush1.msra.mxu0 0.0
    %744 = vmatprep.subr.mxu0 0.0
    %745 = vmatpush1.msra.mxu0 0.0
    %746 = vmatprep.subr.mxu0 0.0
    %747 = vmatpush1.msra.mxu0 0.0
    %748 = vmatprep.subr.mxu0 0.0
    %749 = vmatpush1.msra.mxu0 0.0
    %750 = vmatprep.subr.mxu0 0.0
    %751 = vmatpush1.msra.mxu0 0.0
    %752 = vmatprep.subr.mxu0 0.0
    %753 = vmatpush1.msra.mxu0 0.0
    %754 = vmatprep.subr.mxu0 0.0
    %755 = vmatpush1.msra.mxu0 0.0
    %756 = vmatprep.subr.mxu0 0.0
    %757 = vmatpush1.msra.mxu0 0.0
    %758 = vmatprep.subr.mxu0 0.0
    %759 = vmatpush1.msra.mxu0 0.0
    %760 = vmatprep.subr.mxu0 0.0
    %761 = vmatpush1.msra.mxu0 0.0
    %762 = vmatprep.subr.mxu0 0.0
    %763 = vmatpush1.msra.mxu0 0.0
    %764 = vmatprep.subr.mxu0 0.0
    %765 = vmatpush1.msra.mxu0 %v201
    %766 = vmatprep.subr.mxu0 0.0
    %767 = vmatpush1.msra.mxu0 %v200
    %768 = vmatprep.subr.mxu0 0.0
    %769 = vmatpush2.msra.mxu0 0.0
    %770 = vmatprep.subr.mxu0 0.0
    %771 = vmatpush2.msra.mxu0 0.0
    %772 = vmatprep.subr.mxu0 0.0
    %773 = vmatpush2.msra.mxu0 0.0
    %774 = vmatprep.subr.mxu0 0.0
    %775 = vmatpush2.msra.mxu0 0.0
    %776 = vmatprep.subr.mxu0 0.0
    %777 = vmatpush2.msra.mxu0 0.0
    %778 = vmatprep.subr.mxu0 0.0
    %779 = vmatpush2.msra.mxu0 0.0
    %780 = vmatprep.subr.mxu0 0.0
    %781 = vmatpush2.msra.mxu0 0.0
    %782 = vmatprep.subr.mxu0 0.0
    %783 = vmatpush2.msra.mxu0 0.0
    %784 = vmatprep.subr.mxu0 0.0
    %785 = vmatpush2.msra.mxu0 0.0
    %786 = vmatprep.subr.mxu0 0.0
    %787 = vmatpush2.msra.mxu0 0.0
    %788 = vmatprep.subr.mxu0 0.0
    %789 = vmatpush2.msra.mxu0 0.0
    %790 = vmatprep.subr.mxu0 0.0
    %791 = vmatpush2.msra.mxu0 0.0
    %792 = vmatprep.subr.mxu0 0.0
    %793 = vmatpush2.msra.mxu0 0.0
    %794 = vmatprep.subr.mxu0 0.0
    %795 = vmatpush2.msra.mxu0 0.0
    %796 = vmatprep.subr.mxu0 0.0
    %797 = vmatpush2.msra.mxu0 0.0
    %798 = vmatprep.subr.mxu0 0.0
    %799 = vmatpush2.msra.mxu0 0.0
    %800 = vmatprep.mubr.f32.mxu0 0.0
    %801 = vmatmul.mubr.f32.gmra.mxu0 %v734
    %v802 = vpop.f32.mrf.mxu0
    %v803 = vadd.f32 %v231, %v802
    %v804 = vpop.f32.mrf.mxu0
    %805 = vdwg.mxu0
    %v806 = vadd.f32 %v732, %v803
    %v807 = vxor.u32 %v806, 2147483648
    %v808 = vmul.f32 %v807, 1.442695
    %v809 = vpow.pop %v808
    %v810 = vadd.f32 %v809, 1.0
    %v811 = vrcp.pop %v810
    %v812 = vmul.f32 1.0, %v811
    %814 = vrot.lane.b32.xlu0 %v803, 96
    %v815 = vpop.permute.xlu0 %814
    %v817 = vmul.f32 %v812, %v815
    %819 = vrot.lane.b32.xlu0 %v817, 32
    %v820 = vpop.permute.xlu0 %819
    %v822 = vadd.f32 %v732, %v820
    %v823 = vtanh.pop %v822
    %v824 = vsub.f32 1.0, %v812
    %826 = vrot.lane.b32.xlu0 %v823, 112
    %v827 = vpop.permute.xlu0 %826
    %v829 = vmul.f32 %v824, %v827
    %830 = vrot.lane.b32.xlu0 %v729, 16
    %v831 = vpop.permute.xlu0 %830
    %v833 = vmul.f32 %v812, %v831
    %v834 = vadd.f32 %v829, %v833
    %vm835 = vmand %vm209, %vm710
    %vm836 = vmand %vm210, %vm708
    %vm837 = vmor %vm835, %vm836
    %839 = vrot.lane.b32.xlu0 %v834, 112
    %v840 = vpop.permute.xlu0 %839
    %v842 = vsel %vm837, %v840, 0.0
    %844 = vrot.lane.b32.xlu0 %v842, 32
    %v845 = vpop.permute.xlu0 %844
    %vm847 = vcmask 326912
    %848 = vst.msk [vmem:[#allocation4] sm:$0xff] %vm847, %v845
    %849 = vrot.lane.b32.xlu0 %v842, 80
    %v850 = vpop.permute.xlu0 %849
    %vm852 = vcmask 786112
    %853 = vst.msk [vmem:[#allocation4] sm:$0xff] %vm852, %v850
    %v854 = vsel %vm837, %v840, %v729
    %v855 = vld [vmem:[#allocation2 + $0x28] sm:$0xff]
    %v856 = vld [vmem:[#allocation2 + $0x10] sm:$0xff]
    %v857 = vsel %vm223, %v855, %v856
    %v859 = vsel %vm61, %v854, 0
    %861 = vmatprep.subr.mxu0 0.0
    %862 = vmatpush1.msra.mxu0 0.0
    %863 = vmatprep.subr.mxu0 0.0
    %864 = vmatpush1.msra.mxu0 0.0
    %865 = vmatprep.subr.mxu0 0.0
    %866 = vmatpush1.msra.mxu0 0.0
    %867 = vmatprep.subr.mxu0 0.0
    %868 = vmatpush1.msra.mxu0 0.0
    %869 = vmatprep.subr.mxu0 0.0
    %870 = vmatpush1.msra.mxu0 0.0
    %871 = vmatprep.subr.mxu0 0.0
    %872 = vmatpush1.msra.mxu0 0.0
    %873 = vmatprep.subr.mxu0 0.0
    %874 = vmatpush1.msra.mxu0 0.0
    %875 = vmatprep.subr.mxu0 0.0
    %876 = vmatpush1.msra.mxu0 0.0
    %877 = vmatprep.subr.mxu0 0.0
    %878 = vmatpush1.msra.mxu0 0.0
    %879 = vmatprep.subr.mxu0 0.0
    %880 = vmatpush1.msra.mxu0 0.0
    %881 = vmatprep.subr.mxu0 0.0
    %882 = vmatpush1.msra.mxu0 0.0
    %883 = vmatprep.subr.mxu0 0.0
    %884 = vmatpush1.msra.mxu0 0.0
    %885 = vmatprep.subr.mxu0 0.0
    %886 = vmatpush1.msra.mxu0 0.0
    %887 = vmatprep.subr.mxu0 0.0
    %888 = vmatpush1.msra.mxu0 0.0
    %889 = vmatprep.subr.mxu0 0.0
    %890 = vmatpush1.msra.mxu0 %v201
    %891 = vmatprep.subr.mxu0 0.0
    %892 = vmatpush1.msra.mxu0 %v200
    %893 = vmatprep.subr.mxu0 0.0
    %894 = vmatpush2.msra.mxu0 0.0
    %895 = vmatprep.subr.mxu0 0.0
    %896 = vmatpush2.msra.mxu0 0.0
    %897 = vmatprep.subr.mxu0 0.0
    %898 = vmatpush2.msra.mxu0 0.0
    %899 = vmatprep.subr.mxu0 0.0
    %900 = vmatpush2.msra.mxu0 0.0
    %901 = vmatprep.subr.mxu0 0.0
    %902 = vmatpush2.msra.mxu0 0.0
    %903 = vmatprep.subr.mxu0 0.0
    %904 = vmatpush2.msra.mxu0 0.0
    %905 = vmatprep.subr.mxu0 0.0
    %906 = vmatpush2.msra.mxu0 0.0
    %907 = vmatprep.subr.mxu0 0.0
    %908 = vmatpush2.msra.mxu0 0.0
    %909 = vmatprep.subr.mxu0 0.0
    %910 = vmatpush2.msra.mxu0 0.0
    %911 = vmatprep.subr.mxu0 0.0
    %912 = vmatpush2.msra.mxu0 0.0
    %913 = vmatprep.subr.mxu0 0.0
    %914 = vmatpush2.msra.mxu0 0.0
    %915 = vmatprep.subr.mxu0 0.0
    %916 = vmatpush2.msra.mxu0 0.0
    %917 = vmatprep.subr.mxu0 0.0
    %918 = vmatpush2.msra.mxu0 0.0
    %919 = vmatprep.subr.mxu0 0.0
    %920 = vmatpush2.msra.mxu0 0.0
    %921 = vmatprep.subr.mxu0 0.0
    %922 = vmatpush2.msra.mxu0 0.0
    %923 = vmatprep.subr.mxu0 0.0
    %924 = vmatpush2.msra.mxu0 0.0
    %925 = vmatprep.mubr.f32.mxu0 0.0
    %926 = vmatmul.mubr.f32.gmra.mxu0 %v859
    %v927 = vpop.f32.mrf.mxu0
    %v928 = vadd.f32 %v231, %v927
    %v929 = vpop.f32.mrf.mxu0
    %930 = vdwg.mxu0
    %v931 = vadd.f32 %v857, %v928
    %v932 = vxor.u32 %v931, 2147483648
    %v933 = vmul.f32 %v932, 1.442695
    %v934 = vpow.pop %v933
    %v935 = vadd.f32 %v934, 1.0
    %v936 = vrcp.pop %v935
    %v937 = vmul.f32 1.0, %v936
    %939 = vrot.lane.b32.xlu0 %v928, 96
    %v940 = vpop.permute.xlu0 %939
    %v942 = vmul.f32 %v937, %v940
    %944 = vrot.lane.b32.xlu0 %v942, 32
    %v945 = vpop.permute.xlu0 %944
    %v947 = vadd.f32 %v857, %v945
    %v948 = vtanh.pop %v947
    %v949 = vsub.f32 1.0, %v937
    %951 = vrot.lane.b32.xlu0 %v948, 112
    %v952 = vpop.permute.xlu0 %951
    %v954 = vmul.f32 %v949, %v952
    %955 = vrot.lane.b32.xlu0 %v854, 16
    %v956 = vpop.permute.xlu0 %955
    %v958 = vmul.f32 %v937, %v956
    %v959 = vadd.f32 %v954, %v958
    %vm960 = vmand %vm209, %vm583
    %vm961 = vmand %vm210, %vm581
    %vm962 = vmor %vm960, %vm961
    %964 = vrot.lane.b32.xlu0 %v959, 112
    %v965 = vpop.permute.xlu0 %964
    %v967 = vsel %vm962, %v965, 0.0
    %969 = vrot.lane.b32.xlu0 %v967, 40
    %v970 = vpop.permute.xlu0 %969
    %vm972 = vcmask 392512
    %973 = vst.msk [vmem:[#allocation4] sm:$0xff] %vm972, %v970
    %974 = vrot.lane.b32.xlu0 %v967, 72
    %v975 = vpop.permute.xlu0 %974
    %vm977 = vcmask 720512
    %978 = vst.msk [vmem:[#allocation4] sm:$0xff] %vm977, %v975
    %v979 = vsel %vm962, %v965, %v854
    %v980 = vld [vmem:[#allocation2 + $0x30] sm:$0xff]
    %v981 = vld [vmem:[#allocation2 + $0x8] sm:$0xff]
    %v982 = vsel %vm223, %v980, %v981
    %v984 = vsel %vm61, %v979, 0
    %986 = vmatprep.subr.mxu0 0.0
    %987 = vmatpush1.msra.mxu0 0.0
    %988 = vmatprep.subr.mxu0 0.0
    %989 = vmatpush1.msra.mxu0 0.0
    %990 = vmatprep.subr.mxu0 0.0
    %991 = vmatpush1.msra.mxu0 0.0
    %992 = vmatprep.subr.mxu0 0.0
    %993 = vmatpush1.msra.mxu0 0.0
    %994 = vmatprep.subr.mxu0 0.0
    %995 = vmatpush1.msra.mxu0 0.0
    %996 = vmatprep.subr.mxu0 0.0
    %997 = vmatpush1.msra.mxu0 0.0
    %998 = vmatprep.subr.mxu0 0.0
    %999 = vmatpush1.msra.mxu0 0.0
    %1000 = vmatprep.subr.mxu0 0.0
    %1001 = vmatpush1.msra.mxu0 0.0
    %1002 = vmatprep.subr.mxu0 0.0
    %1003 = vmatpush1.msra.mxu0 0.0
    %1004 = vmatprep.subr.mxu0 0.0
    %1005 = vmatpush1.msra.mxu0 0.0
    %1006 = vmatprep.subr.mxu0 0.0
    %1007 = vmatpush1.msra.mxu0 0.0
    %1008 = vmatprep.subr.mxu0 0.0
    %1009 = vmatpush1.msra.mxu0 0.0
    %1010 = vmatprep.subr.mxu0 0.0
    %1011 = vmatpush1.msra.mxu0 0.0
    %1012 = vmatprep.subr.mxu0 0.0
    %1013 = vmatpush1.msra.mxu0 0.0
    %1014 = vmatprep.subr.mxu0 0.0
    %1015 = vmatpush1.msra.mxu0 %v201
    %1016 = vmatprep.subr.mxu0 0.0
    %1017 = vmatpush1.msra.mxu0 %v200
    %1018 = vmatprep.subr.mxu0 0.0
    %1019 = vmatpush2.msra.mxu0 0.0
    %1020 = vmatprep.subr.mxu0 0.0
    %1021 = vmatpush2.msra.mxu0 0.0
    %1022 = vmatprep.subr.mxu0 0.0
    %1023 = vmatpush2.msra.mxu0 0.0
    %1024 = vmatprep.subr.mxu0 0.0
    %1025 = vmatpush2.msra.mxu0 0.0
    %1026 = vmatprep.subr.mxu0 0.0
    %1027 = vmatpush2.msra.mxu0 0.0
    %1028 = vmatprep.subr.mxu0 0.0
    %1029 = vmatpush2.msra.mxu0 0.0
    %1030 = vmatprep.subr.mxu0 0.0
    %1031 = vmatpush2.msra.mxu0 0.0
    %1032 = vmatprep.subr.mxu0 0.0
    %1033 = vmatpush2.msra.mxu0 0.0
    %1034 = vmatprep.subr.mxu0 0.0
    %1035 = vmatpush2.msra.mxu0 0.0
    %1036 = vmatprep.subr.mxu0 0.0
    %1037 = vmatpush2.msra.mxu0 0.0
    %1038 = vmatprep.subr.mxu0 0.0
    %1039 = vmatpush2.msra.mxu0 0.0
    %1040 = vmatprep.subr.mxu0 0.0
    %1041 = vmatpush2.msra.mxu0 0.0
    %1042 = vmatprep.subr.mxu0 0.0
    %1043 = vmatpush2.msra.mxu0 0.0
    %1044 = vmatprep.subr.mxu0 0.0
    %1045 = vmatpush2.msra.mxu0 0.0
    %1046 = vmatprep.subr.mxu0 0.0
    %1047 = vmatpush2.msra.mxu0 0.0
    %1048 = vmatprep.subr.mxu0 0.0
    %1049 = vmatpush2.msra.mxu0 0.0
    %1050 = vmatprep.mubr.f32.mxu0 0.0
    %1051 = vmatmul.mubr.f32.gmra.mxu0 %v984
    %v1052 = vpop.f32.mrf.mxu0
    %v1053 = vadd.f32 %v231, %v1052
    %v1054 = vpop.f32.mrf.mxu0
    %1055 = vdwg.mxu0
    %v1056 = vadd.f32 %v982, %v1053
    %v1057 = vxor.u32 %v1056, 2147483648
    %v1058 = vmul.f32 %v1057, 1.442695
    %v1059 = vpow.pop %v1058
    %v1060 = vadd.f32 %v1059, 1.0
    %v1061 = vrcp.pop %v1060
    %v1062 = vmul.f32 1.0, %v1061
    %1064 = vrot.lane.b32.xlu0 %v1053, 96
    %v1065 = vpop.permute.xlu0 %1064
    %v1067 = vmul.f32 %v1062, %v1065
    %1069 = vrot.lane.b32.xlu0 %v1067, 32
    %v1070 = vpop.permute.xlu0 %1069
    %v1072 = vadd.f32 %v982, %v1070
    %v1073 = vtanh.pop %v1072
    %v1074 = vsub.f32 1.0, %v1062
    %1076 = vrot.lane.b32.xlu0 %v1073, 112
    %v1077 = vpop.permute.xlu0 %1076
    %v1079 = vmul.f32 %v1074, %v1077
    %1080 = vrot.lane.b32.xlu0 %v979, 16
    %v1081 = vpop.permute.xlu0 %1080
    %v1083 = vmul.f32 %v1062, %v1081
    %v1084 = vadd.f32 %v1079, %v1083
    %vm1085 = vmand %vm209, %vm456
    %vm1086 = vmand %vm210, %vm454
    %vm1087 = vmor %vm1085, %vm1086
    %1089 = vrot.lane.b32.xlu0 %v1084, 112
    %v1090 = vpop.permute.xlu0 %1089
    %v1092 = vsel %vm1087, %v1090, 0.0
    %1094 = vrot.lane.b32.xlu0 %v1092, 48
    %v1095 = vpop.permute.xlu0 %1094
    %vm1097 = vcmask 458112
    %1098 = vst.msk [vmem:[#allocation4] sm:$0xff] %vm1097, %v1095
    %1099 = vrot.lane.b32.xlu0 %v1092, 64
    %v1100 = vpop.permute.xlu0 %1099
    %vm1102 = vcmask 654912
    %1103 = vst.msk [vmem:[#allocation4] sm:$0xff] %vm1102, %v1100
    %v1104 = vsel %vm1087, %v1090, %v979
    %v1105 = vld [vmem:[#allocation2 + $0x38] sm:$0xff]
    %v1106 = vld [vmem:[#allocation2] sm:$0xff]
    %v1107 = vsel %vm223, %v1105, %v1106
    %v1109 = vsel %vm61, %v1104, 0
    %1111 = vmatprep.subr.mxu0 0.0
    %1112 = vmatpush1.msra.mxu0 0.0
    %1113 = vmatprep.subr.mxu0 0.0
    %1114 = vmatpush1.msra.mxu0 0.0
    %1115 = vmatprep.subr.mxu0 0.0
    %1116 = vmatpush1.msra.mxu0 0.0
    %1117 = vmatprep.subr.mxu0 0.0
    %1118 = vmatpush1.msra.mxu0 0.0
    %1119 = vmatprep.subr.mxu0 0.0
    %1120 = vmatpush1.msra.mxu0 0.0
    %1121 = vmatprep.subr.mxu0 0.0
    %1122 = vmatpush1.msra.mxu0 0.0
    %1123 = vmatprep.subr.mxu0 0.0
    %1124 = vmatpush1.msra.mxu0 0.0
    %1125 = vmatprep.subr.mxu0 0.0
    %1126 = vmatpush1.msra.mxu0 0.0
    %1127 = vmatprep.subr.mxu0 0.0
    %1128 = vmatpush1.msra.mxu0 0.0
    %1129 = vmatprep.subr.mxu0 0.0
    %1130 = vmatpush1.msra.mxu0 0.0
    %1131 = vmatprep.subr.mxu0 0.0
    %1132 = vmatpush1.msra.mxu0 0.0
    %1133 = vmatprep.subr.mxu0 0.0
    %1134 = vmatpush1.msra.mxu0 0.0
    %1135 = vmatprep.subr.mxu0 0.0
    %1136 = vmatpush1.msra.mxu0 0.0
    %1137 = vmatprep.subr.mxu0 0.0
    %1138 = vmatpush1.msra.mxu0 0.0
    %1139 = vmatprep.subr.mxu0 0.0
    %1140 = vmatpush1.msra.mxu0 %v201
    %1141 = vmatprep.subr.mxu0 0.0
    %1142 = vmatpush1.msra.mxu0 %v200
    %1143 = vmatprep.subr.mxu0 0.0
    %1144 = vmatpush2.msra.mxu0 0.0
    %1145 = vmatprep.subr.mxu0 0.0
    %1146 = vmatpush2.msra.mxu0 0.0
    %1147 = vmatprep.subr.mxu0 0.0
    %1148 = vmatpush2.msra.mxu0 0.0
    %1149 = vmatprep.subr.mxu0 0.0
    %1150 = vmatpush2.msra.mxu0 0.0
    %1151 = vmatprep.subr.mxu0 0.0
    %1152 = vmatpush2.msra.mxu0 0.0
    %1153 = vmatprep.subr.mxu0 0.0
    %1154 = vmatpush2.msra.mxu0 0.0
    %1155 = vmatprep.subr.mxu0 0.0
    %1156 = vmatpush2.msra.mxu0 0.0
    %1157 = vmatprep.subr.mxu0 0.0
    %1158 = vmatpush2.msra.mxu0 0.0
    %1159 = vmatprep.subr.mxu0 0.0
    %1160 = vmatpush2.msra.mxu0 0.0
    %1161 = vmatprep.subr.mxu0 0.0
    %1162 = vmatpush2.msra.mxu0 0.0
    %1163 = vmatprep.subr.mxu0 0.0
    %1164 = vmatpush2.msra.mxu0 0.0
    %1165 = vmatprep.subr.mxu0 0.0
    %1166 = vmatpush2.msra.mxu0 0.0
    %1167 = vmatprep.subr.mxu0 0.0
    %1168 = vmatpush2.msra.mxu0 0.0
    %1169 = vmatprep.subr.mxu0 0.0
    %1170 = vmatpush2.msra.mxu0 0.0
    %1171 = vmatprep.subr.mxu0 0.0
    %1172 = vmatpush2.msra.mxu0 0.0
    %1173 = vmatprep.subr.mxu0 0.0
    %1174 = vmatpush2.msra.mxu0 0.0
    %1175 = vmatprep.mubr.f32.mxu0 0.0
    %1176 = vmatmul.mubr.f32.gmra.mxu0 %v1109
    %v1177 = vpop.f32.mrf.mxu0
    %v1178 = vadd.f32 %v231, %v1177
    %v1179 = vpop.f32.mrf.mxu0
    %1180 = vdwg.mxu0
    %v1181 = vadd.f32 %v1107, %v1178
    %v1182 = vxor.u32 %v1181, 2147483648
    %v1183 = vmul.f32 %v1182, 1.442695
    %v1184 = vpow.pop %v1183
    %v1185 = vadd.f32 %v1184, 1.0
    %v1186 = vrcp.pop %v1185
    %v1187 = vmul.f32 1.0, %v1186
    %1189 = vrot.lane.b32.xlu0 %v1178, 96
    %v1190 = vpop.permute.xlu0 %1189
    %v1192 = vmul.f32 %v1187, %v1190
    %1194 = vrot.lane.b32.xlu0 %v1192, 32
    %v1195 = vpop.permute.xlu0 %1194
    %v1197 = vadd.f32 %v1107, %v1195
    %v1198 = vtanh.pop %v1197
    %v1199 = vsub.f32 1.0, %v1187
    %1201 = vrot.lane.b32.xlu0 %v1198, 112
    %v1202 = vpop.permute.xlu0 %1201
    %v1204 = vmul.f32 %v1199, %v1202
    %1205 = vrot.lane.b32.xlu0 %v1104, 16
    %v1206 = vpop.permute.xlu0 %1205
    %v1208 = vmul.f32 %v1187, %v1206
    %v1209 = vadd.f32 %v1204, %v1208
    %vm1210 = vmand %vm209, %vm334
    %vm1211 = vmand %vm210, %vm332
    %vm1212 = vmor %vm1210, %vm1211
    %1214 = vrot.lane.b32.xlu0 %v1209, 112
    %v1215 = vpop.permute.xlu0 %1214
    %v1217 = vsel %vm1212, %v1215, 0.0
    %1219 = vrot.lane.b32.xlu0 %v1217, 56
    %v1220 = vpop.permute.xlu0 %1219
    %vm1222 = vcmask 523712
    %1223 = vst.msk [vmem:[#allocation4] sm:$0xff] %vm1222, %v1220
    %vm1224 = vcmask 589312
    %1225 = vst.msk [vmem:[#allocation4] sm:$0xff] %vm1224, %v1220
    %v1226 = vld [vmem:[#allocation4] sm:$0xff]
    %v1227 = vld [vmem:[%s6] sm:$0xff]
    %v1228 = vld [vmem:[%s6 + $0x8] sm:$0xff]
    %v1229 = vld [vmem:[%s6 + $0x10] sm:$0xff]
    %v1230 = vld [vmem:[%s6 + $0x18] sm:$0xff]
    %v1231 = vld [vmem:[%s6 + $0x20] sm:$0xff]
    %v1232 = vld [vmem:[%s6 + $0x28] sm:$0xff]
    %v1233 = vld [vmem:[%s6 + $0x30] sm:$0xff]
    %v1234 = vld [vmem:[%s6 + $0x38] sm:$0xff]
    %v1235 = vld [vmem:[%s6 + $0x40] sm:$0xff]
    %v1236 = vld [vmem:[%s6 + $0x48] sm:$0xff]
    %v1237 = vld [vmem:[%s6 + $0x50] sm:$0xff]
    %v1238 = vld [vmem:[%s6 + $0x58] sm:$0xff]
    %v1239 = vld [vmem:[%s6 + $0x60] sm:$0xff]
    %v1240 = vld [vmem:[%s6 + $0x68] sm:$0xff]
    %v1241 = vld [vmem:[%s6 + $0x70] sm:$0xff]
    %v1242 = vld [vmem:[%s6 + $0x78] sm:$0xff]
    %v1243 = vld [vmem:[%s7] sm:$0x1]
    %v1245 = vlaneseq
    %v1246 = vshrl.u32 %v1245, 7
    %v1247 = vsub.s32 0, %v1246
    %v1248 = vrot.slane %v1243, %v1247
    %1250 = vmatprep.subr.mxu0 0.0
    %1251 = vmatpush1.msra.mxu0 %v1242
    %1252 = vmatprep.subr.mxu0 0.0
    %1253 = vmatpush1.msra.mxu0 %v1241
    %1254 = vmatprep.subr.mxu0 0.0
    %1255 = vmatpush1.msra.mxu0 %v1240
    %1256 = vmatprep.subr.mxu0 0.0
    %1257 = vmatpush1.msra.mxu0 %v1239
    %1258 = vmatprep.subr.mxu0 0.0
    %1259 = vmatpush1.msra.mxu0 %v1238
    %1260 = vmatprep.subr.mxu0 0.0
    %1261 = vmatpush1.msra.mxu0 %v1237
    %1262 = vmatprep.subr.mxu0 0.0
    %1263 = vmatpush1.msra.mxu0 %v1236
    %1264 = vmatprep.subr.mxu0 0.0
    %1265 = vmatpush1.msra.mxu0 %v1235
    %1266 = vmatprep.subr.mxu0 0.0
    %1267 = vmatpush1.msra.mxu0 %v1234
    %1268 = vmatprep.subr.mxu0 0.0
    %1269 = vmatpush1.msra.mxu0 %v1233
    %1270 = vmatprep.subr.mxu0 0.0
    %1271 = vmatpush1.msra.mxu0 %v1232
    %1272 = vmatprep.subr.mxu0 0.0
    %1273 = vmatpush1.msra.mxu0 %v1231
    %1274 = vmatprep.subr.mxu0 0.0
    %1275 = vmatpush1.msra.mxu0 %v1230
    %1276 = vmatprep.subr.mxu0 0.0
    %1277 = vmatpush1.msra.mxu0 %v1229
    %1278 = vmatprep.subr.mxu0 0.0
    %1279 = vmatpush1.msra.mxu0 %v1228
    %1280 = vmatprep.subr.mxu0 0.0
    %1281 = vmatpush1.msra.mxu0 %v1227
    %1282 = vmatprep.subr.mxu0 0.0
    %1283 = vmatpush2.msra.mxu0 0.0
    %1284 = vmatprep.subr.mxu0 0.0
    %1285 = vmatpush2.msra.mxu0 0.0
    %1286 = vmatprep.subr.mxu0 0.0
    %1287 = vmatpush2.msra.mxu0 0.0
    %1288 = vmatprep.subr.mxu0 0.0
    %1289 = vmatpush2.msra.mxu0 0.0
    %1290 = vmatprep.subr.mxu0 0.0
    %1291 = vmatpush2.msra.mxu0 0.0
    %1292 = vmatprep.subr.mxu0 0.0
    %1293 = vmatpush2.msra.mxu0 0.0
    %1294 = vmatprep.subr.mxu0 0.0
    %1295 = vmatpush2.msra.mxu0 0.0
    %1296 = vmatprep.subr.mxu0 0.0
    %1297 = vmatpush2.msra.mxu0 0.0
    %1298 = vmatprep.subr.mxu0 0.0
    %1299 = vmatpush2.msra.mxu0 0.0
    %1300 = vmatprep.subr.mxu0 0.0
    %1301 = vmatpush2.msra.mxu0 0.0
    %1302 = vmatprep.subr.mxu0 0.0
    %1303 = vmatpush2.msra.mxu0 0.0
    %1304 = vmatprep.subr.mxu0 0.0
    %1305 = vmatpush2.msra.mxu0 0.0
    %1306 = vmatprep.subr.mxu0 0.0
    %1307 = vmatpush2.msra.mxu0 0.0
    %1308 = vmatprep.subr.mxu0 0.0
    %1309 = vmatpush2.msra.mxu0 0.0
    %1310 = vmatprep.subr.mxu0 0.0
    %1311 = vmatpush2.msra.mxu0 0.0
    %1312 = vmatprep.subr.mxu0 0.0
    %1313 = vmatpush2.msra.mxu0 0.0
    %1314 = vmatprep.mubr.f32.mxu0 0.0
    %1315 = vmatmul.mubr.f32.gmra.mxu0 %v1226
    %v1316 = vpop.f32.mrf.mxu0
    %v1317 = vadd.f32 %v1248, %v1316
    %v1318 = vpop.f32.mrf.mxu0
    %1319 = vdwg.mxu0
    %vm1320 = vcmask 785408
    %1321 = vst.msk [vmem:[#allocation3] sm:$0xff] %vm1320, %v1317
    %v1322 = vld [vmem:[%s8] sm:$0xff]
    %v1323 = vld [vmem:[%s8 + $0x8] sm:$0xff]
    %v1324 = vld [vmem:[%s8 + $0x10] sm:$0xff]
    %v1325 = vld [vmem:[%s8 + $0x18] sm:$0xff]
    %v1326 = vld [vmem:[%s9] sm:$0x1]
    %vm1327 = vcmp.lt.s32.totalorder %v208, 0
    %v1328 = vsub.s32 0, %v208
    %v1329 = vsel %vm1327, %v1328, %v208
    %v1330 = vshrl.u32 %v1329, 5
    %v1331 = vand.u32 %v1329, 31
    %v1332 = vsub.s32 0, %v1331
    %v1333 = vsel %vm1327, %v1332, %v1331
    %vm1334 = vcmp.ne.s32.totalorder %v1333, 0
    %vm1335 = vcmp.lt.s32.totalorder %v1333, 0
    %vm1336 = vmand %vm1335, %vm1334
    %v1337 = vadd.s32 %v1333, 32
    %v1338 = vsel %vm1336, %v1337, %v1333
    %vm1339 = vcmp.lt.s32.totalorder %v1338, 16
    %v1340 = vld [vmem:[#allocation3] sm:$0x3]
    %v1341 = vld [vmem:[#allocation3 + $0x6] sm:$0x3]
    %v1342 = vsel %vm1339, %v1340, %v1341
    %v1344 = vlaneseq
    %v1345 = vshrl.u32 %v1344, 7
    %v1346 = vsub.s32 0, %v1345
    %v1347 = vrot.slane %v1326, %v1346
    %vm1349 = vcmask 261120
    %v1350 = vsel %vm1349, 0.0, 0
    %1352 = vmatprep.subr.mxu0 0.0
    %1353 = vmatpush1.msra.mxu0 0.0
    %1354 = vmatprep.subr.mxu0 0.0
    %1355 = vmatpush1.msra.mxu0 0.0
    %1356 = vmatprep.subr.mxu0 0.0
    %1357 = vmatpush1.msra.mxu0 0.0
    %1358 = vmatprep.subr.mxu0 0.0
    %1359 = vmatpush1.msra.mxu0 0.0
    %1360 = vmatprep.subr.mxu0 0.0
    %1361 = vmatpush1.msra.mxu0 0.0
    %1362 = vmatprep.subr.mxu0 0.0
    %1363 = vmatpush1.msra.mxu0 0.0
    %1364 = vmatprep.subr.mxu0 0.0
    %1365 = vmatpush1.msra.mxu0 0.0
    %1366 = vmatprep.subr.mxu0 0.0
    %1367 = vmatpush1.msra.mxu0 0.0
    %1368 = vmatprep.subr.mxu0 0.0
    %1369 = vmatpush1.msra.mxu0 0.0
    %1370 = vmatprep.subr.mxu0 0.0
    %1371 = vmatpush1.msra.mxu0 0.0
    %1372 = vmatprep.subr.mxu0 0.0
    %1373 = vmatpush1.msra.mxu0 0.0
    %1374 = vmatprep.subr.mxu0 0.0
    %1375 = vmatpush1.msra.mxu0 0.0
    %1376 = vmatprep.subr.mxu0 0.0
    %1377 = vmatpush1.msra.mxu0 %v1325
    %1378 = vmatprep.subr.mxu0 0.0
    %1379 = vmatpush1.msra.mxu0 %v1324
    %1380 = vmatprep.subr.mxu0 0.0
    %1381 = vmatpush1.msra.mxu0 %v1323
    %1382 = vmatprep.subr.mxu0 0.0
    %1383 = vmatpush1.msra.mxu0 %v1322
    %1384 = vmatprep.subr.mxu0 0.0
    %1385 = vmatpush2.msra.mxu0 0.0
    %1386 = vmatprep.subr.mxu0 0.0
    %1387 = vmatpush2.msra.mxu0 0.0
    %1388 = vmatprep.subr.mxu0 0.0
    %1389 = vmatpush2.msra.mxu0 0.0
    %1390 = vmatprep.subr.mxu0 0.0
    %1391 = vmatpush2.msra.mxu0 0.0
    %1392 = vmatprep.subr.mxu0 0.0
    %1393 = vmatpush2.msra.mxu0 0.0
    %1394 = vmatprep.subr.mxu0 0.0
    %1395 = vmatpush2.msra.mxu0 0.0
    %1396 = vmatprep.subr.mxu0 0.0
    %1397 = vmatpush2.msra.mxu0 0.0
    %1398 = vmatprep.subr.mxu0 0.0
    %1399 = vmatpush2.msra.mxu0 0.0
    %1400 = vmatprep.subr.mxu0 0.0
    %1401 = vmatpush2.msra.mxu0 0.0
    %1402 = vmatprep.subr.mxu0 0.0
    %1403 = vmatpush2.msra.mxu0 0.0
    %1404 = vmatprep.subr.mxu0 0.0
    %1405 = vmatpush2.msra.mxu0 0.0
    %1406 = vmatprep.subr.mxu0 0.0
    %1407 = vmatpush2.msra.mxu0 0.0
    %1408 = vmatprep.subr.mxu0 0.0
    %1409 = vmatpush2.msra.mxu0 0.0
    %1410 = vmatprep.subr.mxu0 0.0
    %1411 = vmatpush2.msra.mxu0 0.0
    %1412 = vmatprep.subr.mxu0 0.0
    %1413 = vmatpush2.msra.mxu0 0.0
    %1414 = vmatprep.subr.mxu0 0.0
    %1415 = vmatpush2.msra.mxu0 0.0
    %1416 = vmatprep.mubr.f32.mxu0 0.0
    %1417 = vmatmul.mubr.f32.gmra.mxu0 %v1350
    %v1418 = vpop.f32.mrf.mxu0
    %v1419 = vadd.f32 %v1347, %v1418
    %v1420 = vpop.f32.mrf.mxu0
    %1421 = vdwg.mxu0
    %v1422 = vadd.f32 %v1342, %v1419
    %v1423 = vxor.u32 %v1422, 2147483648
    %v1424 = vmul.f32 %v1423, 1.442695
    %v1425 = vpow.pop %v1424
    %v1426 = vadd.f32 %v1425, 1.0
    %v1427 = vrcp.pop %v1426
    %v1428 = vmul.f32 1.0, %v1427
    %1430 = vrot.lane.b32.xlu0 %v1419, 64
    %v1431 = vpop.permute.xlu0 %1430
    %v1433 = vmul.f32 %v1428, %v1431
    %1435 = vrot.lane.b32.xlu0 %v1433, 64
    %v1436 = vpop.permute.xlu0 %1435
    %v1438 = vadd.f32 %v1342, %v1436
    %v1439 = vtanh.pop %v1438
    %v1440 = vsub.f32 1.0, %v1428
    %1442 = vrot.lane.b32.xlu0 %v1439, 96
    %v1443 = vpop.permute.xlu0 %1442
    %v1445 = vmul.f32 %v1440, %v1443
    %v1446 = vmul.f32 %v1428, 0.0
    %v1447 = vadd.f32 %v1445, %v1446
    %1449 = vrot.lane.b32.xlu0 %v1447, 96
    %v1450 = vpop.permute.xlu0 %1449
    %vm1452 = vcmask 123904
    %1453 = vst.msk [vmem:[#allocation5] sm:$0x3] %vm1452, %v1450
    %vm1454 = vcmask 255104
    %1455 = vst.msk [vmem:[#allocation5 + $0x6] sm:$0x3] %vm1454, %v1450
    %v1456 = vld [vmem:[#allocation3 + $0x2] sm:$0x3]
    %v1457 = vld [vmem:[#allocation3 + $0x4] sm:$0x3]
    %v1458 = vsel %vm1339, %v1456, %v1457
    %v1459 = vsel %vm1349, %v1450, 0
    %1461 = vmatprep.subr.mxu0 0.0
    %1462 = vmatpush1.msra.mxu0 0.0
    %1463 = vmatprep.subr.mxu0 0.0
    %1464 = vmatpush1.msra.mxu0 0.0
    %1465 = vmatprep.subr.mxu0 0.0
    %1466 = vmatpush1.msra.mxu0 0.0
    %1467 = vmatprep.subr.mxu0 0.0
    %1468 = vmatpush1.msra.mxu0 0.0
    %1469 = vmatprep.subr.mxu0 0.0
    %1470 = vmatpush1.msra.mxu0 0.0
    %1471 = vmatprep.subr.mxu0 0.0
    %1472 = vmatpush1.msra.mxu0 0.0
    %1473 = vmatprep.subr.mxu0 0.0
    %1474 = vmatpush1.msra.mxu0 0.0
    %1475 = vmatprep.subr.mxu0 0.0
    %1476 = vmatpush1.msra.mxu0 0.0
    %1477 = vmatprep.subr.mxu0 0.0
    %1478 = vmatpush1.msra.mxu0 0.0
    %1479 = vmatprep.subr.mxu0 0.0
    %1480 = vmatpush1.msra.mxu0 0.0
    %1481 = vmatprep.subr.mxu0 0.0
    %1482 = vmatpush1.msra.mxu0 0.0
    %1483 = vmatprep.subr.mxu0 0.0
    %1484 = vmatpush1.msra.mxu0 0.0
    %1485 = vmatprep.subr.mxu0 0.0
    %1486 = vmatpush1.msra.mxu0 %v1325
    %1487 = vmatprep.subr.mxu0 0.0
    %1488 = vmatpush1.msra.mxu0 %v1324
    %1489 = vmatprep.subr.mxu0 0.0
    %1490 = vmatpush1.msra.mxu0 %v1323
    %1491 = vmatprep.subr.mxu0 0.0
    %1492 = vmatpush1.msra.mxu0 %v1322
    %1493 = vmatprep.subr.mxu0 0.0
    %1494 = vmatpush2.msra.mxu0 0.0
    %1495 = vmatprep.subr.mxu0 0.0
    %1496 = vmatpush2.msra.mxu0 0.0
    %1497 = vmatprep.subr.mxu0 0.0
    %1498 = vmatpush2.msra.mxu0 0.0
    %1499 = vmatprep.subr.mxu0 0.0
    %1500 = vmatpush2.msra.mxu0 0.0
    %1501 = vmatprep.subr.mxu0 0.0
    %1502 = vmatpush2.msra.mxu0 0.0
    %1503 = vmatprep.subr.mxu0 0.0
    %1504 = vmatpush2.msra.mxu0 0.0
    %1505 = vmatprep.subr.mxu0 0.0
    %1506 = vmatpush2.msra.mxu0 0.0
    %1507 = vmatprep.subr.mxu0 0.0
    %1508 = vmatpush2.msra.mxu0 0.0
    %1509 = vmatprep.subr.mxu0 0.0
    %1510 = vmatpush2.msra.mxu0 0.0
    %1511 = vmatprep.subr.mxu0 0.0
    %1512 = vmatpush2.msra.mxu0 0.0
    %1513 = vmatprep.subr.mxu0 0.0
    %1514 = vmatpush2.msra.mxu0 0.0
    %1515 = vmatprep.subr.mxu0 0.0
    %1516 = vmatpush2.msra.mxu0 0.0
    %1517 = vmatprep.subr.mxu0 0.0
    %1518 = vmatpush2.msra.mxu0 0.0
    %1519 = vmatprep.subr.mxu0 0.0
    %1520 = vmatpush2.msra.mxu0 0.0
    %1521 = vmatprep.subr.mxu0 0.0
    %1522 = vmatpush2.msra.mxu0 0.0
    %1523 = vmatprep.subr.mxu0 0.0
    %1524 = vmatpush2.msra.mxu0 0.0
    %1525 = vmatprep.mubr.f32.mxu0 0.0
    %1526 = vmatmul.mubr.f32.gmra.mxu0 %v1459
    %v1527 = vpop.f32.mrf.mxu0
    %v1528 = vadd.f32 %v1347, %v1527
    %v1529 = vpop.f32.mrf.mxu0
    %1530 = vdwg.mxu0
    %v1531 = vadd.f32 %v1458, %v1528
    %v1532 = vxor.u32 %v1531, 2147483648
    %v1533 = vmul.f32 %v1532, 1.442695
    %v1534 = vpow.pop %v1533
    %v1535 = vadd.f32 %v1534, 1.0
    %v1536 = vrcp.pop %v1535
    %v1537 = vmul.f32 1.0, %v1536
    %1539 = vrot.lane.b32.xlu0 %v1528, 64
    %v1540 = vpop.permute.xlu0 %1539
    %v1542 = vmul.f32 %v1537, %v1540
    %1544 = vrot.lane.b32.xlu0 %v1542, 64
    %v1545 = vpop.permute.xlu0 %1544
    %v1547 = vadd.f32 %v1458, %v1545
    %v1548 = vtanh.pop %v1547
    %v1549 = vsub.f32 1.0, %v1537
    %1551 = vrot.lane.b32.xlu0 %v1548, 96
    %v1552 = vpop.permute.xlu0 %1551
    %v1554 = vmul.f32 %v1549, %v1552
    %v1555 = vmul.f32 %v1537, %v1447
    %v1556 = vadd.f32 %v1554, %v1555
    %1558 = vrot.lane.b32.xlu0 %v1556, 96
    %v1559 = vpop.permute.xlu0 %1558
    %1561 = vst.msk [vmem:[#allocation5 + $0x2] sm:$0x3] %vm1452, %v1559
    %1562 = vst.msk [vmem:[#allocation5 + $0x4] sm:$0x3] %vm1454, %v1559
    %v1563 = vld [vmem:[#allocation3 + $0x4] sm:$0x3]
    %v1564 = vld [vmem:[#allocation3 + $0x2] sm:$0x3]
    %v1565 = vsel %vm1339, %v1563, %v1564
    %v1566 = vsel %vm1349, %v1559, 0
    %1568 = vmatprep.subr.mxu0 0.0
    %1569 = vmatpush1.msra.mxu0 0.0
    %1570 = vmatprep.subr.mxu0 0.0
    %1571 = vmatpush1.msra.mxu0 0.0
    %1572 = vmatprep.subr.mxu0 0.0
    %1573 = vmatpush1.msra.mxu0 0.0
    %1574 = vmatprep.subr.mxu0 0.0
    %1575 = vmatpush1.msra.mxu0 0.0
    %1576 = vmatprep.subr.mxu0 0.0
    %1577 = vmatpush1.msra.mxu0 0.0
    %1578 = vmatprep.subr.mxu0 0.0
    %1579 = vmatpush1.msra.mxu0 0.0
    %1580 = vmatprep.subr.mxu0 0.0
    %1581 = vmatpush1.msra.mxu0 0.0
    %1582 = vmatprep.subr.mxu0 0.0
    %1583 = vmatpush1.msra.mxu0 0.0
    %1584 = vmatprep.subr.mxu0 0.0
    %1585 = vmatpush1.msra.mxu0 0.0
    %1586 = vmatprep.subr.mxu0 0.0
    %1587 = vmatpush1.msra.mxu0 0.0
    %1588 = vmatprep.subr.mxu0 0.0
    %1589 = vmatpush1.msra.mxu0 0.0
    %1590 = vmatprep.subr.mxu0 0.0
    %1591 = vmatpush1.msra.mxu0 0.0
    %1592 = vmatprep.subr.mxu0 0.0
    %1593 = vmatpush1.msra.mxu0 %v1325
    %1594 = vmatprep.subr.mxu0 0.0
    %1595 = vmatpush1.msra.mxu0 %v1324
    %1596 = vmatprep.subr.mxu0 0.0
    %1597 = vmatpush1.msra.mxu0 %v1323
    %1598 = vmatprep.subr.mxu0 0.0
    %1599 = vmatpush1.msra.mxu0 %v1322
    %1600 = vmatprep.subr.mxu0 0.0
    %1601 = vmatpush2.msra.mxu0 0.0
    %1602 = vmatprep.subr.mxu0 0.0
    %1603 = vmatpush2.msra.mxu0 0.0
    %1604 = vmatprep.subr.mxu0 0.0
    %1605 = vmatpush2.msra.mxu0 0.0
    %1606 = vmatprep.subr.mxu0 0.0
    %1607 = vmatpush2.msra.mxu0 0.0
    %1608 = vmatprep.subr.mxu0 0.0
    %1609 = vmatpush2.msra.mxu0 0.0
    %1610 = vmatprep.subr.mxu0 0.0
    %1611 = vmatpush2.msra.mxu0 0.0
    %1612 = vmatprep.subr.mxu0 0.0
    %1613 = vmatpush2.msra.mxu0 0.0
    %1614 = vmatprep.subr.mxu0 0.0
    %1615 = vmatpush2.msra.mxu0 0.0
    %1616 = vmatprep.subr.mxu0 0.0
    %1617 = vmatpush2.msra.mxu0 0.0
    %1618 = vmatprep.subr.mxu0 0.0
    %1619 = vmatpush2.msra.mxu0 0.0
    %1620 = vmatprep.subr.mxu0 0.0
    %1621 = vmatpush2.msra.mxu0 0.0
    %1622 = vmatprep.subr.mxu0 0.0
    %1623 = vmatpush2.msra.mxu0 0.0
    %1624 = vmatprep.subr.mxu0 0.0
    %1625 = vmatpush2.msra.mxu0 0.0
    %1626 = vmatprep.subr.mxu0 0.0
    %1627 = vmatpush2.msra.mxu0 0.0
    %1628 = vmatprep.subr.mxu0 0.0
    %1629 = vmatpush2.msra.mxu0 0.0
    %1630 = vmatprep.subr.mxu0 0.0
    %1631 = vmatpush2.msra.mxu0 0.0
    %1632 = vmatprep.mubr.f32.mxu0 0.0
    %1633 = vmatmul.mubr.f32.gmra.mxu0 %v1566
    %v1634 = vpop.f32.mrf.mxu0
    %v1635 = vadd.f32 %v1347, %v1634
    %v1636 = vpop.f32.mrf.mxu0
    %1637 = vdwg.mxu0
    %v1638 = vadd.f32 %v1565, %v1635
    %v1639 = vxor.u32 %v1638, 2147483648
    %v1640 = vmul.f32 %v1639, 1.442695
    %v1641 = vpow.pop %v1640
    %v1642 = vadd.f32 %v1641, 1.0
    %v1643 = vrcp.pop %v1642
    %v1644 = vmul.f32 1.0, %v1643
    %1646 = vrot.lane.b32.xlu0 %v1635, 64
    %v1647 = vpop.permute.xlu0 %1646
    %v1649 = vmul.f32 %v1644, %v1647
    %1651 = vrot.lane.b32.xlu0 %v1649, 64
    %v1652 = vpop.permute.xlu0 %1651
    %v1654 = vadd.f32 %v1565, %v1652
    %v1655 = vtanh.pop %v1654
    %v1656 = vsub.f32 1.0, %v1644
    %1658 = vrot.lane.b32.xlu0 %v1655, 96
    %v1659 = vpop.permute.xlu0 %1658
    %v1661 = vmul.f32 %v1656, %v1659
    %v1662 = vmul.f32 %v1644, %v1556
    %v1663 = vadd.f32 %v1661, %v1662
    %1665 = vrot.lane.b32.xlu0 %v1663, 96
    %v1666 = vpop.permute.xlu0 %1665
    %1668 = vst.msk [vmem:[#allocation5 + $0x4] sm:$0x3] %vm1452, %v1666
    %1669 = vst.msk [vmem:[#allocation5 + $0x2] sm:$0x3] %vm1454, %v1666
    %v1670 = vld [vmem:[#allocation3 + $0x6] sm:$0x3]
    %v1671 = vld [vmem:[#allocation3] sm:$0x3]
    %v1672 = vsel %vm1339, %v1670, %v1671
    %v1673 = vsel %vm1349, %v1666, 0
    %1675 = vmatprep.subr.mxu0 0.0
    %1676 = vmatpush1.msra.mxu0 0.0
    %1677 = vmatprep.subr.mxu0 0.0
    %1678 = vmatpush1.msra.mxu0 0.0
    %1679 = vmatprep.subr.mxu0 0.0
    %1680 = vmatpush1.msra.mxu0 0.0
    %1681 = vmatprep.subr.mxu0 0.0
    %1682 = vmatpush1.msra.mxu0 0.0
    %1683 = vmatprep.subr.mxu0 0.0
    %1684 = vmatpush1.msra.mxu0 0.0
    %1685 = vmatprep.subr.mxu0 0.0
    %1686 = vmatpush1.msra.mxu0 0.0
    %1687 = vmatprep.subr.mxu0 0.0
    %1688 = vmatpush1.msra.mxu0 0.0
    %1689 = vmatprep.subr.mxu0 0.0
    %1690 = vmatpush1.msra.mxu0 0.0
    %1691 = vmatprep.subr.mxu0 0.0
    %1692 = vmatpush1.msra.mxu0 0.0
    %1693 = vmatprep.subr.mxu0 0.0
    %1694 = vmatpush1.msra.mxu0 0.0
    %1695 = vmatprep.subr.mxu0 0.0
    %1696 = vmatpush1.msra.mxu0 0.0
    %1697 = vmatprep.subr.mxu0 0.0
    %1698 = vmatpush1.msra.mxu0 0.0
    %1699 = vmatprep.subr.mxu0 0.0
    %1700 = vmatpush1.msra.mxu0 %v1325
    %1701 = vmatprep.subr.mxu0 0.0
    %1702 = vmatpush1.msra.mxu0 %v1324
    %1703 = vmatprep.subr.mxu0 0.0
    %1704 = vmatpush1.msra.mxu0 %v1323
    %1705 = vmatprep.subr.mxu0 0.0
    %1706 = vmatpush1.msra.mxu0 %v1322
    %1707 = vmatprep.subr.mxu0 0.0
    %1708 = vmatpush2.msra.mxu0 0.0
    %1709 = vmatprep.subr.mxu0 0.0
    %1710 = vmatpush2.msra.mxu0 0.0
    %1711 = vmatprep.subr.mxu0 0.0
    %1712 = vmatpush2.msra.mxu0 0.0
    %1713 = vmatprep.subr.mxu0 0.0
    %1714 = vmatpush2.msra.mxu0 0.0
    %1715 = vmatprep.subr.mxu0 0.0
    %1716 = vmatpush2.msra.mxu0 0.0
    %1717 = vmatprep.subr.mxu0 0.0
    %1718 = vmatpush2.msra.mxu0 0.0
    %1719 = vmatprep.subr.mxu0 0.0
    %1720 = vmatpush2.msra.mxu0 0.0
    %1721 = vmatprep.subr.mxu0 0.0
    %1722 = vmatpush2.msra.mxu0 0.0
    %1723 = vmatprep.subr.mxu0 0.0
    %1724 = vmatpush2.msra.mxu0 0.0
    %1725 = vmatprep.subr.mxu0 0.0
    %1726 = vmatpush2.msra.mxu0 0.0
    %1727 = vmatprep.subr.mxu0 0.0
    %1728 = vmatpush2.msra.mxu0 0.0
    %1729 = vmatprep.subr.mxu0 0.0
    %1730 = vmatpush2.msra.mxu0 0.0
    %1731 = vmatprep.subr.mxu0 0.0
    %1732 = vmatpush2.msra.mxu0 0.0
    %1733 = vmatprep.subr.mxu0 0.0
    %1734 = vmatpush2.msra.mxu0 0.0
    %1735 = vmatprep.subr.mxu0 0.0
    %1736 = vmatpush2.msra.mxu0 0.0
    %1737 = vmatprep.subr.mxu0 0.0
    %1738 = vmatpush2.msra.mxu0 0.0
    %1739 = vmatprep.mubr.f32.mxu0 0.0
    %1740 = vmatmul.mubr.f32.gmra.mxu0 %v1673
    %v1741 = vpop.f32.mrf.mxu0
    %v1742 = vadd.f32 %v1347, %v1741
    %v1743 = vpop.f32.mrf.mxu0
    %1744 = vdwg.mxu0
    %v1745 = vadd.f32 %v1672, %v1742
    %v1746 = vxor.u32 %v1745, 2147483648
    %v1747 = vmul.f32 %v1746, 1.442695
    %v1748 = vpow.pop %v1747
    %v1749 = vadd.f32 %v1748, 1.0
    %v1750 = vrcp.pop %v1749
    %v1751 = vmul.f32 1.0, %v1750
    %1753 = vrot.lane.b32.xlu0 %v1742, 64
    %v1754 = vpop.permute.xlu0 %1753
    %v1756 = vmul.f32 %v1751, %v1754
    %1758 = vrot.lane.b32.xlu0 %v1756, 64
    %v1759 = vpop.permute.xlu0 %1758
    %v1761 = vadd.f32 %v1672, %v1759
    %v1762 = vtanh.pop %v1761
    %v1763 = vsub.f32 1.0, %v1751
    %1765 = vrot.lane.b32.xlu0 %v1762, 96
    %v1766 = vpop.permute.xlu0 %1765
    %v1768 = vmul.f32 %v1763, %v1766
    %v1769 = vmul.f32 %v1751, %v1663
    %v1770 = vadd.f32 %v1768, %v1769
    %1772 = vrot.lane.b32.xlu0 %v1770, 96
    %v1773 = vpop.permute.xlu0 %1772
    %1775 = vst.msk [vmem:[#allocation5 + $0x6] sm:$0x3] %vm1452, %v1773
    %1776 = vst.msk [vmem:[#allocation5] sm:$0x3] %vm1454, %v1773
    %v1777 = vld [vmem:[#allocation5] sm:$0xff]
    %v1778 = vld [vmem:[%s10] sm:$0x1]
    %v1780 = vlaneseq
    %v1781 = vshrl.u32 %v1780, 7
    %v1782 = vsub.s32 0, %v1781
    %v1783 = vrot.slane %v1778, %v1782
    %v1785 = vmul.f32 %v1777, %v1783
    %v1786 = vsel %vm1349, %v1785, 0.0
    %1787 = vadd.xlane.f32.xlu0 %v1786
    %v1788 = vpop.xlane.xlu0 %1787
    %v1789 = vld [vmem:[#allocation6] sm:$0x1]
    %v1791 = vlaneseq
    %v1792 = vshrl.u32 %v1791, 7
    %v1793 = vsub.s32 0, %v1792
    %v1794 = vrot.slane %v1789, %v1793
    %v1796 = vadd.f32 %v1788, %v1794
    %v1797 = vxor.u32 %v1796, 2147483648
    %v1798 = vmul.f32 %v1797, 1.442695
    %v1799 = vpow.pop %v1798
    %v1800 = vadd.f32 %v1799, 1.0
    %v1801 = vrcp.pop %v1800
    %v1802 = vmul.f32 1.0, %v1801
    %vm1803 = vcmask 1024
    %1804 = vst.msk [vmem:[#allocation7] sm:$0x3] %vm1803, %v1802
    %1806 = vrot.lane.b32.xlu0 %v1802, 1
    %v1807 = vpop.permute.xlu0 %1806
    %vm1809 = vcmask 11274
    %1810 = vst.msk [vmem:[#allocation7 - $0x2] sm:$0xc] %vm1809, %v1807
    %1811 = vrot.lane.b32.xlu0 %v1802, 2
    %v1812 = vpop.permute.xlu0 %1811
    %vm1814 = vcmask 21524
    %1815 = vst.msk [vmem:[#allocation7 - $0x4] sm:$0x30] %vm1814, %v1812
    %1816 = vrot.lane.b32.xlu0 %v1802, 3
    %v1817 = vpop.permute.xlu0 %1816
    %vm1819 = vcmask 31774
    %1820 = vst.msk [vmem:[#allocation7 - $0x6] sm:$0xc0] %vm1819, %v1817
    // Predicated region
    $region50: #{summary_model_forward.1} parent=1 // pred_check
      _
    $region51: #{summary_model_forward.1} parent=1 // pred_check_branch
      %1822 = sbr.rel (0) target = $region53
    $region52: #{summary_model_forward.1} parent=1 // pred_region
      %s1824 = ssub.s32 32, 32
      %1825 = vsyncadd [#allocation8], %s1824
      %s1827 = sshll.u32 [#allocation7], 4
      %s1828 = int_to_ptr.vmem [resolvable:$true] %s1827
      %1830 = dma.vmem_to_hbm [thread:$0]  %s1828, 32, %s12, [#allocation8]
    $region53: #{summary_model_forward.1} parent=1 // pred_fallthru
      _
    // Predicated region
    $region54: #{summary_model_forward.1} parent=1 // pred_check
      _
    $region55: #{summary_model_forward.1} parent=1 // pred_check_branch
      %1832 = sbr.rel (0) target = $region57
    $region56: #{summary_model_forward.1} parent=1 // pred_region
      %1833 = dma.done [#allocation8], 32
    $region57: #{summary_model_forward.1} parent=1 // pred_fallthru
      _
    %1834 = vsyncpa [#allocation8], 1

</llo_original>
